<compile_context>
chip_gen: v7x
topology: tpu7x:2x2x1
jax: 0.10.0
libtpu: 0.0.40
codegen_flags: <defaults>
</compile_context>

<pallas_src>
import functools

import numpy as np
import jax
import jax.numpy as jnp
from jax.experimental import pallas as pl
from jax.experimental.pallas import tpu as pltpu

LOG_STD_MIN = -20.0
LOG_STD_MAX = 2.0
_CPAD = 128   # conv2 output channels padded to one full lane tile
_HPAD = 128   # actor-head output lanes: [mu | log_std | zeros]


# ----------------------------- Pallas kernels ------------------------------

def _conv_stack_kernel(p1_ref, w1_ref, b1_ref, g_ref, w2_ref, b2_ref, o_ref,
                       *, batch, s1, s2, ntaps):
    # conv1: one im2col matmul over all batches (rows = (b, oh, ow)).
    h1 = jnp.dot(p1_ref[...], w1_ref[...], preferred_element_type=jnp.float32)
    h1 = jnp.maximum(h1 + b1_ref[...], 0.0)                  # (batch*s1, 32)

    blocks = []
    for b in range(batch):                                   # static unroll
        h1b = h1[b * s1:(b + 1) * s1, :]                     # (s1, 32)
        acc = None
        for t in range(ntaps):                               # static unroll (4)
            # Constant 0/1 gather matrix re-assembles the conv2 patch rows on
            # the MXU, avoiding any in-kernel reshape/relayout.
            sel = jnp.dot(g_ref[t], h1b, preferred_element_type=jnp.float32)
            con = jnp.dot(sel, w2_ref[t], preferred_element_type=jnp.float32)
            acc = con if acc is None else acc + con
        blocks.append(jnp.maximum(acc + b2_ref[...], 0.0))   # (s2, CPAD)
    out = blocks[0] if batch == 1 else jnp.concatenate(blocks, axis=0)
    o_ref[...] = out                                          # lane-dense store


def _mlp_tail_kernel(cf_ref, xyz_ref, wfc1_ref, bfc1_ref, wfc2a_ref, wfc2b_ref,
                     bfc2_ref, whead_ref, bhead_ref, o_ref,
                     *, action_size, log_std_min, log_std_max):
    # fc1 (consumes the NHWC+padded conv activation; weight permuted at init).
    h1 = jnp.dot(cf_ref[...], wfc1_ref[...], preferred_element_type=jnp.float32)
    h1 = jnp.maximum(h1 + bfc1_ref[...], 0.0)                      # (B, hidden)
    # concat([flat1, xyz]) @ Wfc2 expressed as two matmuls on split weights.
    h2 = (jnp.dot(h1, wfc2a_ref[...], preferred_element_type=jnp.float32)
          + jnp.dot(xyz_ref[...], wfc2b_ref[...], preferred_element_type=jnp.float32)
          + bfc2_ref[...])
    h2 = jnp.maximum(h2, 0.0)                                      # (B, d)
    # Fused actor head: one 128-lane padded dot -> [mu | log_std | 0...],
    # clamp applied only to the log_std lanes via a lane-index mask.
    y = jnp.dot(h2, whead_ref[...], preferred_element_type=jnp.float32) + bhead_ref[...]
    lane = jax.lax.broadcasted_iota(jnp.int32, y.shape, 1)
    y = jnp.where(lane >= action_size,
                  jnp.clip(y, log_std_min, log_std_max), y)
    o_ref[...] = y                                                  # lane-dense store


# ----------------------------- pallas_call wrappers -------------------------

def _conv_stack_call(p1, w1m, b1m, g2, w2t, b2m, *, batch, s1, s2, ntaps, cpad):
    kernel = functools.partial(_conv_stack_kernel, batch=batch, s1=s1, s2=s2,
                               ntaps=ntaps)
    return pl.pallas_call(
        kernel,
        out_shape=jax.ShapeDtypeStruct((batch * s2, cpad), jnp.float32),
        in_specs=[pl.BlockSpec(memory_space=pltpu.MemorySpace.VMEM)] * 6,
        out_specs=pl.BlockSpec(memory_space=pltpu.MemorySpace.VMEM),
    )(p1, w1m, b1m, g2, w2t, b2m)


def _mlp_tail_call(conv_flat, xyz, params, *, batch, hpad, action_size):
    kernel = functools.partial(_mlp_tail_kernel, action_size=action_size,
                               log_std_min=LOG_STD_MIN, log_std_max=LOG_STD_MAX)
    return pl.pallas_call(
        kernel,
        out_shape=jax.ShapeDtypeStruct((batch, hpad), jnp.float32),
        in_specs=[pl.BlockSpec(memory_space=pltpu.MemorySpace.VMEM)] * 9,
        out_specs=pl.BlockSpec(memory_space=pltpu.MemorySpace.VMEM),
    )(conv_flat, xyz, params['wfc1'], params['bfc1'], params['wfc2a'],
      params['wfc2b'], params['bfc2'], params['whead'], params['bhead'])


# ----------------------------- jitted forward -------------------------------

def _forward_impl(params, state, *, cfg):
    state = state.astype(jnp.float32)                     # (B, C, H, W), NCHW
    B = state.shape[0]
    cin, kh1, kw1, st1 = cfg['cin'], cfg['kh1'], cfg['kw1'], cfg['st1']
    oh1, ow1 = cfg['oh1'], cfg['ow1']

    # conv1 im2col in NHWC feature order (i, j, c).  Under jit this is a few
    # fused static slices, not eager dispatches; no NCHW activation transpose
    # happens later because fc1's weight was permuted at init.
    x = jnp.transpose(state[:, :-1, :, :], (0, 2, 3, 1))  # (B, H, W, Cin)
    taps = []
    for i in range(kh1):
        for j in range(kw1):
            taps.append(x[:, i:i + st1 * (oh1 - 1) + 1:st1,
                             j:j + st1 * (ow1 - 1) + 1:st1, :])
    patches1 = jnp.concatenate(taps, axis=-1).reshape(B * oh1 * ow1,
                                                      kh1 * kw1 * cin)

    conv_out = _conv_stack_call(patches1, params['w1m'], params['b1m'],
                                params['g2'], params['w2t'], params['b2m'],
                                batch=B, s1=cfg['s1'], s2=cfg['s2'],
                                ntaps=cfg['kh2'] * cfg['kw2'], cpad=cfg['cpad'])
    conv_flat = conv_out.reshape(B, cfg['s2'] * cfg['cpad'])   # NHWC(+pad) flatten

    xyz = jnp.stack([state[:, -1, 0, 0], state[:, -1, 0, 1]], axis=-1)  # (B, 2)

    head = _mlp_tail_call(conv_flat, xyz, params,
                          batch=B, hpad=cfg['hpad'], action_size=cfg['action'])
    a = cfg['action']
    return head[:, :a], head[:, a:2 * a]


# ----------------------------- ActorNetwork --------------------------------

class ActorNetworkPallas:
    def __init__(self, input_dims, action_size, hidden_size=32,
                 num_rel_positions=2, init_w=0.003, key=None):
        assert num_rel_positions == 2, "xyz extraction assumes 2 relative positions"
        if key is None:
            key = jax.random.PRNGKey(0)

        cin = input_dims[0] - 1
        h, w = input_dims[1], input_dims[2]
        kh1 = kw1 = 4; st1 = 2
        kh2 = kw2 = 2; st2 = 1
        c1, c2 = 32, 64
        oh1 = (h - kh1) // st1 + 1
        ow1 = (w - kw1) // st1 + 1
        oh2 = (oh1 - kh2) // st2 + 1
        ow2 = (ow1 - kw2) // st2 + 1
        s1, s2 = oh1 * ow1, oh2 * ow2
        fc_in = c2 * s2
        d = hidden_size + num_rel_positions
        assert 2 * action_size <= _HPAD and c2 <= _CPAD

        ks = jax.random.split(key, 12)

        def u(k, shape, lim):
            return jax.random.uniform(k, shape, jnp.float32, -lim, lim)

        # PyTorch-layout parameters (deterministic synthetic init, same shapes
        # as the reference nn.Module).
        self.conv1_w = u(ks[0], (c1, cin, kh1, kw1), 1.0 / (cin * kh1 * kw1) ** 0.5)
        self.conv1_b = u(ks[1], (c1,), 1.0 / (cin * kh1 * kw1) ** 0.5)
        self.conv2_w = u(ks[2], (c2, c1, kh2, kw2), 1.0 / (c1 * kh2 * kw2) ** 0.5)
        self.conv2_b = u(ks[3], (c2,), 1.0 / (c1 * kh2 * kw2) ** 0.5)
        # hidden_init() uses weight.size()[0] == out_features as "fan_in".
        self.fc1_w = u(ks[4], (hidden_size, fc_in), 1.0 / hidden_size ** 0.5)
        self.fc1_b = u(ks[5], (hidden_size,), 1.0 / fc_in ** 0.5)
        self.fc2_w = u(ks[6], (d, d), 1.0 / d ** 0.5)
        self.fc2_b = u(ks[7], (d,), 1.0 / d ** 0.5)
        self.mu_w = u(ks[8], (action_size, d), init_w)
        self.mu_b = u(ks[9], (action_size,), init_w)
        self.ls_w = u(ks[10], (action_size, d), init_w)
        self.ls_b = u(ks[11], (action_size,), init_w)

        # ---- matmul-ready parameter layouts (hoisted out of forward) ----
        # conv1 weight -> (kh*kw*cin, 32), row order (i, j, c) to match im2col.
        w1m = jnp.transpose(self.conv1_w, (2, 3, 1, 0)).reshape(kh1 * kw1 * cin, c1)
        b1m = self.conv1_b.reshape(1, c1)

        # conv2 weights per (i, j) tap: (4, 32, 64), lane-padded to 128.
        w2t = jnp.transpose(self.conv2_w, (2, 3, 1, 0)).reshape(kh2 * kw2, c1, c2)
        w2t = jnp.pad(w2t, ((0, 0), (0, 0), (0, _CPAD - c2)))
        b2m = jnp.pad(self.conv2_b, (0, _CPAD - c2)).reshape(1, _CPAD)

        # Constant 0/1 row-gather matrices: conv2 tap (i, j) <- conv1 rows.
        g2 = np.zeros((kh2 * kw2, s2, s1), np.float32)
        for i in range(kh2):
            for j in range(kw2):
                t = i * kw2 + j
                for r in range(oh2):
                    for c in range(ow2):
                        g2[t, r * ow2 + c, (r * st2 + i) * ow1 + (c * st2 + j)] = 1.0
        g2 = jnp.asarray(g2)

        # fc1 consumes the NHWC + channel-padded conv activation directly:
        # permute / pad its columns once here instead of transposing
        # activations every call.  (PyTorch flatten order is c*s + s_idx.)
        wfc1 = self.fc1_w.reshape(hidden_size, c2, s2)        # [h, c, s]
        wfc1 = jnp.transpose(wfc1, (2, 1, 0))                 # [s, c, h]
        wfc1 = jnp.pad(wfc1, ((0, 0), (0, _CPAD - c2), (0, 0)))
        wfc1 = wfc1.reshape(s2 * _CPAD, hidden_size)
        bfc1 = self.fc1_b.reshape(1, hidden_size)

        # fc2 split into [flat1 | xyz] input blocks so no concat is needed.
        fc2_wT = jnp.transpose(self.fc2_w)                    # (d_in, d_out)
        wfc2a = fc2_wT[:hidden_size, :]
        wfc2b = fc2_wT[hidden_size:, :]
        bfc2 = self.fc2_b.reshape(1, d)

        # mu and log_std heads packed into one 128-lane-padded weight.
        whead = jnp.zeros((d, _HPAD), jnp.float32)
        whead = whead.at[:, :action_size].set(jnp.transpose(self.mu_w))
        whead = whead.at[:, action_size:2 * action_size].set(jnp.transpose(self.ls_w))
        bhead = jnp.zeros((1, _HPAD), jnp.float32)
        bhead = bhead.at[0, :action_size].set(self.mu_b)
        bhead = bhead.at[0, action_size:2 * action_size].set(self.ls_b)

        self.params = dict(w1m=w1m, b1m=b1m, g2=g2, w2t=w2t, b2m=b2m,
                           wfc1=wfc1, bfc1=bfc1, wfc2a=wfc2a, wfc2b=wfc2b,
                           bfc2=bfc2, whead=whead, bhead=bhead)

        cfg = dict(cin=cin, kh1=kh1, kw1=kw1, st1=st1,
                   kh2=kh2, kw2=kw2, st2=st2,
                   oh1=oh1, ow1=ow1, oh2=oh2, ow2=ow2,
                   s1=s1, s2=s2, cpad=_CPAD, hpad=_HPAD, action=action_size)
        self._jit_forward = jax.jit(functools.partial(_forward_impl, cfg=cfg))

    def forward(self, state):
        return self._jit_forward(self.params, state)


# ----------------------------- pure-JAX reference ---------------------------

def _reference_forward(net, state):
    state = state.astype(jnp.float32)
    hp = jax.lax.Precision.HIGHEST
    x = state[:, :-1, :, :]
    y = jax.lax.conv_general_dilated(x, net.conv1_w, (2, 2), 'VALID',
                                     dimension_numbers=('NCHW', 'OIHW', 'NCHW'),
                                     precision=hp)
    y = jnp.maximum(y + net.conv1_b[None, :, None, None], 0.0)
    y = jax.lax.conv_general_dilated(y, net.conv2_w, (1, 1), 'VALID',
                                     dimension_numbers=('NCHW', 'OIHW', 'NCHW'),
                                     precision=hp)
    y = jnp.maximum(y + net.conv2_b[None, :, None, None], 0.0)
    flat = y.reshape(y.shape[0], -1)
    h1 = jnp.maximum(jnp.dot(flat, net.fc1_w.T, precision=hp) + net.fc1_b, 0.0)
    xyz = jnp.stack([state[:, -1, 0, 0], state[:, -1, 0, 1]], axis=-1)
    cat = jnp.concatenate([h1, xyz], axis=1)
    h2 = jnp.maximum(jnp.dot(cat, net.fc2_w.T, precision=hp) + net.fc2_b, 0.0)
    mu = jnp.dot(h2, net.mu_w.T, precision=hp) + net.mu_b
    ls = jnp.clip(jnp.dot(h2, net.ls_w.T, precision=hp) + net.ls_b,
                  LOG_STD_MIN, LOG_STD_MAX)
    return mu, ls


# ----------------------------- main -----------------------------------------

if __name__ == "__main__":
    key = jax.random.PRNGKey(0)
    k_state, k_params = jax.random.split(key)

    # input_dims = (5, 16, 16): 4 image channels + 1 "position" channel.
    input_dims = (5, 16, 16)
    action_size = 4
    batch = 2

    state = jax.random.normal(k_state, (batch,) + input_dims, dtype=jnp.float32)

    net = ActorNetworkPallas(input_dims, action_size, hidden_size=32,
                             num_rel_positions=2, key=k_params)

    mu, log_std = net.forward(state)
    jax.block_until_ready((mu, log_std))

    assert mu.shape == (batch, action_size)
    assert log_std.shape == (batch, action_size)
    assert bool(jnp.all(log_std >= LOG_STD_MIN)) and bool(jnp.all(log_std <= LOG_STD_MAX))

    # Cross-check the fused Pallas pipeline against a pure-JAX reference.
    ref_mu, ref_ls = _reference_forward(net, state)
    assert jnp.allclose(mu, ref_mu, rtol=2e-2, atol=5e-3), "mu mismatch vs reference"
    assert jnp.allclose(log_std, ref_ls, rtol=2e-2, atol=5e-3), "log_std mismatch vs reference"

    print("KERNEL_OK")
</pallas_src>

<mosaic_0001>
module attributes {stable_mosaic.version = 11 : i64} {
  func.func @_conv_stack_kernel(%arg0: memref<98x64xf32, #tpu.memory_space<vmem>>, %arg1: memref<64x32xf32, #tpu.memory_space<vmem>>, %arg2: memref<1x32xf32, #tpu.memory_space<vmem>>, %arg3: memref<4x36x49xf32, #tpu.memory_space<vmem>>, %arg4: memref<4x32x128xf32, #tpu.memory_space<vmem>>, %arg5: memref<1x128xf32, #tpu.memory_space<vmem>>, %arg6: memref<72x128xf32, #tpu.memory_space<vmem>>) attributes {dimension_semantics = [], scalar_prefetch = 0 : i64, scratch_operands = 0 : i64, tpu.core_type = #tpu.core_type<tc>} {
    %c0 = arith.constant 0 : index
    %c0_0 = arith.constant 0 : index
    %0 = vector.load %arg0[%c0, %c0_0] : memref<98x64xf32, #tpu.memory_space<vmem>>, vector<98x64xf32>
    %c0_1 = arith.constant 0 : index
    %c0_2 = arith.constant 0 : index
    %1 = vector.load %arg1[%c0_1, %c0_2] : memref<64x32xf32, #tpu.memory_space<vmem>>, vector<64x32xf32>
    %cst = arith.constant dense<0.000000e+00> : vector<98x32xf32>
    %2 = tpu.matmul %0, %1, %cst {dimension_numbers = #tpu.dot_dimension_numbers<[1], [0], [0], [1], [0, 0, 1, 1], [], []>} : vector<98x64xf32>, vector<64x32xf32>, vector<98x32xf32> -> vector<98x32xf32>
    %c0_3 = arith.constant 0 : index
    %c0_4 = arith.constant 0 : index
    %3 = vector.load %arg2[%c0_3, %c0_4] : memref<1x32xf32, #tpu.memory_space<vmem>>, vector<1x32xf32>
    %4 = vector.broadcast %3 : vector<1x32xf32> to vector<98x32xf32>
    %5 = arith.addf %2, %4 : vector<98x32xf32>
    %cst_5 = arith.constant 0.000000e+00 : f32
    %6 = vector.broadcast %cst_5 : f32 to vector<98x32xf32>
    %7 = arith.maximumf %5, %6 : vector<98x32xf32>
    %8 = vector.extract_strided_slice %7 {offsets = [0, 0], sizes = [49, 32], strides = [1, 1]} : vector<98x32xf32> to vector<49x32xf32>
    %c0_6 = arith.constant 0 : index
    %c0_7 = arith.constant 0 : index
    %c0_8 = arith.constant 0 : index
    %9 = vector.load %arg3[%c0_6, %c0_7, %c0_8] : memref<4x36x49xf32, #tpu.memory_space<vmem>>, vector<1x36x49xf32>
    %10 = vector.shape_cast %9 : vector<1x36x49xf32> to vector<36x49xf32>
    %cst_9 = arith.constant dense<0.000000e+00> : vector<36x32xf32>
    %11 = tpu.matmul %10, %8, %cst_9 {dimension_numbers = #tpu.dot_dimension_numbers<[1], [0], [0], [1], [0, 0, 1, 1], [], []>} : vector<36x49xf32>, vector<49x32xf32>, vector<36x32xf32> -> vector<36x32xf32>
    %c0_10 = arith.constant 0 : index
    %c0_11 = arith.constant 0 : index
    %c0_12 = arith.constant 0 : index
    %12 = vector.load %arg4[%c0_10, %c0_11, %c0_12] : memref<4x32x128xf32, #tpu.memory_space<vmem>>, vector<1x32x128xf32>
    %13 = vector.shape_cast %12 : vector<1x32x128xf32> to vector<32x128xf32>
    %cst_13 = arith.constant dense<0.000000e+00> : vector<36x128xf32>
    %14 = tpu.matmul %11, %13, %cst_13 {dimension_numbers = #tpu.dot_dimension_numbers<[1], [0], [0], [1], [0, 0, 1, 1], [], []>} : vector<36x32xf32>, vector<32x128xf32>, vector<36x128xf32> -> vector<36x128xf32>
    %c1 = arith.constant 1 : index
    %c0_14 = arith.constant 0 : index
    %c0_15 = arith.constant 0 : index
    %15 = vector.load %arg3[%c1, %c0_14, %c0_15] : memref<4x36x49xf32, #tpu.memory_space<vmem>>, vector<1x36x49xf32>
    %16 = vector.shape_cast %15 : vector<1x36x49xf32> to vector<36x49xf32>
    %cst_16 = arith.constant dense<0.000000e+00> : vector<36x32xf32>
    %17 = tpu.matmul %16, %8, %cst_16 {dimension_numbers = #tpu.dot_dimension_numbers<[1], [0], [0], [1], [0, 0, 1, 1], [], []>} : vector<36x49xf32>, vector<49x32xf32>, vector<36x32xf32> -> vector<36x32xf32>
    %c1_17 = arith.constant 1 : index
    %c0_18 = arith.constant 0 : index
    %c0_19 = arith.constant 0 : index
    %18 = vector.load %arg4[%c1_17, %c0_18, %c0_19] : memref<4x32x128xf32, #tpu.memory_space<vmem>>, vector<1x32x128xf32>
    %19 = vector.shape_cast %18 : vector<1x32x128xf32> to vector<32x128xf32>
    %cst_20 = arith.constant dense<0.000000e+00> : vector<36x128xf32>
    %20 = tpu.matmul %17, %19, %cst_20 {dimension_numbers = #tpu.dot_dimension_numbers<[1], [0], [0], [1], [0, 0, 1, 1], [], []>} : vector<36x32xf32>, vector<32x128xf32>, vector<36x128xf32> -> vector<36x128xf32>
    %21 = arith.addf %14, %20 : vector<36x128xf32>
    %c2 = arith.constant 2 : index
    %c0_21 = arith.constant 0 : index
    %c0_22 = arith.constant 0 : index
    %22 = vector.load %arg3[%c2, %c0_21, %c0_22] : memref<4x36x49xf32, #tpu.memory_space<vmem>>, vector<1x36x49xf32>
    %23 = vector.shape_cast %22 : vector<1x36x49xf32> to vector<36x49xf32>
    %cst_23 = arith.constant dense<0.000000e+00> : vector<36x32xf32>
    %24 = tpu.matmul %23, %8, %cst_23 {dimension_numbers = #tpu.dot_dimension_numbers<[1], [0], [0], [1], [0, 0, 1, 1], [], []>} : vector<36x49xf32>, vector<49x32xf32>, vector<36x32xf32> -> vector<36x32xf32>
    %c2_24 = arith.constant 2 : index
    %c0_25 = arith.constant 0 : index
    %c0_26 = arith.constant 0 : index
    %25 = vector.load %arg4[%c2_24, %c0_25, %c0_26] : memref<4x32x128xf32, #tpu.memory_space<vmem>>, vector<1x32x128xf32>
    %26 = vector.shape_cast %25 : vector<1x32x128xf32> to vector<32x128xf32>
    %cst_27 = arith.constant dense<0.000000e+00> : vector<36x128xf32>
    %27 = tpu.matmul %24, %26, %cst_27 {dimension_numbers = #tpu.dot_dimension_numbers<[1], [0], [0], [1], [0, 0, 1, 1], [], []>} : vector<36x32xf32>, vector<32x128xf32>, vector<36x128xf32> -> vector<36x128xf32>
    %28 = arith.addf %21, %27 : vector<36x128xf32>
    %c3 = arith.constant 3 : index
    %c0_28 = arith.constant 0 : index
    %c0_29 = arith.constant 0 : index
    %29 = vector.load %arg3[%c3, %c0_28, %c0_29] : memref<4x36x49xf32, #tpu.memory_space<vmem>>, vector<1x36x49xf32>
    %30 = vector.shape_cast %29 : vector<1x36x49xf32> to vector<36x49xf32>
    %cst_30 = arith.constant dense<0.000000e+00> : vector<36x32xf32>
    %31 = tpu.matmul %30, %8, %cst_30 {dimension_numbers = #tpu.dot_dimension_numbers<[1], [0], [0], [1], [0, 0, 1, 1], [], []>} : vector<36x49xf32>, vector<49x32xf32>, vector<36x32xf32> -> vector<36x32xf32>
    %c3_31 = arith.constant 3 : index
    %c0_32 = arith.constant 0 : index
    %c0_33 = arith.constant 0 : index
    %32 = vector.load %arg4[%c3_31, %c0_32, %c0_33] : memref<4x32x128xf32, #tpu.memory_space<vmem>>, vector<1x32x128xf32>
    %33 = vector.shape_cast %32 : vector<1x32x128xf32> to vector<32x128xf32>
    %cst_34 = arith.constant dense<0.000000e+00> : vector<36x128xf32>
    %34 = tpu.matmul %31, %33, %cst_34 {dimension_numbers = #tpu.dot_dimension_numbers<[1], [0], [0], [1], [0, 0, 1, 1], [], []>} : vector<36x32xf32>, vector<32x128xf32>, vector<36x128xf32> -> vector<36x128xf32>
    %35 = arith.addf %28, %34 : vector<36x128xf32>
    %c0_35 = arith.constant 0 : index
    %c0_36 = arith.constant 0 : index
    %36 = vector.load %arg5[%c0_35, %c0_36] : memref<1x128xf32, #tpu.memory_space<vmem>>, vector<1x128xf32>
    %37 = vector.broadcast %36 : vector<1x128xf32> to vector<36x128xf32>
    %38 = arith.addf %35, %37 : vector<36x128xf32>
    %cst_37 = arith.constant 0.000000e+00 : f32
    %39 = vector.broadcast %cst_37 : f32 to vector<36x128xf32>
    %40 = arith.maximumf %38, %39 : vector<36x128xf32>
    %41 = vector.extract_strided_slice %7 {offsets = [49, 0], sizes = [49, 32], strides = [1, 1]} : vector<98x32xf32> to vector<49x32xf32>
    %c0_38 = arith.constant 0 : index
    %c0_39 = arith.constant 0 : index
    %c0_40 = arith.constant 0 : index
    %42 = vector.load %arg3[%c0_38, %c0_39, %c0_40] : memref<4x36x49xf32, #tpu.memory_space<vmem>>, vector<1x36x49xf32>
    %43 = vector.shape_cast %42 : vector<1x36x49xf32> to vector<36x49xf32>
    %cst_41 = arith.constant dense<0.000000e+00> : vector<36x32xf32>
    %44 = tpu.matmul %43, %41, %cst_41 {dimension_numbers = #tpu.dot_dimension_numbers<[1], [0], [0], [1], [0, 0, 1, 1], [], []>} : vector<36x49xf32>, vector<49x32xf32>, vector<36x32xf32> -> vector<36x32xf32>
    %c0_42 = arith.constant 0 : index
    %c0_43 = arith.constant 0 : index
    %c0_44 = arith.constant 0 : index
    %45 = vector.load %arg4[%c0_42, %c0_43, %c0_44] : memref<4x32x128xf32, #tpu.memory_space<vmem>>, vector<1x32x128xf32>
    %46 = vector.shape_cast %45 : vector<1x32x128xf32> to vector<32x128xf32>
    %cst_45 = arith.constant dense<0.000000e+00> : vector<36x128xf32>
    %47 = tpu.matmul %44, %46, %cst_45 {dimension_numbers = #tpu.dot_dimension_numbers<[1], [0], [0], [1], [0, 0, 1, 1], [], []>} : vector<36x32xf32>, vector<32x128xf32>, vector<36x128xf32> -> vector<36x128xf32>
    %c1_46 = arith.constant 1 : index
    %c0_47 = arith.constant 0 : index
    %c0_48 = arith.constant 0 : index
    %48 = vector.load %arg3[%c1_46, %c0_47, %c0_48] : memref<4x36x49xf32, #tpu.memory_space<vmem>>, vector<1x36x49xf32>
    %49 = vector.shape_cast %48 : vector<1x36x49xf32> to vector<36x49xf32>
    %cst_49 = arith.constant dense<0.000000e+00> : vector<36x32xf32>
    %50 = tpu.matmul %49, %41, %cst_49 {dimension_numbers = #tpu.dot_dimension_numbers<[1], [0], [0], [1], [0, 0, 1, 1], [], []>} : vector<36x49xf32>, vector<49x32xf32>, vector<36x32xf32> -> vector<36x32xf32>
    %c1_50 = arith.constant 1 : index
    %c0_51 = arith.constant 0 : index
    %c0_52 = arith.constant 0 : index
    %51 = vector.load %arg4[%c1_50, %c0_51, %c0_52] : memref<4x32x128xf32, #tpu.memory_space<vmem>>, vector<1x32x128xf32>
    %52 = vector.shape_cast %51 : vector<1x32x128xf32> to vector<32x128xf32>
    %cst_53 = arith.constant dense<0.000000e+00> : vector<36x128xf32>
    %53 = tpu.matmul %50, %52, %cst_53 {dimension_numbers = #tpu.dot_dimension_numbers<[1], [0], [0], [1], [0, 0, 1, 1], [], []>} : vector<36x32xf32>, vector<32x128xf32>, vector<36x128xf32> -> vector<36x128xf32>
    %54 = arith.addf %47, %53 : vector<36x128xf32>
    %c2_54 = arith.constant 2 : index
    %c0_55 = arith.constant 0 : index
    %c0_56 = arith.constant 0 : index
    %55 = vector.load %arg3[%c2_54, %c0_55, %c0_56] : memref<4x36x49xf32, #tpu.memory_space<vmem>>, vector<1x36x49xf32>
    %56 = vector.shape_cast %55 : vector<1x36x49xf32> to vector<36x49xf32>
    %cst_57 = arith.constant dense<0.000000e+00> : vector<36x32xf32>
    %57 = tpu.matmul %56, %41, %cst_57 {dimension_numbers = #tpu.dot_dimension_numbers<[1], [0], [0], [1], [0, 0, 1, 1], [], []>} : vector<36x49xf32>, vector<49x32xf32>, vector<36x32xf32> -> vector<36x32xf32>
    %c2_58 = arith.constant 2 : index
    %c0_59 = arith.constant 0 : index
    %c0_60 = arith.constant 0 : index
    %58 = vector.load %arg4[%c2_58, %c0_59, %c0_60] : memref<4x32x128xf32, #tpu.memory_space<vmem>>, vector<1x32x128xf32>
    %59 = vector.shape_cast %58 : vector<1x32x128xf32> to vector<32x128xf32>
    %cst_61 = arith.constant dense<0.000000e+00> : vector<36x128xf32>
    %60 = tpu.matmul %57, %59, %cst_61 {dimension_numbers = #tpu.dot_dimension_numbers<[1], [0], [0], [1], [0, 0, 1, 1], [], []>} : vector<36x32xf32>, vector<32x128xf32>, vector<36x128xf32> -> vector<36x128xf32>
    %61 = arith.addf %54, %60 : vector<36x128xf32>
    %c3_62 = arith.constant 3 : index
    %c0_63 = arith.constant 0 : index
    %c0_64 = arith.constant 0 : index
    %62 = vector.load %arg3[%c3_62, %c0_63, %c0_64] : memref<4x36x49xf32, #tpu.memory_space<vmem>>, vector<1x36x49xf32>
    %63 = vector.shape_cast %62 : vector<1x36x49xf32> to vector<36x49xf32>
    %cst_65 = arith.constant dense<0.000000e+00> : vector<36x32xf32>
    %64 = tpu.matmul %63, %41, %cst_65 {dimension_numbers = #tpu.dot_dimension_numbers<[1], [0], [0], [1], [0, 0, 1, 1], [], []>} : vector<36x49xf32>, vector<49x32xf32>, vector<36x32xf32> -> vector<36x32xf32>
    %c3_66 = arith.constant 3 : index
    %c0_67 = arith.constant 0 : index
    %c0_68 = arith.constant 0 : index
    %65 = vector.load %arg4[%c3_66, %c0_67, %c0_68] : memref<4x32x128xf32, #tpu.memory_space<vmem>>, vector<1x32x128xf32>
    %66 = vector.shape_cast %65 : vector<1x32x128xf32> to vector<32x128xf32>
    %cst_69 = arith.constant dense<0.000000e+00> : vector<36x128xf32>
    %67 = tpu.matmul %64, %66, %cst_69 {dimension_numbers = #tpu.dot_dimension_numbers<[1], [0], [0], [1], [0, 0, 1, 1], [], []>} : vector<36x32xf32>, vector<32x128xf32>, vector<36x128xf32> -> vector<36x128xf32>
    %68 = arith.addf %61, %67 : vector<36x128xf32>
    %c0_70 = arith.constant 0 : index
    %c0_71 = arith.constant 0 : index
    %69 = vector.load %arg5[%c0_70, %c0_71] : memref<1x128xf32, #tpu.memory_space<vmem>>, vector<1x128xf32>
    %70 = vector.broadcast %69 : vector<1x128xf32> to vector<36x128xf32>
    %71 = arith.addf %68, %70 : vector<36x128xf32>
    %cst_72 = arith.constant 0.000000e+00 : f32
    %72 = vector.broadcast %cst_72 : f32 to vector<36x128xf32>
    %73 = arith.maximumf %71, %72 : vector<36x128xf32>
    %74 = tpu.concatenate %40, %73 in 0 : vector<36x128xf32>, vector<36x128xf32> -> vector<72x128xf32>
    %c0_73 = arith.constant 0 : index
    %c0_74 = arith.constant 0 : index
    %75 = vector.load %arg6[%c0_73, %c0_74] : memref<72x128xf32, #tpu.memory_space<vmem>>, vector<72x128xf32>
    tpu.vector_store %arg6[%c0_73, %c0_74], %74 {strides = array<i32>} : memref<72x128xf32, #tpu.memory_space<vmem>>, vector<72x128xf32>,
    return
  }
}

module attributes {stable_mosaic.version = 11 : i64} {
  func.func @_mlp_tail_kernel(%arg0: memref<2x4608xf32, #tpu.memory_space<vmem>>, %arg1: memref<2x2xf32, #tpu.memory_space<vmem>>, %arg2: memref<4608x32xf32, #tpu.memory_space<vmem>>, %arg3: memref<1x32xf32, #tpu.memory_space<vmem>>, %arg4: memref<32x34xf32, #tpu.memory_space<vmem>>, %arg5: memref<2x34xf32, #tpu.memory_space<vmem>>, %arg6: memref<1x34xf32, #tpu.memory_space<vmem>>, %arg7: memref<34x128xf32, #tpu.memory_space<vmem>>, %arg8: memref<1x128xf32, #tpu.memory_space<vmem>>, %arg9: memref<2x128xf32, #tpu.memory_space<vmem>>) attributes {dimension_semantics = [], scalar_prefetch = 0 : i64, scratch_operands = 0 : i64, tpu.core_type = #tpu.core_type<tc>} {
    %c0 = arith.constant 0 : index
    %c0_0 = arith.constant 0 : index
    %0 = vector.load %arg0[%c0, %c0_0] : memref<2x4608xf32, #tpu.memory_space<vmem>>, vector<2x4608xf32>
    %c0_1 = arith.constant 0 : index
    %c0_2 = arith.constant 0 : index
    %1 = vector.load %arg2[%c0_1, %c0_2] : memref<4608x32xf32, #tpu.memory_space<vmem>>, vector<4608x32xf32>
    %cst = arith.constant dense<0.000000e+00> : vector<2x32xf32>
    %2 = tpu.matmul %0, %1, %cst {dimension_numbers = #tpu.dot_dimension_numbers<[1], [0], [0], [1], [0, 0, 1, 1], [], []>} : vector<2x4608xf32>, vector<4608x32xf32>, vector<2x32xf32> -> vector<2x32xf32>
    %c0_3 = arith.constant 0 : index
    %c0_4 = arith.constant 0 : index
    %3 = vector.load %arg3[%c0_3, %c0_4] : memref<1x32xf32, #tpu.memory_space<vmem>>, vector<1x32xf32>
    %4 = vector.broadcast %3 : vector<1x32xf32> to vector<2x32xf32>
    %5 = arith.addf %2, %4 : vector<2x32xf32>
    %cst_5 = arith.constant 0.000000e+00 : f32
    %6 = vector.broadcast %cst_5 : f32 to vector<2x32xf32>
    %7 = arith.maximumf %5, %6 : vector<2x32xf32>
    %c0_6 = arith.constant 0 : index
    %c0_7 = arith.constant 0 : index
    %8 = vector.load %arg4[%c0_6, %c0_7] : memref<32x34xf32, #tpu.memory_space<vmem>>, vector<32x34xf32>
    %cst_8 = arith.constant dense<0.000000e+00> : vector<2x34xf32>
    %9 = tpu.matmul %7, %8, %cst_8 {dimension_numbers = #tpu.dot_dimension_numbers<[1], [0], [0], [1], [0, 0, 1, 1], [], []>} : vector<2x32xf32>, vector<32x34xf32>, vector<2x34xf32> -> vector<2x34xf32>
    %c0_9 = arith.constant 0 : index
    %c0_10 = arith.constant 0 : index
    %10 = vector.load %arg1[%c0_9, %c0_10] : memref<2x2xf32, #tpu.memory_space<vmem>>, vector<2x2xf32>
    %c0_11 = arith.constant 0 : index
    %c0_12 = arith.constant 0 : index
    %11 = vector.load %arg5[%c0_11, %c0_12] : memref<2x34xf32, #tpu.memory_space<vmem>>, vector<2x34xf32>
    %cst_13 = arith.constant dense<0.000000e+00> : vector<2x34xf32>
    %12 = tpu.matmul %10, %11, %cst_13 {dimension_numbers = #tpu.dot_dimension_numbers<[1], [0], [0], [1], [0, 0, 1, 1], [], []>} : vector<2x2xf32>, vector<2x34xf32>, vector<2x34xf32> -> vector<2x34xf32>
    %13 = arith.addf %9, %12 : vector<2x34xf32>
    %c0_14 = arith.constant 0 : index
    %c0_15 = arith.constant 0 : index
    %14 = vector.load %arg6[%c0_14, %c0_15] : memref<1x34xf32, #tpu.memory_space<vmem>>, vector<1x34xf32>
    %15 = vector.broadcast %14 : vector<1x34xf32> to vector<2x34xf32>
    %16 = arith.addf %13, %15 : vector<2x34xf32>
    %cst_16 = arith.constant 0.000000e+00 : f32
    %17 = vector.broadcast %cst_16 : f32 to vector<2x34xf32>
    %18 = arith.maximumf %16, %17 : vector<2x34xf32>
    %c0_17 = arith.constant 0 : index
    %c0_18 = arith.constant 0 : index
    %19 = vector.load %arg7[%c0_17, %c0_18] : memref<34x128xf32, #tpu.memory_space<vmem>>, vector<34x128xf32>
    %cst_19 = arith.constant dense<0.000000e+00> : vector<2x128xf32>
    %20 = tpu.matmul %18, %19, %cst_19 {dimension_numbers = #tpu.dot_dimension_numbers<[1], [0], [0], [1], [0, 0, 1, 1], [], []>} : vector<2x34xf32>, vector<34x128xf32>, vector<2x128xf32> -> vector<2x128xf32>
    %c0_20 = arith.constant 0 : index
    %c0_21 = arith.constant 0 : index
    %21 = vector.load %arg8[%c0_20, %c0_21] : memref<1x128xf32, #tpu.memory_space<vmem>>, vector<1x128xf32>
    %22 = vector.broadcast %21 : vector<1x128xf32> to vector<2x128xf32>
    %23 = arith.addf %20, %22 : vector<2x128xf32>
    %24 = tpu.iota {dimensions = array<i32: 1>} : vector<2x128xi32>
    %c4_i32 = arith.constant 4 : i32
    %25 = vector.broadcast %c4_i32 : i32 to vector<2x128xi32>
    %26 = arith.cmpi sge, %24, %25 : vector<2x128xi32>
    %cst_22 = arith.constant -2.000000e+01 : f32
    %cst_23 = arith.constant 2.000000e+00 : f32
    %27 = vector.broadcast %cst_22 : f32 to vector<2x128xf32>
    %28 = arith.maximumf %27, %23 : vector<2x128xf32>
    %29 = vector.broadcast %cst_23 : f32 to vector<2x128xf32>
    %30 = arith.minimumf %29, %28 : vector<2x128xf32>
    %31 = arith.select %26, %30, %23 : vector<2x128xi1>, vector<2x128xf32>
    %c0_24 = arith.constant 0 : index
    %c0_25 = arith.constant 0 : index
    %32 = vector.load %arg9[%c0_24, %c0_25] : memref<2x128xf32, #tpu.memory_space<vmem>>, vector<2x128xf32>
    tpu.vector_store %arg9[%c0_24, %c0_25], %31 {strides = array<i32>} : memref<2x128xf32, #tpu.memory_space<vmem>>, vector<2x128xf32>,
    return
  }
}

</mosaic_0001>

<llo_original>
// kernel: _forward_impl.2
$region0: #{_forward_impl.2}
  #allocation0 [shape = 'u32[]', space=smem, size = 0x4, offset = 0x4, fixed_abs, tag = 'smem constant byte address 0x4 - core index']
  #allocation1 [shape = 'u32[144,128]{1,0:T(1,128)}', space=vmem, size = 0x12000, scoped, tag = 'internal scratch']
  %s0 = inlined_call_operand.vmem [shape: f32[98,64], index: 0, kind: input, shape index: {}]
  %s1 = inlined_call_operand.vmem [shape: f32[64,32], index: 1, kind: input, shape index: {}]
  %s2 = inlined_call_operand.vmem [shape: f32[1,32], index: 2, kind: input, shape index: {}]
  %s3 = inlined_call_operand.vmem [shape: f32[4,36,49], index: 3, kind: input, shape index: {}]
  %s4 = inlined_call_operand.vmem [shape: f32[4,32,128], index: 4, kind: input, shape index: {}]
  %s5 = inlined_call_operand.vmem [shape: f32[1,128], index: 5, kind: input, shape index: {}]
  %s6 = inlined_call_operand.vmem [shape: f32[72,128], index: 6, kind: output, shape index: {}]
  %s7 = sld [smem:[#allocation0]]
  $region34: #{_forward_impl.2} parent=0
    _
  %s9 = ssub.s32 1, %s7
  %s10 = scalar_select 0, %s9, %s7
  // Predicated region
  $region2: #{_forward_impl.2} parent=0 // pred_check
    _
  $region3: #{_forward_impl.2} parent=0 // pred_check_branch
    %12 = sbr.rel (0) target = $region5
  $region4: #{_forward_impl.2} parent=0 // pred_region
    _
  $region5: #{_forward_impl.2} parent=0 // pred_fallthru
    _
  // Predicated region
  $region6: #{_forward_impl.2} parent=0 // pred_check
    _
  $region7: #{_forward_impl.2} parent=0 // pred_check_branch
    %14 = sbr.rel (0) target = $region9
  $region8: #{_forward_impl.2} parent=0 // pred_region
    _
  $region9: #{_forward_impl.2} parent=0 // pred_fallthru
    _
  // Predicated region
  $region10: #{_forward_impl.2} parent=0 // pred_check
    _
  $region11: #{_forward_impl.2} parent=0 // pred_check_branch
    %16 = sbr.rel (0) target = $region13
  $region12: #{_forward_impl.2} parent=0 // pred_region
    _
  $region13: #{_forward_impl.2} parent=0 // pred_fallthru
    _
  // Predicated region
  $region14: #{_forward_impl.2} parent=0 // pred_check
    _
  $region15: #{_forward_impl.2} parent=0 // pred_check_branch
    %18 = sbr.rel (0) target = $region17
  $region16: #{_forward_impl.2} parent=0 // pred_region
    _
  $region17: #{_forward_impl.2} parent=0 // pred_fallthru
    _
  // Predicated region
  $region18: #{_forward_impl.2} parent=0 // pred_check
    _
  $region19: #{_forward_impl.2} parent=0 // pred_check_branch
    %20 = sbr.rel (0) target = $region21
  $region20: #{_forward_impl.2} parent=0 // pred_region
    _
  $region21: #{_forward_impl.2} parent=0 // pred_fallthru
    _
  // Predicated region
  $region22: #{_forward_impl.2} parent=0 // pred_check
    _
  $region23: #{_forward_impl.2} parent=0 // pred_check_branch
    %22 = sbr.rel (0) target = $region25
  $region24: #{_forward_impl.2} parent=0 // pred_region
    _
  $region25: #{_forward_impl.2} parent=0 // pred_fallthru
    _
  %v23 = vld [vmem:[%s0] sm:$0xff]
  %v24 = vld [vmem:[%s0 + $0x8] sm:$0xff]
  %v25 = vld [vmem:[%s0 + $0x10] sm:$0xff]
  %v26 = vld [vmem:[%s0 + $0x18] sm:$0xff]
  %v27 = vld [vmem:[%s0 + $0x20] sm:$0xff]
  %v28 = vld [vmem:[%s0 + $0x28] sm:$0xff]
  %v29 = vld [vmem:[%s0 + $0x30] sm:$0xff]
  %v30 = vld [vmem:[%s0 + $0x38] sm:$0xff]
  %v31 = vld [vmem:[%s0 + $0x40] sm:$0xff]
  %v32 = vld [vmem:[%s0 + $0x48] sm:$0xff]
  %v33 = vld [vmem:[%s0 + $0x50] sm:$0xff]
  %v34 = vld [vmem:[%s0 + $0x58] sm:$0xff]
  %v35 = vld [vmem:[%s0 + $0x60] sm:$0x3]
  %v36 = vld [vmem:[%s1] sm:$0xff]
  %v37 = vld [vmem:[%s1 + $0x8] sm:$0xff]
  %v38 = vld [vmem:[%s1 + $0x10] sm:$0xff]
  %v39 = vld [vmem:[%s1 + $0x18] sm:$0xff]
  %v40 = vld [vmem:[%s1 + $0x20] sm:$0xff]
  %v41 = vld [vmem:[%s1 + $0x28] sm:$0xff]
  %v42 = vld [vmem:[%s1 + $0x30] sm:$0xff]
  %v43 = vld [vmem:[%s1 + $0x38] sm:$0xff]
  %v44 = vld [vmem:[%s2] sm:$0x1]
  %v46 = vlaneseq
  %v47 = vshrl.u32 %v46, 7
  %v48 = vsub.s32 0, %v47
  %v49 = vrot.slane %v44, %v48
  %vm51 = vcmask 523264
  %v53 = vsel %vm51, %v23, 0
  %v56 = vsel %vm51, %v24, 0
  %v59 = vsel %vm51, %v25, 0
  %v62 = vsel %vm51, %v26, 0
  %v65 = vsel %vm51, %v27, 0
  %v68 = vsel %vm51, %v28, 0
  %v71 = vsel %vm51, %v29, 0
  %v74 = vsel %vm51, %v30, 0
  %v77 = vsel %vm51, %v31, 0
  %v80 = vsel %vm51, %v32, 0
  %v83 = vsel %vm51, %v33, 0
  %v86 = vsel %vm51, %v34, 0
  %v89 = vsel %vm51, %v35, 0
  %91 = vmatprep.subr.mxu0 0.0
  %92 = vmatpush1.msra.mxu0 %v36
  %93 = vmatprep.subr.mxu0 0.0
  %94 = vmatpush1.msra.mxu0 %v37
  %95 = vmatprep.subr.mxu0 0.0
  %96 = vmatpush1.msra.mxu0 %v38
  %97 = vmatprep.subr.mxu0 0.0
  %98 = vmatpush1.msra.mxu0 %v39
  %99 = vmatprep.subr.mxu0 0.0
  %100 = vmatpush1.msra.mxu0 %v40
  %101 = vmatprep.subr.mxu0 0.0
  %102 = vmatpush1.msra.mxu0 %v41
  %103 = vmatprep.subr.mxu0 0.0
  %104 = vmatpush1.msra.mxu0 %v42
  %105 = vmatprep.subr.mxu0 0.0
  %106 = vmatpush1.msra.mxu0 %v43
  %107 = vmatprep.subr.mxu0 0.0
  %108 = vmatpush1.msra.mxu0 0.0
  %109 = vmatprep.subr.mxu0 0.0
  %110 = vmatpush1.msra.mxu0 0.0
  %111 = vmatprep.subr.mxu0 0.0
  %112 = vmatpush1.msra.mxu0 0.0
  %113 = vmatprep.subr.mxu0 0.0
  %114 = vmatpush1.msra.mxu0 0.0
  %115 = vmatprep.subr.mxu0 0.0
  %116 = vmatpush1.msra.mxu0 0.0
  %117 = vmatprep.subr.mxu0 0.0
  %118 = vmatpush1.msra.mxu0 0.0
  %119 = vmatprep.subr.mxu0 0.0
  %120 = vmatpush1.msra.mxu0 0.0
  %121 = vmatprep.subr.mxu0 0.0
  %122 = vmatpush1.msra.mxu0 0.0
  %123 = vmatprep.subr.mxu0 0.0
  %124 = vmatpush1.msra.mxu0 0.0
  %125 = vmatprep.subr.mxu0 0.0
  %126 = vmatpush1.msra.mxu0 0.0
  %127 = vmatprep.subr.mxu0 0.0
  %128 = vmatpush1.msra.mxu0 0.0
  %129 = vmatprep.subr.mxu0 0.0
  %130 = vmatpush1.msra.mxu0 0.0
  %131 = vmatprep.subr.mxu0 0.0
  %132 = vmatpush1.msra.mxu0 0.0
  %133 = vmatprep.subr.mxu0 0.0
  %134 = vmatpush1.msra.mxu0 0.0
  %135 = vmatprep.subr.mxu0 0.0
  %136 = vmatpush1.msra.mxu0 0.0
  %137 = vmatprep.subr.mxu0 0.0
  %138 = vmatpush1.msra.mxu0 0.0
  %139 = vmatprep.subr.mxu0 0.0
  %140 = vmatpush1.msra.mxu0 0.0
  %141 = vmatprep.subr.mxu0 0.0
  %142 = vmatpush1.msra.mxu0 0.0
  %143 = vmatprep.subr.mxu0 0.0
  %144 = vmatpush1.msra.mxu0 0.0
  %145 = vmatprep.subr.mxu0 0.0
  %146 = vmatpush1.msra.mxu0 0.0
  %147 = vmatprep.subr.mxu0 0.0
  %148 = vmatpush1.msra.mxu0 0.0
  %149 = vmatprep.subr.mxu0 0.0
  %150 = vmatpush1.msra.mxu0 0.0
  %151 = vmatprep.subr.mxu0 0.0
  %152 = vmatpush1.msra.mxu0 0.0
  %153 = vmatprep.subr.mxu0 0.0
  %154 = vmatpush1.msra.mxu0 0.0
  %155 = vmatprep.mubr.f32.mxu0 0.0
  %156 = vmatmul.mubr.f32.gmra.mrb[0].mxu0 %v53
  %v157 = vpop.f32.mrb[0].mxu0
  %v158 = vadd.f32 %v49, %v157
  %v159 = vpop.f32.mrb[0].mxu0
  %160 = vmatprep.mubr.f32.mxu0 0.0
  %161 = vmatmul.mubr.f32.gmra.mrb[0].mxu0 %v56
  %v162 = vpop.f32.mrb[0].mxu0
  %v163 = vadd.f32 %v49, %v162
  %v164 = vpop.f32.mrb[0].mxu0
  %165 = vmatprep.mubr.f32.mxu0 0.0
  %166 = vmatmul.mubr.f32.gmra.mrb[0].mxu0 %v59
  %v167 = vpop.f32.mrb[0].mxu0
  %v168 = vadd.f32 %v49, %v167
  %v169 = vpop.f32.mrb[0].mxu0
  %170 = vmatprep.mubr.f32.mxu0 0.0
  %171 = vmatmul.mubr.f32.gmra.mrb[0].mxu0 %v62
  %v172 = vpop.f32.mrb[0].mxu0
  %v173 = vadd.f32 %v49, %v172
  %v174 = vpop.f32.mrb[0].mxu0
  %175 = vmatprep.mubr.f32.mxu0 0.0
  %176 = vmatmul.mubr.f32.gmra.mrb[0].mxu0 %v65
  %v177 = vpop.f32.mrb[0].mxu0
  %v178 = vadd.f32 %v49, %v177
  %v179 = vpop.f32.mrb[0].mxu0
  %180 = vmatprep.mubr.f32.mxu0 0.0
  %181 = vmatmul.mubr.f32.gmra.mrb[0].mxu0 %v68
  %v182 = vpop.f32.mrb[0].mxu0
  %v183 = vadd.f32 %v49, %v182
  %v184 = vpop.f32.mrb[0].mxu0
  %185 = vmatprep.mubr.f32.mxu0 0.0
  %186 = vmatmul.mubr.f32.gmra.mrb[0].mxu0 %v71
  %v187 = vpop.f32.mrb[0].mxu0
  %v188 = vadd.f32 %v49, %v187
  %v189 = vpop.f32.mrb[0].mxu0
  %190 = vmatprep.mubr.f32.mxu0 0.0
  %191 = vmatmul.mubr.f32.gmra.mrb[0].mxu0 %v74
  %v192 = vpop.f32.mrb[0].mxu0
  %v193 = vadd.f32 %v49, %v192
  %v194 = vpop.f32.mrb[0].mxu0
  %195 = vmatprep.mubr.f32.mxu0 0.0
  %196 = vmatmul.mubr.f32.gmra.mrb[0].mxu0 %v77
  %v197 = vpop.f32.mrb[0].mxu0
  %v198 = vadd.f32 %v49, %v197
  %v199 = vpop.f32.mrb[0].mxu0
  %200 = vmatprep.mubr.f32.mxu0 0.0
  %201 = vmatmul.mubr.f32.gmra.mrb[0].mxu0 %v80
  %v202 = vpop.f32.mrb[0].mxu0
  %v203 = vadd.f32 %v49, %v202
  %v204 = vpop.f32.mrb[0].mxu0
  %205 = vmatprep.mubr.f32.mxu0 0.0
  %206 = vmatmul.mubr.f32.gmra.mrb[0].mxu0 %v83
  %v207 = vpop.f32.mrb[0].mxu0
  %v208 = vadd.f32 %v49, %v207
  %v209 = vpop.f32.mrb[0].mxu0
  %210 = vmatprep.mubr.f32.mxu0 0.0
  %211 = vmatmul.mubr.f32.gmra.mrb[0].mxu0 %v86
  %v212 = vpop.f32.mrb[0].mxu0
  %v213 = vadd.f32 %v49, %v212
  %v214 = vpop.f32.mrb[0].mxu0
  %215 = vmatprep.mubr.f32.mxu0 0.0
  %216 = vmatmul.mubr.f32.gmra.mrb[0].mxu0 %v89
  %v217 = vpop.f32.mrb[0].mxu0
  %v218 = vadd.f32 %v49, %v217
  %v219 = vpop.f32.mrb[0].mxu0
  %220 = vdwg.mxu0
  %v221 = vmax.f32 %v158, 0.0
  %v222 = vmax.f32 %v163, 0.0
  %v223 = vmax.f32 %v168, 0.0
  %v224 = vmax.f32 %v173, 0.0
  %v225 = vmax.f32 %v178, 0.0
  %v226 = vmax.f32 %v183, 0.0
  %v227 = vmax.f32 %v188, 0.0
  %v228 = vmax.f32 %v193, 0.0
  %v229 = vmax.f32 %v198, 0.0
  %v230 = vmax.f32 %v203, 0.0
  %v231 = vmax.f32 %v208, 0.0
  %v232 = vmax.f32 %v213, 0.0
  %v233 = vmax.f32 %v218, 0.0
  %v234 = vld [vmem:[%s3] sm:$0xff]
  %v235 = vld [vmem:[%s3 + $0x8] sm:$0xff]
  %v236 = vld [vmem:[%s3 + $0x10] sm:$0xff]
  %v237 = vld [vmem:[%s3 + $0x18] sm:$0xff]
  %v238 = vld [vmem:[%s3 + $0x20] sm:$0xf]
  %vm239 = vcmask 400384
  %v241 = vsel %vm239, %v234, 0
  %v244 = vsel %vm239, %v235, 0
  %v247 = vsel %vm239, %v236, 0
  %v250 = vsel %vm239, %v237, 0
  %v253 = vsel %vm239, %v238, 0
  %vm255 = vcmask 1040384
  %v257 = vsel %vm255, %v227, 0
  %259 = vmatprep.subr.mxu0 0.0
  %260 = vmatpush1.msra.mxu0 %v221
  %261 = vmatprep.subr.mxu0 0.0
  %262 = vmatpush1.msra.mxu0 %v222
  %263 = vmatprep.subr.mxu0 0.0
  %264 = vmatpush1.msra.mxu0 %v223
  %265 = vmatprep.subr.mxu0 0.0
  %266 = vmatpush1.msra.mxu0 %v224
  %267 = vmatprep.subr.mxu0 0.0
  %268 = vmatpush1.msra.mxu0 %v225
  %269 = vmatprep.subr.mxu0 0.0
  %270 = vmatpush1.msra.mxu0 %v226
  %271 = vmatprep.subr.mxu0 0.0
  %272 = vmatpush1.msra.mxu0 %v257
  %273 = vmatprep.subr.mxu0 0.0
  %274 = vmatpush1.msra.mxu0 0.0
  %275 = vmatprep.subr.mxu0 0.0
  %276 = vmatpush1.msra.mxu0 0.0
  %277 = vmatprep.subr.mxu0 0.0
  %278 = vmatpush1.msra.mxu0 0.0
  %279 = vmatprep.subr.mxu0 0.0
  %280 = vmatpush1.msra.mxu0 0.0
  %281 = vmatprep.subr.mxu0 0.0
  %282 = vmatpush1.msra.mxu0 0.0
  %283 = vmatprep.subr.mxu0 0.0
  %284 = vmatpush1.msra.mxu0 0.0
  %285 = vmatprep.subr.mxu0 0.0
  %286 = vmatpush1.msra.mxu0 0.0
  %287 = vmatprep.subr.mxu0 0.0
  %288 = vmatpush1.msra.mxu0 0.0
  %289 = vmatprep.subr.mxu0 0.0
  %290 = vmatpush1.msra.mxu0 0.0
  %291 = vmatprep.subr.mxu0 0.0
  %292 = vmatpush1.msra.mxu0 0.0
  %293 = vmatprep.subr.mxu0 0.0
  %294 = vmatpush1.msra.mxu0 0.0
  %295 = vmatprep.subr.mxu0 0.0
  %296 = vmatpush1.msra.mxu0 0.0
  %297 = vmatprep.subr.mxu0 0.0
  %298 = vmatpush1.msra.mxu0 0.0
  %299 = vmatprep.subr.mxu0 0.0
  %300 = vmatpush1.msra.mxu0 0.0
  %301 = vmatprep.subr.mxu0 0.0
  %302 = vmatpush1.msra.mxu0 0.0
  %303 = vmatprep.subr.mxu0 0.0
  %304 = vmatpush1.msra.mxu0 0.0
  %305 = vmatprep.subr.mxu0 0.0
  %306 = vmatpush1.msra.mxu0 0.0
  %307 = vmatprep.subr.mxu0 0.0
  %308 = vmatpush1.msra.mxu0 0.0
  %309 = vmatprep.subr.mxu0 0.0
  %310 = vmatpush1.msra.mxu0 0.0
  %311 = vmatprep.subr.mxu0 0.0
  %312 = vmatpush1.msra.mxu0 0.0
  %313 = vmatprep.subr.mxu0 0.0
  %314 = vmatpush1.msra.mxu0 0.0
  %315 = vmatprep.subr.mxu0 0.0
  %316 = vmatpush1.msra.mxu0 0.0
  %317 = vmatprep.subr.mxu0 0.0
  %318 = vmatpush1.msra.mxu0 0.0
  %319 = vmatprep.subr.mxu0 0.0
  %320 = vmatpush1.msra.mxu0 0.0
  %321 = vmatprep.subr.mxu0 0.0
  %322 = vmatpush1.msra.mxu0 0.0
  %323 = vmatprep.mubr.f32.mxu0 0.0
  %324 = vmatmul.mubr.f32.gmra.mrb[0].mxu0 %v241
  %v325 = vpop.f32.mrb[0].mxu0
  %v326 = vadd.f32 0.0, %v325
  %v327 = vpop.f32.mrb[0].mxu0
  %328 = vmatprep.mubr.f32.mxu0 0.0
  %329 = vmatmul.mubr.f32.gmra.mrb[0].mxu0 %v244
  %v330 = vpop.f32.mrb[0].mxu0
  %v331 = vadd.f32 0.0, %v330
  %v332 = vpop.f32.mrb[0].mxu0
  %333 = vmatprep.mubr.f32.mxu0 0.0
  %334 = vmatmul.mubr.f32.gmra.mrb[0].mxu0 %v247
  %v335 = vpop.f32.mrb[0].mxu0
  %v336 = vadd.f32 0.0, %v335
  %v337 = vpop.f32.mrb[0].mxu0
  %338 = vmatprep.mubr.f32.mxu0 0.0
  %339 = vmatmul.mubr.f32.gmra.mrb[0].mxu0 %v250
  %v340 = vpop.f32.mrb[0].mxu0
  %v341 = vadd.f32 0.0, %v340
  %v342 = vpop.f32.mrb[0].mxu0
  %343 = vmatprep.mubr.f32.mxu0 0.0
  %344 = vmatmul.mubr.f32.gmra.mrb[0].mxu0 %v253
  %v345 = vpop.f32.mrb[0].mxu0
  %v346 = vadd.f32 0.0, %v345
  %v347 = vpop.f32.mrb[0].mxu0
  %348 = vdwg.mxu0
  %v349 = vld [vmem:[%s4] sm:$0xff]
  %v350 = vld [vmem:[%s4 + $0x8] sm:$0xff]
  %v351 = vld [vmem:[%s4 + $0x10] sm:$0xff]
  %v352 = vld [vmem:[%s4 + $0x18] sm:$0xff]
  %s353 = scalar_lea.vmem %s3, 40
  %v354 = vld [vmem:[%s353] sm:$0xff]
  %v355 = vld [vmem:[%s353 + $0x8] sm:$0xff]
  %v356 = vld [vmem:[%s353 + $0x10] sm:$0xff]
  %v357 = vld [vmem:[%s353 + $0x18] sm:$0xff]
  %v358 = vld [vmem:[%s353 + $0x20] sm:$0xf]
  %v360 = vsel %vm239, %v354, 0
  %v363 = vsel %vm239, %v355, 0
  %v366 = vsel %vm239, %v356, 0
  %v369 = vsel %vm239, %v357, 0
  %v372 = vsel %vm239, %v358, 0
  %374 = vmatprep.subr.mxu0 0.0
  %375 = vmatpush1.msra.mxu0 %v221
  %376 = vmatprep.subr.mxu0 0.0
  %377 = vmatpush1.msra.mxu0 %v222
  %378 = vmatprep.subr.mxu0 0.0
  %379 = vmatpush1.msra.mxu0 %v223
  %380 = vmatprep.subr.mxu0 0.0
  %381 = vmatpush1.msra.mxu0 %v224
  %382 = vmatprep.subr.mxu0 0.0
  %383 = vmatpush1.msra.mxu0 %v225
  %384 = vmatprep.subr.mxu0 0.0
  %385 = vmatpush1.msra.mxu0 %v226
  %386 = vmatprep.subr.mxu0 0.0
  %387 = vmatpush1.msra.mxu0 %v257
  %388 = vmatprep.subr.mxu0 0.0
  %389 = vmatpush1.msra.mxu0 0.0
  %390 = vmatprep.subr.mxu0 0.0
  %391 = vmatpush1.msra.mxu0 0.0
  %392 = vmatprep.subr.mxu0 0.0
  %393 = vmatpush1.msra.mxu0 0.0
  %394 = vmatprep.subr.mxu0 0.0
  %395 = vmatpush1.msra.mxu0 0.0
  %396 = vmatprep.subr.mxu0 0.0
  %397 = vmatpush1.msra.mxu0 0.0
  %398 = vmatprep.subr.mxu0 0.0
  %399 = vmatpush1.msra.mxu0 0.0
  %400 = vmatprep.subr.mxu0 0.0
  %401 = vmatpush1.msra.mxu0 0.0
  %402 = vmatprep.subr.mxu0 0.0
  %403 = vmatpush1.msra.mxu0 0.0
  %404 = vmatprep.subr.mxu0 0.0
  %405 = vmatpush1.msra.mxu0 0.0
  %406 = vmatprep.subr.mxu0 0.0
  %407 = vmatpush1.msra.mxu0 0.0
  %408 = vmatprep.subr.mxu0 0.0
  %409 = vmatpush1.msra.mxu0 0.0
  %410 = vmatprep.subr.mxu0 0.0
  %411 = vmatpush1.msra.mxu0 0.0
  %412 = vmatprep.subr.mxu0 0.0
  %413 = vmatpush1.msra.mxu0 0.0
  %414 = vmatprep.subr.mxu0 0.0
  %415 = vmatpush1.msra.mxu0 0.0
  %416 = vmatprep.subr.mxu0 0.0
  %417 = vmatpush1.msra.mxu0 0.0
  %418 = vmatprep.subr.mxu0 0.0
  %419 = vmatpush1.msra.mxu0 0.0
  %420 = vmatprep.subr.mxu0 0.0
  %421 = vmatpush1.msra.mxu0 0.0
  %422 = vmatprep.subr.mxu0 0.0
  %423 = vmatpush1.msra.mxu0 0.0
  %424 = vmatprep.subr.mxu0 0.0
  %425 = vmatpush1.msra.mxu0 0.0
  %426 = vmatprep.subr.mxu0 0.0
  %427 = vmatpush1.msra.mxu0 0.0
  %428 = vmatprep.subr.mxu0 0.0
  %429 = vmatpush1.msra.mxu0 0.0
  %430 = vmatprep.subr.mxu0 0.0
  %431 = vmatpush1.msra.mxu0 0.0
  %432 = vmatprep.subr.mxu0 0.0
  %433 = vmatpush1.msra.mxu0 0.0
  %434 = vmatprep.subr.mxu0 0.0
  %435 = vmatpush1.msra.mxu0 0.0
  %436 = vmatprep.subr.mxu0 0.0
  %437 = vmatpush1.msra.mxu0 0.0
  %438 = vmatprep.mubr.f32.mxu0 0.0
  %439 = vmatmul.mubr.f32.gmra.mrb[0].mxu0 %v360
  %v440 = vpop.f32.mrb[0].mxu0
  %v441 = vadd.f32 0.0, %v440
  %v442 = vpop.f32.mrb[0].mxu0
  %443 = vmatprep.mubr.f32.mxu0 0.0
  %444 = vmatmul.mubr.f32.gmra.mrb[0].mxu0 %v363
  %v445 = vpop.f32.mrb[0].mxu0
  %v446 = vadd.f32 0.0, %v445
  %v447 = vpop.f32.mrb[0].mxu0
  %448 = vmatprep.mubr.f32.mxu0 0.0
  %449 = vmatmul.mubr.f32.gmra.mrb[0].mxu0 %v366
  %v450 = vpop.f32.mrb[0].mxu0
  %v451 = vadd.f32 0.0, %v450
  %v452 = vpop.f32.mrb[0].mxu0
  %453 = vmatprep.mubr.f32.mxu0 0.0
  %454 = vmatmul.mubr.f32.gmra.mrb[0].mxu0 %v369
  %v455 = vpop.f32.mrb[0].mxu0
  %v456 = vadd.f32 0.0, %v455
  %v457 = vpop.f32.mrb[0].mxu0
  %458 = vmatprep.mubr.f32.mxu0 0.0
  %459 = vmatmul.mubr.f32.gmra.mrb[0].mxu0 %v372
  %v460 = vpop.f32.mrb[0].mxu0
  %v461 = vadd.f32 0.0, %v460
  %v462 = vpop.f32.mrb[0].mxu0
  %463 = vdwg.mxu0
  %s464 = scalar_lea.vmem %s4, 32
  %v465 = vld [vmem:[%s464] sm:$0xff]
  %v466 = vld [vmem:[%s464 + $0x8] sm:$0xff]
  %v467 = vld [vmem:[%s464 + $0x10] sm:$0xff]
  %v468 = vld [vmem:[%s464 + $0x18] sm:$0xff]
  %vm469 = vcmask 261120
  %v471 = vsel %vm469, %v441, 0
  %v474 = vsel %vm469, %v446, 0
  %v477 = vsel %vm469, %v451, 0
  %v480 = vsel %vm469, %v456, 0
  %v483 = vsel %vm469, %v461, 0
  %485 = vmatprep.subr.mxu0 0.0
  %486 = vmatpush1.msra.mxu0 %v465
  %487 = vmatprep.subr.mxu0 0.0
  %488 = vmatpush1.msra.mxu0 %v466
  %489 = vmatprep.subr.mxu0 0.0
  %490 = vmatpush1.msra.mxu0 %v467
  %491 = vmatprep.subr.mxu0 0.0
  %492 = vmatpush1.msra.mxu0 %v468
  %493 = vmatprep.subr.mxu0 0.0
  %494 = vmatpush1.msra.mxu0 0.0
  %495 = vmatprep.subr.mxu0 0.0
  %496 = vmatpush1.msra.mxu0 0.0
  %497 = vmatprep.subr.mxu0 0.0
  %498 = vmatpush1.msra.mxu0 0.0
  %499 = vmatprep.subr.mxu0 0.0
  %500 = vmatpush1.msra.mxu0 0.0
  %501 = vmatprep.subr.mxu0 0.0
  %502 = vmatpush1.msra.mxu0 0.0
  %503 = vmatprep.subr.mxu0 0.0
  %504 = vmatpush1.msra.mxu0 0.0
  %505 = vmatprep.subr.mxu0 0.0
  %506 = vmatpush1.msra.mxu0 0.0
  %507 = vmatprep.subr.mxu0 0.0
  %508 = vmatpush1.msra.mxu0 0.0
  %509 = vmatprep.subr.mxu0 0.0
  %510 = vmatpush1.msra.mxu0 0.0
  %511 = vmatprep.subr.mxu0 0.0
  %512 = vmatpush1.msra.mxu0 0.0
  %513 = vmatprep.subr.mxu0 0.0
  %514 = vmatpush1.msra.mxu0 0.0
  %515 = vmatprep.subr.mxu0 0.0
  %516 = vmatpush1.msra.mxu0 0.0
  %517 = vmatprep.subr.mxu0 0.0
  %518 = vmatpush1.msra.mxu0 0.0
  %519 = vmatprep.subr.mxu0 0.0
  %520 = vmatpush1.msra.mxu0 0.0
  %521 = vmatprep.subr.mxu0 0.0
  %522 = vmatpush1.msra.mxu0 0.0
  %523 = vmatprep.subr.mxu0 0.0
  %524 = vmatpush1.msra.mxu0 0.0
  %525 = vmatprep.subr.mxu0 0.0
  %526 = vmatpush1.msra.mxu0 0.0
  %527 = vmatprep.subr.mxu0 0.0
  %528 = vmatpush1.msra.mxu0 0.0
  %529 = vmatprep.subr.mxu0 0.0
  %530 = vmatpush1.msra.mxu0 0.0
  %531 = vmatprep.subr.mxu0 0.0
  %532 = vmatpush1.msra.mxu0 0.0
  %533 = vmatprep.subr.mxu0 0.0
  %534 = vmatpush1.msra.mxu0 0.0
  %535 = vmatprep.subr.mxu0 0.0
  %536 = vmatpush1.msra.mxu0 0.0
  %537 = vmatprep.subr.mxu0 0.0
  %538 = vmatpush1.msra.mxu0 0.0
  %539 = vmatprep.subr.mxu0 0.0
  %540 = vmatpush1.msra.mxu0 0.0
  %541 = vmatprep.subr.mxu0 0.0
  %542 = vmatpush1.msra.mxu0 0.0
  %543 = vmatprep.subr.mxu0 0.0
  %544 = vmatpush1.msra.mxu0 0.0
  %545 = vmatprep.subr.mxu0 0.0
  %546 = vmatpush1.msra.mxu0 0.0
  %547 = vmatprep.subr.mxu0 0.0
  %548 = vmatpush1.msra.mxu0 0.0
  %549 = vmatprep.mubr.f32.mxu0 0.0
  %550 = vmatmul.mubr.f32.gmra.mrb[0].mxu0 %v471
  %v551 = vpop.f32.mrb[0].mxu0
  %v552 = vadd.f32 0.0, %v551
  %v553 = vpop.f32.mrb[0].mxu0
  %554 = vmatprep.mubr.f32.mxu0 0.0
  %555 = vmatmul.mubr.f32.gmra.mrb[0].mxu0 %v474
  %v556 = vpop.f32.mrb[0].mxu0
  %v557 = vadd.f32 0.0, %v556
  %v558 = vpop.f32.mrb[0].mxu0
  %559 = vmatprep.mubr.f32.mxu0 0.0
  %560 = vmatmul.mubr.f32.gmra.mrb[0].mxu0 %v477
  %v561 = vpop.f32.mrb[0].mxu0
  %v562 = vadd.f32 0.0, %v561
  %v563 = vpop.f32.mrb[0].mxu0
  %564 = vmatprep.mubr.f32.mxu0 0.0
  %565 = vmatmul.mubr.f32.gmra.mrb[0].mxu0 %v480
  %v566 = vpop.f32.mrb[0].mxu0
  %v567 = vadd.f32 0.0, %v566
  %v568 = vpop.f32.mrb[0].mxu0
  %569 = vmatprep.mubr.f32.mxu0 0.0
  %570 = vmatmul.mubr.f32.gmra.mrb[0].mxu0 %v483
  %v571 = vpop.f32.mrb[0].mxu0
  %v572 = vadd.f32 0.0, %v571
  %v573 = vpop.f32.mrb[0].mxu0
  %574 = vdwg.mxu0
  %v576 = vsel %vm469, %v326, 0
  %v579 = vsel %vm469, %v331, 0
  %v582 = vsel %vm469, %v336, 0
  %v585 = vsel %vm469, %v341, 0
  %v588 = vsel %vm469, %v346, 0
  %590 = vmatprep.subr.mxu0 0.0
  %591 = vmatpush1.msra.mxu0 %v349
  %592 = vmatprep.subr.mxu0 0.0
  %593 = vmatpush1.msra.mxu0 %v350
  %594 = vmatprep.subr.mxu0 0.0
  %595 = vmatpush1.msra.mxu0 %v351
  %596 = vmatprep.subr.mxu0 0.0
  %597 = vmatpush1.msra.mxu0 %v352
  %598 = vmatprep.subr.mxu0 0.0
  %599 = vmatpush1.msra.mxu0 0.0
  %600 = vmatprep.subr.mxu0 0.0
  %601 = vmatpush1.msra.mxu0 0.0
  %602 = vmatprep.subr.mxu0 0.0
  %603 = vmatpush1.msra.mxu0 0.0
  %604 = vmatprep.subr.mxu0 0.0
  %605 = vmatpush1.msra.mxu0 0.0
  %606 = vmatprep.subr.mxu0 0.0
  %607 = vmatpush1.msra.mxu0 0.0
  %608 = vmatprep.subr.mxu0 0.0
  %609 = vmatpush1.msra.mxu0 0.0
  %610 = vmatprep.subr.mxu0 0.0
  %611 = vmatpush1.msra.mxu0 0.0
  %612 = vmatprep.subr.mxu0 0.0
  %613 = vmatpush1.msra.mxu0 0.0
  %614 = vmatprep.subr.mxu0 0.0
  %615 = vmatpush1.msra.mxu0 0.0
  %616 = vmatprep.subr.mxu0 0.0
  %617 = vmatpush1.msra.mxu0 0.0
  %618 = vmatprep.subr.mxu0 0.0
  %619 = vmatpush1.msra.mxu0 0.0
  %620 = vmatprep.subr.mxu0 0.0
  %621 = vmatpush1.msra.mxu0 0.0
  %622 = vmatprep.subr.mxu0 0.0
  %623 = vmatpush1.msra.mxu0 0.0
  %624 = vmatprep.subr.mxu0 0.0
  %625 = vmatpush1.msra.mxu0 0.0
  %626 = vmatprep.subr.mxu0 0.0
  %627 = vmatpush1.msra.mxu0 0.0
  %628 = vmatprep.subr.mxu0 0.0
  %629 = vmatpush1.msra.mxu0 0.0
  %630 = vmatprep.subr.mxu0 0.0
  %631 = vmatpush1.msra.mxu0 0.0
  %632 = vmatprep.subr.mxu0 0.0
  %633 = vmatpush1.msra.mxu0 0.0
  %634 = vmatprep.subr.mxu0 0.0
  %635 = vmatpush1.msra.mxu0 0.0
  %636 = vmatprep.subr.mxu0 0.0
  %637 = vmatpush1.msra.mxu0 0.0
  %638 = vmatprep.subr.mxu0 0.0
  %639 = vmatpush1.msra.mxu0 0.0
  %640 = vmatprep.subr.mxu0 0.0
  %641 = vmatpush1.msra.mxu0 0.0
  %642 = vmatprep.subr.mxu0 0.0
  %643 = vmatpush1.msra.mxu0 0.0
  %644 = vmatprep.subr.mxu0 0.0
  %645 = vmatpush1.msra.mxu0 0.0
  %646 = vmatprep.subr.mxu0 0.0
  %647 = vmatpush1.msra.mxu0 0.0
  %648 = vmatprep.subr.mxu0 0.0
  %649 = vmatpush1.msra.mxu0 0.0
  %650 = vmatprep.subr.mxu0 0.0
  %651 = vmatpush1.msra.mxu0 0.0
  %652 = vmatprep.subr.mxu0 0.0
  %653 = vmatpush1.msra.mxu0 0.0
  %654 = vmatprep.mubr.f32.mxu0 0.0
  %655 = vmatmul.mubr.f32.gmra.mrb[0].mxu0 %v576
  %v656 = vpop.f32.mrb[0].mxu0
  %v657 = vadd.f32 %v552, %v656
  %v658 = vpop.f32.mrb[0].mxu0
  %659 = vmatprep.mubr.f32.mxu0 0.0
  %660 = vmatmul.mubr.f32.gmra.mrb[0].mxu0 %v579
  %v661 = vpop.f32.mrb[0].mxu0
  %v662 = vadd.f32 %v557, %v661
  %v663 = vpop.f32.mrb[0].mxu0
  %664 = vmatprep.mubr.f32.mxu0 0.0
  %665 = vmatmul.mubr.f32.gmra.mrb[0].mxu0 %v582
  %v666 = vpop.f32.mrb[0].mxu0
  %v667 = vadd.f32 %v562, %v666
  %v668 = vpop.f32.mrb[0].mxu0
  %669 = vmatprep.mubr.f32.mxu0 0.0
  %670 = vmatmul.mubr.f32.gmra.mrb[0].mxu0 %v585
  %v671 = vpop.f32.mrb[0].mxu0
  %v672 = vadd.f32 %v567, %v671
  %v673 = vpop.f32.mrb[0].mxu0
  %674 = vmatprep.mubr.f32.mxu0 0.0
  %675 = vmatmul.mubr.f32.gmra.mrb[0].mxu0 %v588
  %v676 = vpop.f32.mrb[0].mxu0
  %v677 = vadd.f32 %v572, %v676
  %v678 = vpop.f32.mrb[0].mxu0
  %679 = vdwg.mxu0
  %s680 = scalar_lea.vmem %s3, 80
  %v681 = vld [vmem:[%s680] sm:$0xff]
  %v682 = vld [vmem:[%s680 + $0x8] sm:$0xff]
  %v683 = vld [vmem:[%s680 + $0x10] sm:$0xff]
  %v684 = vld [vmem:[%s680 + $0x18] sm:$0xff]
  %v685 = vld [vmem:[%s680 + $0x20] sm:$0xf]
  %v687 = vsel %vm239, %v681, 0
  %v690 = vsel %vm239, %v682, 0
  %v693 = vsel %vm239, %v683, 0
  %v696 = vsel %vm239, %v684, 0
  %v699 = vsel %vm239, %v685, 0
  %701 = vmatprep.subr.mxu0 0.0
  %702 = vmatpush1.msra.mxu0 %v221
  %703 = vmatprep.subr.mxu0 0.0
  %704 = vmatpush1.msra.mxu0 %v222
  %705 = vmatprep.subr.mxu0 0.0
  %706 = vmatpush1.msra.mxu0 %v223
  %707 = vmatprep.subr.mxu0 0.0
  %708 = vmatpush1.msra.mxu0 %v224
  %709 = vmatprep.subr.mxu0 0.0
  %710 = vmatpush1.msra.mxu0 %v225
  %711 = vmatprep.subr.mxu0 0.0
  %712 = vmatpush1.msra.mxu0 %v226
  %713 = vmatprep.subr.mxu0 0.0
  %714 = vmatpush1.msra.mxu0 %v257
  %715 = vmatprep.subr.mxu0 0.0
  %716 = vmatpush1.msra.mxu0 0.0
  %717 = vmatprep.subr.mxu0 0.0
  %718 = vmatpush1.msra.mxu0 0.0
  %719 = vmatprep.subr.mxu0 0.0
  %720 = vmatpush1.msra.mxu0 0.0
  %721 = vmatprep.subr.mxu0 0.0
  %722 = vmatpush1.msra.mxu0 0.0
  %723 = vmatprep.subr.mxu0 0.0
  %724 = vmatpush1.msra.mxu0 0.0
  %725 = vmatprep.subr.mxu0 0.0
  %726 = vmatpush1.msra.mxu0 0.0
  %727 = vmatprep.subr.mxu0 0.0
  %728 = vmatpush1.msra.mxu0 0.0
  %729 = vmatprep.subr.mxu0 0.0
  %730 = vmatpush1.msra.mxu0 0.0
  %731 = vmatprep.subr.mxu0 0.0
  %732 = vmatpush1.msra.mxu0 0.0
  %733 = vmatprep.subr.mxu0 0.0
  %734 = vmatpush1.msra.mxu0 0.0
  %735 = vmatprep.subr.mxu0 0.0
  %736 = vmatpush1.msra.mxu0 0.0
  %737 = vmatprep.subr.mxu0 0.0
  %738 = vmatpush1.msra.mxu0 0.0
  %739 = vmatprep.subr.mxu0 0.0
  %740 = vmatpush1.msra.mxu0 0.0
  %741 = vmatprep.subr.mxu0 0.0
  %742 = vmatpush1.msra.mxu0 0.0
  %743 = vmatprep.subr.mxu0 0.0
  %744 = vmatpush1.msra.mxu0 0.0
  %745 = vmatprep.subr.mxu0 0.0
  %746 = vmatpush1.msra.mxu0 0.0
  %747 = vmatprep.subr.mxu0 0.0
  %748 = vmatpush1.msra.mxu0 0.0
  %749 = vmatprep.subr.mxu0 0.0
  %750 = vmatpush1.msra.mxu0 0.0
  %751 = vmatprep.subr.mxu0 0.0
  %752 = vmatpush1.msra.mxu0 0.0
  %753 = vmatprep.subr.mxu0 0.0
  %754 = vmatpush1.msra.mxu0 0.0
  %755 = vmatprep.subr.mxu0 0.0
  %756 = vmatpush1.msra.mxu0 0.0
  %757 = vmatprep.subr.mxu0 0.0
  %758 = vmatpush1.msra.mxu0 0.0
  %759 = vmatprep.subr.mxu0 0.0
  %760 = vmatpush1.msra.mxu0 0.0
  %761 = vmatprep.subr.mxu0 0.0
  %762 = vmatpush1.msra.mxu0 0.0
  %763 = vmatprep.subr.mxu0 0.0
  %764 = vmatpush1.msra.mxu0 0.0
  %765 = vmatprep.mubr.f32.mxu0 0.0
  %766 = vmatmul.mubr.f32.gmra.mrb[0].mxu0 %v687
  %v767 = vpop.f32.mrb[0].mxu0
  %v768 = vadd.f32 0.0, %v767
  %v769 = vpop.f32.mrb[0].mxu0
  %770 = vmatprep.mubr.f32.mxu0 0.0
  %771 = vmatmul.mubr.f32.gmra.mrb[0].mxu0 %v690
  %v772 = vpop.f32.mrb[0].mxu0
  %v773 = vadd.f32 0.0, %v772
  %v774 = vpop.f32.mrb[0].mxu0
  %775 = vmatprep.mubr.f32.mxu0 0.0
  %776 = vmatmul.mubr.f32.gmra.mrb[0].mxu0 %v693
  %v777 = vpop.f32.mrb[0].mxu0
  %v778 = vadd.f32 0.0, %v777
  %v779 = vpop.f32.mrb[0].mxu0
  %780 = vmatprep.mubr.f32.mxu0 0.0
  %781 = vmatmul.mubr.f32.gmra.mrb[0].mxu0 %v696
  %v782 = vpop.f32.mrb[0].mxu0
  %v783 = vadd.f32 0.0, %v782
  %v784 = vpop.f32.mrb[0].mxu0
  %785 = vmatprep.mubr.f32.mxu0 0.0
  %786 = vmatmul.mubr.f32.gmra.mrb[0].mxu0 %v699
  %v787 = vpop.f32.mrb[0].mxu0
  %v788 = vadd.f32 0.0, %v787
  %v789 = vpop.f32.mrb[0].mxu0
  %790 = vdwg.mxu0
  %s791 = scalar_lea.vmem %s4, 64
  %v792 = vld [vmem:[%s791] sm:$0xff]
  %v793 = vld [vmem:[%s791 + $0x8] sm:$0xff]
  %v794 = vld [vmem:[%s791 + $0x10] sm:$0xff]
  %v795 = vld [vmem:[%s791 + $0x18] sm:$0xff]
  %v797 = vsel %vm469, %v768, 0
  %v800 = vsel %vm469, %v773, 0
  %v803 = vsel %vm469, %v778, 0
  %v806 = vsel %vm469, %v783, 0
  %v809 = vsel %vm469, %v788, 0
  %811 = vmatprep.subr.mxu0 0.0
  %812 = vmatpush1.msra.mxu0 %v792
  %813 = vmatprep.subr.mxu0 0.0
  %814 = vmatpush1.msra.mxu0 %v793
  %815 = vmatprep.subr.mxu0 0.0
  %816 = vmatpush1.msra.mxu0 %v794
  %817 = vmatprep.subr.mxu0 0.0
  %818 = vmatpush1.msra.mxu0 %v795
  %819 = vmatprep.subr.mxu0 0.0
  %820 = vmatpush1.msra.mxu0 0.0
  %821 = vmatprep.subr.mxu0 0.0
  %822 = vmatpush1.msra.mxu0 0.0
  %823 = vmatprep.subr.mxu0 0.0
  %824 = vmatpush1.msra.mxu0 0.0
  %825 = vmatprep.subr.mxu0 0.0
  %826 = vmatpush1.msra.mxu0 0.0
  %827 = vmatprep.subr.mxu0 0.0
  %828 = vmatpush1.msra.mxu0 0.0
  %829 = vmatprep.subr.mxu0 0.0
  %830 = vmatpush1.msra.mxu0 0.0
  %831 = vmatprep.subr.mxu0 0.0
  %832 = vmatpush1.msra.mxu0 0.0
  %833 = vmatprep.subr.mxu0 0.0
  %834 = vmatpush1.msra.mxu0 0.0
  %835 = vmatprep.subr.mxu0 0.0
  %836 = vmatpush1.msra.mxu0 0.0
  %837 = vmatprep.subr.mxu0 0.0
  %838 = vmatpush1.msra.mxu0 0.0
  %839 = vmatprep.subr.mxu0 0.0
  %840 = vmatpush1.msra.mxu0 0.0
  %841 = vmatprep.subr.mxu0 0.0
  %842 = vmatpush1.msra.mxu0 0.0
  %843 = vmatprep.subr.mxu0 0.0
  %844 = vmatpush1.msra.mxu0 0.0
  %845 = vmatprep.subr.mxu0 0.0
  %846 = vmatpush1.msra.mxu0 0.0
  %847 = vmatprep.subr.mxu0 0.0
  %848 = vmatpush1.msra.mxu0 0.0
  %849 = vmatprep.subr.mxu0 0.0
  %850 = vmatpush1.msra.mxu0 0.0
  %851 = vmatprep.subr.mxu0 0.0
  %852 = vmatpush1.msra.mxu0 0.0
  %853 = vmatprep.subr.mxu0 0.0
  %854 = vmatpush1.msra.mxu0 0.0
  %855 = vmatprep.subr.mxu0 0.0
  %856 = vmatpush1.msra.mxu0 0.0
  %857 = vmatprep.subr.mxu0 0.0
  %858 = vmatpush1.msra.mxu0 0.0
  %859 = vmatprep.subr.mxu0 0.0
  %860 = vmatpush1.msra.mxu0 0.0
  %861 = vmatprep.subr.mxu0 0.0
  %862 = vmatpush1.msra.mxu0 0.0
  %863 = vmatprep.subr.mxu0 0.0
  %864 = vmatpush1.msra.mxu0 0.0
  %865 = vmatprep.subr.mxu0 0.0
  %866 = vmatpush1.msra.mxu0 0.0
  %867 = vmatprep.subr.mxu0 0.0
  %868 = vmatpush1.msra.mxu0 0.0
  %869 = vmatprep.subr.mxu0 0.0
  %870 = vmatpush1.msra.mxu0 0.0
  %871 = vmatprep.subr.mxu0 0.0
  %872 = vmatpush1.msra.mxu0 0.0
  %873 = vmatprep.subr.mxu0 0.0
  %874 = vmatpush1.msra.mxu0 0.0
  %875 = vmatprep.mubr.f32.mxu0 0.0
  %876 = vmatmul.mubr.f32.gmra.mrb[0].mxu0 %v797
  %v877 = vpop.f32.mrb[0].mxu0
  %v878 = vadd.f32 0.0, %v877
  %v879 = vpop.f32.mrb[0].mxu0
  %880 = vmatprep.mubr.f32.mxu0 0.0
  %881 = vmatmul.mubr.f32.gmra.mrb[0].mxu0 %v800
  %v882 = vpop.f32.mrb[0].mxu0
  %v883 = vadd.f32 0.0, %v882
  %v884 = vpop.f32.mrb[0].mxu0
  %885 = vmatprep.mubr.f32.mxu0 0.0
  %886 = vmatmul.mubr.f32.gmra.mrb[0].mxu0 %v803
  %v887 = vpop.f32.mrb[0].mxu0
  %v888 = vadd.f32 0.0, %v887
  %v889 = vpop.f32.mrb[0].mxu0
  %890 = vmatprep.mubr.f32.mxu0 0.0
  %891 = vmatmul.mubr.f32.gmra.mrb[0].mxu0 %v806
  %v892 = vpop.f32.mrb[0].mxu0
  %v893 = vadd.f32 0.0, %v892
  %v894 = vpop.f32.mrb[0].mxu0
  %895 = vmatprep.mubr.f32.mxu0 0.0
  %896 = vmatmul.mubr.f32.gmra.mrb[0].mxu0 %v809
  %v897 = vpop.f32.mrb[0].mxu0
  %v898 = vadd.f32 0.0, %v897
  %v899 = vpop.f32.mrb[0].mxu0
  %900 = vdwg.mxu0
  %v901 = vadd.f32 %v657, %v878
  %v902 = vadd.f32 %v662, %v883
  %v903 = vadd.f32 %v667, %v888
  %v904 = vadd.f32 %v672, %v893
  %v905 = vadd.f32 %v677, %v898
  %s906 = scalar_lea.vmem %s3, 120
  %v907 = vld [vmem:[%s906] sm:$0xff]
  %v908 = vld [vmem:[%s906 + $0x8] sm:$0xff]
  %v909 = vld [vmem:[%s906 + $0x10] sm:$0xff]
  %v910 = vld [vmem:[%s906 + $0x18] sm:$0xff]
  %v911 = vld [vmem:[%s906 + $0x20] sm:$0xf]
  %v913 = vsel %vm239, %v907, 0
  %v916 = vsel %vm239, %v908, 0
  %v919 = vsel %vm239, %v909, 0
  %v922 = vsel %vm239, %v910, 0
  %v925 = vsel %vm239, %v911, 0
  %927 = vmatprep.subr.mxu0 0.0
  %928 = vmatpush1.msra.mxu0 %v221
  %929 = vmatprep.subr.mxu0 0.0
  %930 = vmatpush1.msra.mxu0 %v222
  %931 = vmatprep.subr.mxu0 0.0
  %932 = vmatpush1.msra.mxu0 %v223
  %933 = vmatprep.subr.mxu0 0.0
  %934 = vmatpush1.msra.mxu0 %v224
  %935 = vmatprep.subr.mxu0 0.0
  %936 = vmatpush1.msra.mxu0 %v225
  %937 = vmatprep.subr.mxu0 0.0
  %938 = vmatpush1.msra.mxu0 %v226
  %939 = vmatprep.subr.mxu0 0.0
  %940 = vmatpush1.msra.mxu0 %v257
  %941 = vmatprep.subr.mxu0 0.0
  %942 = vmatpush1.msra.mxu0 0.0
  %943 = vmatprep.subr.mxu0 0.0
  %944 = vmatpush1.msra.mxu0 0.0
  %945 = vmatprep.subr.mxu0 0.0
  %946 = vmatpush1.msra.mxu0 0.0
  %947 = vmatprep.subr.mxu0 0.0
  %948 = vmatpush1.msra.mxu0 0.0
  %949 = vmatprep.subr.mxu0 0.0
  %950 = vmatpush1.msra.mxu0 0.0
  %951 = vmatprep.subr.mxu0 0.0
  %952 = vmatpush1.msra.mxu0 0.0
  %953 = vmatprep.subr.mxu0 0.0
  %954 = vmatpush1.msra.mxu0 0.0
  %955 = vmatprep.subr.mxu0 0.0
  %956 = vmatpush1.msra.mxu0 0.0
  %957 = vmatprep.subr.mxu0 0.0
  %958 = vmatpush1.msra.mxu0 0.0
  %959 = vmatprep.subr.mxu0 0.0
  %960 = vmatpush1.msra.mxu0 0.0
  %961 = vmatprep.subr.mxu0 0.0
  %962 = vmatpush1.msra.mxu0 0.0
  %963 = vmatprep.subr.mxu0 0.0
  %964 = vmatpush1.msra.mxu0 0.0
  %965 = vmatprep.subr.mxu0 0.0
  %966 = vmatpush1.msra.mxu0 0.0
  %967 = vmatprep.subr.mxu0 0.0
  %968 = vmatpush1.msra.mxu0 0.0
  %969 = vmatprep.subr.mxu0 0.0
  %970 = vmatpush1.msra.mxu0 0.0
  %971 = vmatprep.subr.mxu0 0.0
  %972 = vmatpush1.msra.mxu0 0.0
  %973 = vmatprep.subr.mxu0 0.0
  %974 = vmatpush1.msra.mxu0 0.0
  %975 = vmatprep.subr.mxu0 0.0
  %976 = vmatpush1.msra.mxu0 0.0
  %977 = vmatprep.subr.mxu0 0.0
  %978 = vmatpush1.msra.mxu0 0.0
  %979 = vmatprep.subr.mxu0 0.0
  %980 = vmatpush1.msra.mxu0 0.0
  %981 = vmatprep.subr.mxu0 0.0
  %982 = vmatpush1.msra.mxu0 0.0
  %983 = vmatprep.subr.mxu0 0.0
  %984 = vmatpush1.msra.mxu0 0.0
  %985 = vmatprep.subr.mxu0 0.0
  %986 = vmatpush1.msra.mxu0 0.0
  %987 = vmatprep.subr.mxu0 0.0
  %988 = vmatpush1.msra.mxu0 0.0
  %989 = vmatprep.subr.mxu0 0.0
  %990 = vmatpush1.msra.mxu0 0.0
  %991 = vmatprep.mubr.f32.mxu0 0.0
  %992 = vmatmul.mubr.f32.gmra.mrb[0].mxu0 %v913
  %v993 = vpop.f32.mrb[0].mxu0
  %v994 = vadd.f32 0.0, %v993
  %v995 = vpop.f32.mrb[0].mxu0
  %996 = vmatprep.mubr.f32.mxu0 0.0
  %997 = vmatmul.mubr.f32.gmra.mrb[0].mxu0 %v916
  %v998 = vpop.f32.mrb[0].mxu0
  %v999 = vadd.f32 0.0, %v998
  %v1000 = vpop.f32.mrb[0].mxu0
  %1001 = vmatprep.mubr.f32.mxu0 0.0
  %1002 = vmatmul.mubr.f32.gmra.mrb[0].mxu0 %v919
  %v1003 = vpop.f32.mrb[0].mxu0
  %v1004 = vadd.f32 0.0, %v1003
  %v1005 = vpop.f32.mrb[0].mxu0
  %1006 = vmatprep.mubr.f32.mxu0 0.0
  %1007 = vmatmul.mubr.f32.gmra.mrb[0].mxu0 %v922
  %v1008 = vpop.f32.mrb[0].mxu0
  %v1009 = vadd.f32 0.0, %v1008
  %v1010 = vpop.f32.mrb[0].mxu0
  %1011 = vmatprep.mubr.f32.mxu0 0.0
  %1012 = vmatmul.mubr.f32.gmra.mrb[0].mxu0 %v925
  %v1013 = vpop.f32.mrb[0].mxu0
  %v1014 = vadd.f32 0.0, %v1013
  %v1015 = vpop.f32.mrb[0].mxu0
  %1016 = vdwg.mxu0
  %s1017 = scalar_lea.vmem %s4, 96
  %v1018 = vld [vmem:[%s1017] sm:$0xff]
  %v1019 = vld [vmem:[%s1017 + $0x8] sm:$0xff]
  %v1020 = vld [vmem:[%s1017 + $0x10] sm:$0xff]
  %v1021 = vld [vmem:[%s1017 + $0x18] sm:$0xff]
  %v1023 = vsel %vm469, %v994, 0
  %v1026 = vsel %vm469, %v999, 0
  %v1029 = vsel %vm469, %v1004, 0
  %v1032 = vsel %vm469, %v1009, 0
  %v1035 = vsel %vm469, %v1014, 0
  %1037 = vmatprep.subr.mxu0 0.0
  %1038 = vmatpush1.msra.mxu0 %v1018
  %1039 = vmatprep.subr.mxu0 0.0
  %1040 = vmatpush1.msra.mxu0 %v1019
  %1041 = vmatprep.subr.mxu0 0.0
  %1042 = vmatpush1.msra.mxu0 %v1020
  %1043 = vmatprep.subr.mxu0 0.0
  %1044 = vmatpush1.msra.mxu0 %v1021
  %1045 = vmatprep.subr.mxu0 0.0
  %1046 = vmatpush1.msra.mxu0 0.0
  %1047 = vmatprep.subr.mxu0 0.0
  %1048 = vmatpush1.msra.mxu0 0.0
  %1049 = vmatprep.subr.mxu0 0.0
  %1050 = vmatpush1.msra.mxu0 0.0
  %1051 = vmatprep.subr.mxu0 0.0
  %1052 = vmatpush1.msra.mxu0 0.0
  %1053 = vmatprep.subr.mxu0 0.0
  %1054 = vmatpush1.msra.mxu0 0.0
  %1055 = vmatprep.subr.mxu0 0.0
  %1056 = vmatpush1.msra.mxu0 0.0
  %1057 = vmatprep.subr.mxu0 0.0
  %1058 = vmatpush1.msra.mxu0 0.0
  %1059 = vmatprep.subr.mxu0 0.0
  %1060 = vmatpush1.msra.mxu0 0.0
  %1061 = vmatprep.subr.mxu0 0.0
  %1062 = vmatpush1.msra.mxu0 0.0
  %1063 = vmatprep.subr.mxu0 0.0
  %1064 = vmatpush1.msra.mxu0 0.0
  %1065 = vmatprep.subr.mxu0 0.0
  %1066 = vmatpush1.msra.mxu0 0.0
  %1067 = vmatprep.subr.mxu0 0.0
  %1068 = vmatpush1.msra.mxu0 0.0
  %1069 = vmatprep.subr.mxu0 0.0
  %1070 = vmatpush1.msra.mxu0 0.0
  %1071 = vmatprep.subr.mxu0 0.0
  %1072 = vmatpush1.msra.mxu0 0.0
  %1073 = vmatprep.subr.mxu0 0.0
  %1074 = vmatpush1.msra.mxu0 0.0
  %1075 = vmatprep.subr.mxu0 0.0
  %1076 = vmatpush1.msra.mxu0 0.0
  %1077 = vmatprep.subr.mxu0 0.0
  %1078 = vmatpush1.msra.mxu0 0.0
  %1079 = vmatprep.subr.mxu0 0.0
  %1080 = vmatpush1.msra.mxu0 0.0
  %1081 = vmatprep.subr.mxu0 0.0
  %1082 = vmatpush1.msra.mxu0 0.0
  %1083 = vmatprep.subr.mxu0 0.0
  %1084 = vmatpush1.msra.mxu0 0.0
  %1085 = vmatprep.subr.mxu0 0.0
  %1086 = vmatpush1.msra.mxu0 0.0
  %1087 = vmatprep.subr.mxu0 0.0
  %1088 = vmatpush1.msra.mxu0 0.0
  %1089 = vmatprep.subr.mxu0 0.0
  %1090 = vmatpush1.msra.mxu0 0.0
  %1091 = vmatprep.subr.mxu0 0.0
  %1092 = vmatpush1.msra.mxu0 0.0
  %1093 = vmatprep.subr.mxu0 0.0
  %1094 = vmatpush1.msra.mxu0 0.0
  %1095 = vmatprep.subr.mxu0 0.0
  %1096 = vmatpush1.msra.mxu0 0.0
  %1097 = vmatprep.subr.mxu0 0.0
  %1098 = vmatpush1.msra.mxu0 0.0
  %1099 = vmatprep.subr.mxu0 0.0
  %1100 = vmatpush1.msra.mxu0 0.0
  %1101 = vmatprep.mubr.f32.mxu0 0.0
  %1102 = vmatmul.mubr.f32.gmra.mrb[0].mxu0 %v1023
  %v1103 = vpop.f32.mrb[0].mxu0
  %v1104 = vadd.f32 0.0, %v1103
  %v1105 = vpop.f32.mrb[0].mxu0
  %1106 = vmatprep.mubr.f32.mxu0 0.0
  %1107 = vmatmul.mubr.f32.gmra.mrb[0].mxu0 %v1026
  %v1108 = vpop.f32.mrb[0].mxu0
  %v1109 = vadd.f32 0.0, %v1108
  %v1110 = vpop.f32.mrb[0].mxu0
  %1111 = vmatprep.mubr.f32.mxu0 0.0
  %1112 = vmatmul.mubr.f32.gmra.mrb[0].mxu0 %v1029
  %v1113 = vpop.f32.mrb[0].mxu0
  %v1114 = vadd.f32 0.0, %v1113
  %v1115 = vpop.f32.mrb[0].mxu0
  %1116 = vmatprep.mubr.f32.mxu0 0.0
  %1117 = vmatmul.mubr.f32.gmra.mrb[0].mxu0 %v1032
  %v1118 = vpop.f32.mrb[0].mxu0
  %v1119 = vadd.f32 0.0, %v1118
  %v1120 = vpop.f32.mrb[0].mxu0
  %1121 = vmatprep.mubr.f32.mxu0 0.0
  %1122 = vmatmul.mubr.f32.gmra.mrb[0].mxu0 %v1035
  %v1123 = vpop.f32.mrb[0].mxu0
  %v1124 = vadd.f32 0.0, %v1123
  %v1125 = vpop.f32.mrb[0].mxu0
  %1126 = vdwg.mxu0
  %v1127 = vadd.f32 %v901, %v1104
  %v1128 = vadd.f32 %v902, %v1109
  %v1129 = vadd.f32 %v903, %v1114
  %v1130 = vadd.f32 %v904, %v1119
  %v1131 = vadd.f32 %v905, %v1124
  %v1132 = vld [vmem:[%s5] sm:$0x1]
  %v1134 = vlaneseq
  %v1135 = vshrl.u32 %v1134, 7
  %v1136 = vsub.s32 0, %v1135
  %v1137 = vrot.slane %v1132, %v1136
  %v1139 = vadd.f32 %v1127, %v1137
  %v1140 = vadd.f32 %v1128, %v1137
  %v1141 = vadd.f32 %v1129, %v1137
  %v1142 = vadd.f32 %v1130, %v1137
  %v1143 = vadd.f32 %v1131, %v1137
  %v1144 = vmax.f32 %v1139, 0.0
  %v1145 = vmax.f32 %v1140, 0.0
  %v1146 = vmax.f32 %v1141, 0.0
  %v1147 = vmax.f32 %v1142, 0.0
  %v1148 = vmax.f32 %v1143, 0.0
  %vm1155 = vcmask 1046528
  %v1156 = vrot.slane %v227, 1
  %v1157 = vrot.slane %v228, 1
  %v1158 = vsel %vm1155, %v1156, %v1157
  %v1159 = vrot.slane %v229, 1
  %v1160 = vsel %vm1155, %v1157, %v1159
  %v1161 = vrot.slane %v230, 1
  %v1162 = vsel %vm1155, %v1159, %v1161
  %v1163 = vrot.slane %v231, 1
  %v1164 = vsel %vm1155, %v1161, %v1163
  %v1165 = vrot.slane %v232, 1
  %v1166 = vsel %vm1155, %v1163, %v1165
  %v1167 = vrot.slane %v233, 1
  %v1168 = vsel %vm1155, %v1165, %v1167
  %v1175 = vsel %vm255, %v1167, 0
  %1177 = vmatprep.subr.mxu0 0.0
  %1178 = vmatpush1.msra.mxu0 %v1158
  %1179 = vmatprep.subr.mxu0 0.0
  %1180 = vmatpush1.msra.mxu0 %v1160
  %1181 = vmatprep.subr.mxu0 0.0
  %1182 = vmatpush1.msra.mxu0 %v1162
  %1183 = vmatprep.subr.mxu0 0.0
  %1184 = vmatpush1.msra.mxu0 %v1164
  %1185 = vmatprep.subr.mxu0 0.0
  %1186 = vmatpush1.msra.mxu0 %v1166
  %1187 = vmatprep.subr.mxu0 0.0
  %1188 = vmatpush1.msra.mxu0 %v1168
  %1189 = vmatprep.subr.mxu0 0.0
  %1190 = vmatpush1.msra.mxu0 %v1175
  %1191 = vmatprep.subr.mxu0 0.0
  %1192 = vmatpush1.msra.mxu0 0.0
  %1193 = vmatprep.subr.mxu0 0.0
  %1194 = vmatpush1.msra.mxu0 0.0
  %1195 = vmatprep.subr.mxu0 0.0
  %1196 = vmatpush1.msra.mxu0 0.0
  %1197 = vmatprep.subr.mxu0 0.0
  %1198 = vmatpush1.msra.mxu0 0.0
  %1199 = vmatprep.subr.mxu0 0.0
  %1200 = vmatpush1.msra.mxu0 0.0
  %1201 = vmatprep.subr.mxu0 0.0
  %1202 = vmatpush1.msra.mxu0 0.0
  %1203 = vmatprep.subr.mxu0 0.0
  %1204 = vmatpush1.msra.mxu0 0.0
  %1205 = vmatprep.subr.mxu0 0.0
  %1206 = vmatpush1.msra.mxu0 0.0
  %1207 = vmatprep.subr.mxu0 0.0
  %1208 = vmatpush1.msra.mxu0 0.0
  %1209 = vmatprep.subr.mxu0 0.0
  %1210 = vmatpush1.msra.mxu0 0.0
  %1211 = vmatprep.subr.mxu0 0.0
  %1212 = vmatpush1.msra.mxu0 0.0
  %1213 = vmatprep.subr.mxu0 0.0
  %1214 = vmatpush1.msra.mxu0 0.0
  %1215 = vmatprep.subr.mxu0 0.0
  %1216 = vmatpush1.msra.mxu0 0.0
  %1217 = vmatprep.subr.mxu0 0.0
  %1218 = vmatpush1.msra.mxu0 0.0
  %1219 = vmatprep.subr.mxu0 0.0
  %1220 = vmatpush1.msra.mxu0 0.0
  %1221 = vmatprep.subr.mxu0 0.0
  %1222 = vmatpush1.msra.mxu0 0.0
  %1223 = vmatprep.subr.mxu0 0.0
  %1224 = vmatpush1.msra.mxu0 0.0
  %1225 = vmatprep.subr.mxu0 0.0
  %1226 = vmatpush1.msra.mxu0 0.0
  %1227 = vmatprep.subr.mxu0 0.0
  %1228 = vmatpush1.msra.mxu0 0.0
  %1229 = vmatprep.subr.mxu0 0.0
  %1230 = vmatpush1.msra.mxu0 0.0
  %1231 = vmatprep.subr.mxu0 0.0
  %1232 = vmatpush1.msra.mxu0 0.0
  %1233 = vmatprep.subr.mxu0 0.0
  %1234 = vmatpush1.msra.mxu0 0.0
  %1235 = vmatprep.subr.mxu0 0.0
  %1236 = vmatpush1.msra.mxu0 0.0
  %1237 = vmatprep.subr.mxu0 0.0
  %1238 = vmatpush1.msra.mxu0 0.0
  %1239 = vmatprep.subr.mxu0 0.0
  %1240 = vmatpush1.msra.mxu0 0.0
  %1241 = vmatprep.mubr.f32.mxu0 0.0
  %1242 = vmatmul.mubr.f32.gmra.mrb[0].mxu0 %v241
  %v1243 = vpop.f32.mrb[0].mxu0
  %v1244 = vadd.f32 0.0, %v1243
  %v1245 = vpop.f32.mrb[0].mxu0
  %1246 = vmatprep.mubr.f32.mxu0 0.0
  %1247 = vmatmul.mubr.f32.gmra.mrb[0].mxu0 %v244
  %v1248 = vpop.f32.mrb[0].mxu0
  %v1249 = vadd.f32 0.0, %v1248
  %v1250 = vpop.f32.mrb[0].mxu0
  %1251 = vmatprep.mubr.f32.mxu0 0.0
  %1252 = vmatmul.mubr.f32.gmra.mrb[0].mxu0 %v247
  %v1253 = vpop.f32.mrb[0].mxu0
  %v1254 = vadd.f32 0.0, %v1253
  %v1255 = vpop.f32.mrb[0].mxu0
  %1256 = vmatprep.mubr.f32.mxu0 0.0
  %1257 = vmatmul.mubr.f32.gmra.mrb[0].mxu0 %v250
  %v1258 = vpop.f32.mrb[0].mxu0
  %v1259 = vadd.f32 0.0, %v1258
  %v1260 = vpop.f32.mrb[0].mxu0
  %1261 = vmatprep.mubr.f32.mxu0 0.0
  %1262 = vmatmul.mubr.f32.gmra.mrb[0].mxu0 %v253
  %v1263 = vpop.f32.mrb[0].mxu0
  %v1264 = vadd.f32 0.0, %v1263
  %v1265 = vpop.f32.mrb[0].mxu0
  %1266 = vdwg.mxu0
  %1267 = vmatprep.subr.mxu0 0.0
  %1268 = vmatpush1.msra.mxu0 %v1158
  %1269 = vmatprep.subr.mxu0 0.0
  %1270 = vmatpush1.msra.mxu0 %v1160
  %1271 = vmatprep.subr.mxu0 0.0
  %1272 = vmatpush1.msra.mxu0 %v1162
  %1273 = vmatprep.subr.mxu0 0.0
  %1274 = vmatpush1.msra.mxu0 %v1164
  %1275 = vmatprep.subr.mxu0 0.0
  %1276 = vmatpush1.msra.mxu0 %v1166
  %1277 = vmatprep.subr.mxu0 0.0
  %1278 = vmatpush1.msra.mxu0 %v1168
  %1279 = vmatprep.subr.mxu0 0.0
  %1280 = vmatpush1.msra.mxu0 %v1175
  %1281 = vmatprep.subr.mxu0 0.0
  %1282 = vmatpush1.msra.mxu0 0.0
  %1283 = vmatprep.subr.mxu0 0.0
  %1284 = vmatpush1.msra.mxu0 0.0
  %1285 = vmatprep.subr.mxu0 0.0
  %1286 = vmatpush1.msra.mxu0 0.0
  %1287 = vmatprep.subr.mxu0 0.0
  %1288 = vmatpush1.msra.mxu0 0.0
  %1289 = vmatprep.subr.mxu0 0.0
  %1290 = vmatpush1.msra.mxu0 0.0
  %1291 = vmatprep.subr.mxu0 0.0
  %1292 = vmatpush1.msra.mxu0 0.0
  %1293 = vmatprep.subr.mxu0 0.0
  %1294 = vmatpush1.msra.mxu0 0.0
  %1295 = vmatprep.subr.mxu0 0.0
  %1296 = vmatpush1.msra.mxu0 0.0
  %1297 = vmatprep.subr.mxu0 0.0
  %1298 = vmatpush1.msra.mxu0 0.0
  %1299 = vmatprep.subr.mxu0 0.0
  %1300 = vmatpush1.msra.mxu0 0.0
  %1301 = vmatprep.subr.mxu0 0.0
  %1302 = vmatpush1.msra.mxu0 0.0
  %1303 = vmatprep.subr.mxu0 0.0
  %1304 = vmatpush1.msra.mxu0 0.0
  %1305 = vmatprep.subr.mxu0 0.0
  %1306 = vmatpush1.msra.mxu0 0.0
  %1307 = vmatprep.subr.mxu0 0.0
  %1308 = vmatpush1.msra.mxu0 0.0
  %1309 = vmatprep.subr.mxu0 0.0
  %1310 = vmatpush1.msra.mxu0 0.0
  %1311 = vmatprep.subr.mxu0 0.0
  %1312 = vmatpush1.msra.mxu0 0.0
  %1313 = vmatprep.subr.mxu0 0.0
  %1314 = vmatpush1.msra.mxu0 0.0
  %1315 = vmatprep.subr.mxu0 0.0
  %1316 = vmatpush1.msra.mxu0 0.0
  %1317 = vmatprep.subr.mxu0 0.0
  %1318 = vmatpush1.msra.mxu0 0.0
  %1319 = vmatprep.subr.mxu0 0.0
  %1320 = vmatpush1.msra.mxu0 0.0
  %1321 = vmatprep.subr.mxu0 0.0
  %1322 = vmatpush1.msra.mxu0 0.0
  %1323 = vmatprep.subr.mxu0 0.0
  %1324 = vmatpush1.msra.mxu0 0.0
  %1325 = vmatprep.subr.mxu0 0.0
  %1326 = vmatpush1.msra.mxu0 0.0
  %1327 = vmatprep.subr.mxu0 0.0
  %1328 = vmatpush1.msra.mxu0 0.0
  %1329 = vmatprep.subr.mxu0 0.0
  %1330 = vmatpush1.msra.mxu0 0.0
  %1331 = vmatprep.mubr.f32.mxu0 0.0
  %1332 = vmatmul.mubr.f32.gmra.mrb[0].mxu0 %v360
  %v1333 = vpop.f32.mrb[0].mxu0
  %v1334 = vadd.f32 0.0, %v1333
  %v1335 = vpop.f32.mrb[0].mxu0
  %1336 = vmatprep.mubr.f32.mxu0 0.0
  %1337 = vmatmul.mubr.f32.gmra.mrb[0].mxu0 %v363
  %v1338 = vpop.f32.mrb[0].mxu0
  %v1339 = vadd.f32 0.0, %v1338
  %v1340 = vpop.f32.mrb[0].mxu0
  %1341 = vmatprep.mubr.f32.mxu0 0.0
  %1342 = vmatmul.mubr.f32.gmra.mrb[0].mxu0 %v366
  %v1343 = vpop.f32.mrb[0].mxu0
  %v1344 = vadd.f32 0.0, %v1343
  %v1345 = vpop.f32.mrb[0].mxu0
  %1346 = vmatprep.mubr.f32.mxu0 0.0
  %1347 = vmatmul.mubr.f32.gmra.mrb[0].mxu0 %v369
  %v1348 = vpop.f32.mrb[0].mxu0
  %v1349 = vadd.f32 0.0, %v1348
  %v1350 = vpop.f32.mrb[0].mxu0
  %1351 = vmatprep.mubr.f32.mxu0 0.0
  %1352 = vmatmul.mubr.f32.gmra.mrb[0].mxu0 %v372
  %v1353 = vpop.f32.mrb[0].mxu0
  %v1354 = vadd.f32 0.0, %v1353
  %v1355 = vpop.f32.mrb[0].mxu0
  %1356 = vdwg.mxu0
  %v1358 = vsel %vm469, %v1334, 0
  %v1361 = vsel %vm469, %v1339, 0
  %v1364 = vsel %vm469, %v1344, 0
  %v1367 = vsel %vm469, %v1349, 0
  %v1370 = vsel %vm469, %v1354, 0
  %1372 = vmatprep.subr.mxu0 0.0
  %1373 = vmatpush1.msra.mxu0 %v465
  %1374 = vmatprep.subr.mxu0 0.0
  %1375 = vmatpush1.msra.mxu0 %v466
  %1376 = vmatprep.subr.mxu0 0.0
  %1377 = vmatpush1.msra.mxu0 %v467
  %1378 = vmatprep.subr.mxu0 0.0
  %1379 = vmatpush1.msra.mxu0 %v468
  %1380 = vmatprep.subr.mxu0 0.0
  %1381 = vmatpush1.msra.mxu0 0.0
  %1382 = vmatprep.subr.mxu0 0.0
  %1383 = vmatpush1.msra.mxu0 0.0
  %1384 = vmatprep.subr.mxu0 0.0
  %1385 = vmatpush1.msra.mxu0 0.0
  %1386 = vmatprep.subr.mxu0 0.0
  %1387 = vmatpush1.msra.mxu0 0.0
  %1388 = vmatprep.subr.mxu0 0.0
  %1389 = vmatpush1.msra.mxu0 0.0
  %1390 = vmatprep.subr.mxu0 0.0
  %1391 = vmatpush1.msra.mxu0 0.0
  %1392 = vmatprep.subr.mxu0 0.0
  %1393 = vmatpush1.msra.mxu0 0.0
  %1394 = vmatprep.subr.mxu0 0.0
  %1395 = vmatpush1.msra.mxu0 0.0
  %1396 = vmatprep.subr.mxu0 0.0
  %1397 = vmatpush1.msra.mxu0 0.0
  %1398 = vmatprep.subr.mxu0 0.0
  %1399 = vmatpush1.msra.mxu0 0.0
  %1400 = vmatprep.subr.mxu0 0.0
  %1401 = vmatpush1.msra.mxu0 0.0
  %1402 = vmatprep.subr.mxu0 0.0
  %1403 = vmatpush1.msra.mxu0 0.0
  %1404 = vmatprep.subr.mxu0 0.0
  %1405 = vmatpush1.msra.mxu0 0.0
  %1406 = vmatprep.subr.mxu0 0.0
  %1407 = vmatpush1.msra.mxu0 0.0
  %1408 = vmatprep.subr.mxu0 0.0
  %1409 = vmatpush1.msra.mxu0 0.0
  %1410 = vmatprep.subr.mxu0 0.0
  %1411 = vmatpush1.msra.mxu0 0.0
  %1412 = vmatprep.subr.mxu0 0.0
  %1413 = vmatpush1.msra.mxu0 0.0
  %1414 = vmatprep.subr.mxu0 0.0
  %1415 = vmatpush1.msra.mxu0 0.0
  %1416 = vmatprep.subr.mxu0 0.0
  %1417 = vmatpush1.msra.mxu0 0.0
  %1418 = vmatprep.subr.mxu0 0.0
  %1419 = vmatpush1.msra.mxu0 0.0
  %1420 = vmatprep.subr.mxu0 0.0
  %1421 = vmatpush1.msra.mxu0 0.0
  %1422 = vmatprep.subr.mxu0 0.0
  %1423 = vmatpush1.msra.mxu0 0.0
  %1424 = vmatprep.subr.mxu0 0.0
  %1425 = vmatpush1.msra.mxu0 0.0
  %1426 = vmatprep.subr.mxu0 0.0
  %1427 = vmatpush1.msra.mxu0 0.0
  %1428 = vmatprep.subr.mxu0 0.0
  %1429 = vmatpush1.msra.mxu0 0.0
  %1430 = vmatprep.subr.mxu0 0.0
  %1431 = vmatpush1.msra.mxu0 0.0
  %1432 = vmatprep.subr.mxu0 0.0
  %1433 = vmatpush1.msra.mxu0 0.0
  %1434 = vmatprep.subr.mxu0 0.0
  %1435 = vmatpush1.msra.mxu0 0.0
  %1436 = vmatprep.mubr.f32.mxu0 0.0
  %1437 = vmatmul.mubr.f32.gmra.mrb[0].mxu0 %v1358
  %v1438 = vpop.f32.mrb[0].mxu0
  %v1439 = vadd.f32 0.0, %v1438
  %v1440 = vpop.f32.mrb[0].mxu0
  %1441 = vmatprep.mubr.f32.mxu0 0.0
  %1442 = vmatmul.mubr.f32.gmra.mrb[0].mxu0 %v1361
  %v1443 = vpop.f32.mrb[0].mxu0
  %v1444 = vadd.f32 0.0, %v1443
  %v1445 = vpop.f32.mrb[0].mxu0
  %1446 = vmatprep.mubr.f32.mxu0 0.0
  %1447 = vmatmul.mubr.f32.gmra.mrb[0].mxu0 %v1364
  %v1448 = vpop.f32.mrb[0].mxu0
  %v1449 = vadd.f32 0.0, %v1448
  %v1450 = vpop.f32.mrb[0].mxu0
  %1451 = vmatprep.mubr.f32.mxu0 0.0
  %1452 = vmatmul.mubr.f32.gmra.mrb[0].mxu0 %v1367
  %v1453 = vpop.f32.mrb[0].mxu0
  %v1454 = vadd.f32 0.0, %v1453
  %v1455 = vpop.f32.mrb[0].mxu0
  %1456 = vmatprep.mubr.f32.mxu0 0.0
  %1457 = vmatmul.mubr.f32.gmra.mrb[0].mxu0 %v1370
  %v1458 = vpop.f32.mrb[0].mxu0
  %v1459 = vadd.f32 0.0, %v1458
  %v1460 = vpop.f32.mrb[0].mxu0
  %1461 = vdwg.mxu0
  %v1463 = vsel %vm469, %v1244, 0
  %v1466 = vsel %vm469, %v1249, 0
  %v1469 = vsel %vm469, %v1254, 0
  %v1472 = vsel %vm469, %v1259, 0
  %v1475 = vsel %vm469, %v1264, 0
  %1477 = vmatprep.subr.mxu0 0.0
  %1478 = vmatpush1.msra.mxu0 %v349
  %1479 = vmatprep.subr.mxu0 0.0
  %1480 = vmatpush1.msra.mxu0 %v350
  %1481 = vmatprep.subr.mxu0 0.0
  %1482 = vmatpush1.msra.mxu0 %v351
  %1483 = vmatprep.subr.mxu0 0.0
  %1484 = vmatpush1.msra.mxu0 %v352
  %1485 = vmatprep.subr.mxu0 0.0
  %1486 = vmatpush1.msra.mxu0 0.0
  %1487 = vmatprep.subr.mxu0 0.0
  %1488 = vmatpush1.msra.mxu0 0.0
  %1489 = vmatprep.subr.mxu0 0.0
  %1490 = vmatpush1.msra.mxu0 0.0
  %1491 = vmatprep.subr.mxu0 0.0
  %1492 = vmatpush1.msra.mxu0 0.0
  %1493 = vmatprep.subr.mxu0 0.0
  %1494 = vmatpush1.msra.mxu0 0.0
  %1495 = vmatprep.subr.mxu0 0.0
  %1496 = vmatpush1.msra.mxu0 0.0
  %1497 = vmatprep.subr.mxu0 0.0
  %1498 = vmatpush1.msra.mxu0 0.0
  %1499 = vmatprep.subr.mxu0 0.0
  %1500 = vmatpush1.msra.mxu0 0.0
  %1501 = vmatprep.subr.mxu0 0.0
  %1502 = vmatpush1.msra.mxu0 0.0
  %1503 = vmatprep.subr.mxu0 0.0
  %1504 = vmatpush1.msra.mxu0 0.0
  %1505 = vmatprep.subr.mxu0 0.0
  %1506 = vmatpush1.msra.mxu0 0.0
  %1507 = vmatprep.subr.mxu0 0.0
  %1508 = vmatpush1.msra.mxu0 0.0
  %1509 = vmatprep.subr.mxu0 0.0
  %1510 = vmatpush1.msra.mxu0 0.0
  %1511 = vmatprep.subr.mxu0 0.0
  %1512 = vmatpush1.msra.mxu0 0.0
  %1513 = vmatprep.subr.mxu0 0.0
  %1514 = vmatpush1.msra.mxu0 0.0
  %1515 = vmatprep.subr.mxu0 0.0
  %1516 = vmatpush1.msra.mxu0 0.0
  %1517 = vmatprep.subr.mxu0 0.0
  %1518 = vmatpush1.msra.mxu0 0.0
  %1519 = vmatprep.subr.mxu0 0.0
  %1520 = vmatpush1.msra.mxu0 0.0
  %1521 = vmatprep.subr.mxu0 0.0
  %1522 = vmatpush1.msra.mxu0 0.0
  %1523 = vmatprep.subr.mxu0 0.0
  %1524 = vmatpush1.msra.mxu0 0.0
  %1525 = vmatprep.subr.mxu0 0.0
  %1526 = vmatpush1.msra.mxu0 0.0
  %1527 = vmatprep.subr.mxu0 0.0
  %1528 = vmatpush1.msra.mxu0 0.0
  %1529 = vmatprep.subr.mxu0 0.0
  %1530 = vmatpush1.msra.mxu0 0.0
  %1531 = vmatprep.subr.mxu0 0.0
  %1532 = vmatpush1.msra.mxu0 0.0
  %1533 = vmatprep.subr.mxu0 0.0
  %1534 = vmatpush1.msra.mxu0 0.0
  %1535 = vmatprep.subr.mxu0 0.0
  %1536 = vmatpush1.msra.mxu0 0.0
  %1537 = vmatprep.subr.mxu0 0.0
  %1538 = vmatpush1.msra.mxu0 0.0
  %1539 = vmatprep.subr.mxu0 0.0
  %1540 = vmatpush1.msra.mxu0 0.0
  %1541 = vmatprep.mubr.f32.mxu0 0.0
  %1542 = vmatmul.mubr.f32.gmra.mrb[0].mxu0 %v1463
  %v1543 = vpop.f32.mrb[0].mxu0
  %v1544 = vadd.f32 %v1439, %v1543
  %v1545 = vpop.f32.mrb[0].mxu0
  %1546 = vmatprep.mubr.f32.mxu0 0.0
  %1547 = vmatmul.mubr.f32.gmra.mrb[0].mxu0 %v1466
  %v1548 = vpop.f32.mrb[0].mxu0
  %v1549 = vadd.f32 %v1444, %v1548
  %v1550 = vpop.f32.mrb[0].mxu0
  %1551 = vmatprep.mubr.f32.mxu0 0.0
  %1552 = vmatmul.mubr.f32.gmra.mrb[0].mxu0 %v1469
  %v1553 = vpop.f32.mrb[0].mxu0
  %v1554 = vadd.f32 %v1449, %v1553
  %v1555 = vpop.f32.mrb[0].mxu0
  %1556 = vmatprep.mubr.f32.mxu0 0.0
  %1557 = vmatmul.mubr.f32.gmra.mrb[0].mxu0 %v1472
  %v1558 = vpop.f32.mrb[0].mxu0
  %v1559 = vadd.f32 %v1454, %v1558
  %v1560 = vpop.f32.mrb[0].mxu0
  %1561 = vmatprep.mubr.f32.mxu0 0.0
  %1562 = vmatmul.mubr.f32.gmra.mrb[0].mxu0 %v1475
  %v1563 = vpop.f32.mrb[0].mxu0
  %v1564 = vadd.f32 %v1459, %v1563
  %v1565 = vpop.f32.mrb[0].mxu0
  %1566 = vdwg.mxu0
  %1567 = vmatprep.subr.mxu0 0.0
  %1568 = vmatpush1.msra.mxu0 %v1158
  %1569 = vmatprep.subr.mxu0 0.0
  %1570 = vmatpush1.msra.mxu0 %v1160
  %1571 = vmatprep.subr.mxu0 0.0
  %1572 = vmatpush1.msra.mxu0 %v1162
  %1573 = vmatprep.subr.mxu0 0.0
  %1574 = vmatpush1.msra.mxu0 %v1164
  %1575 = vmatprep.subr.mxu0 0.0
  %1576 = vmatpush1.msra.mxu0 %v1166
  %1577 = vmatprep.subr.mxu0 0.0
  %1578 = vmatpush1.msra.mxu0 %v1168
  %1579 = vmatprep.subr.mxu0 0.0
  %1580 = vmatpush1.msra.mxu0 %v1175
  %1581 = vmatprep.subr.mxu0 0.0
  %1582 = vmatpush1.msra.mxu0 0.0
  %1583 = vmatprep.subr.mxu0 0.0
  %1584 = vmatpush1.msra.mxu0 0.0
  %1585 = vmatprep.subr.mxu0 0.0
  %1586 = vmatpush1.msra.mxu0 0.0
  %1587 = vmatprep.subr.mxu0 0.0
  %1588 = vmatpush1.msra.mxu0 0.0
  %1589 = vmatprep.subr.mxu0 0.0
  %1590 = vmatpush1.msra.mxu0 0.0
  %1591 = vmatprep.subr.mxu0 0.0
  %1592 = vmatpush1.msra.mxu0 0.0
  %1593 = vmatprep.subr.mxu0 0.0
  %1594 = vmatpush1.msra.mxu0 0.0
  %1595 = vmatprep.subr.mxu0 0.0
  %1596 = vmatpush1.msra.mxu0 0.0
  %1597 = vmatprep.subr.mxu0 0.0
  %1598 = vmatpush1.msra.mxu0 0.0
  %1599 = vmatprep.subr.mxu0 0.0
  %1600 = vmatpush1.msra.mxu0 0.0
  %1601 = vmatprep.subr.mxu0 0.0
  %1602 = vmatpush1.msra.mxu0 0.0
  %1603 = vmatprep.subr.mxu0 0.0
  %1604 = vmatpush1.msra.mxu0 0.0
  %1605 = vmatprep.subr.mxu0 0.0
  %1606 = vmatpush1.msra.mxu0 0.0
  %1607 = vmatprep.subr.mxu0 0.0
  %1608 = vmatpush1.msra.mxu0 0.0
  %1609 = vmatprep.subr.mxu0 0.0
  %1610 = vmatpush1.msra.mxu0 0.0
  %1611 = vmatprep.subr.mxu0 0.0
  %1612 = vmatpush1.msra.mxu0 0.0
  %1613 = vmatprep.subr.mxu0 0.0
  %1614 = vmatpush1.msra.mxu0 0.0
  %1615 = vmatprep.subr.mxu0 0.0
  %1616 = vmatpush1.msra.mxu0 0.0
  %1617 = vmatprep.subr.mxu0 0.0
  %1618 = vmatpush1.msra.mxu0 0.0
  %1619 = vmatprep.subr.mxu0 0.0
  %1620 = vmatpush1.msra.mxu0 0.0
  %1621 = vmatprep.subr.mxu0 0.0
  %1622 = vmatpush1.msra.mxu0 0.0
  %1623 = vmatprep.subr.mxu0 0.0
  %1624 = vmatpush1.msra.mxu0 0.0
  %1625 = vmatprep.subr.mxu0 0.0
  %1626 = vmatpush1.msra.mxu0 0.0
  %1627 = vmatprep.subr.mxu0 0.0
  %1628 = vmatpush1.msra.mxu0 0.0
  %1629 = vmatprep.subr.mxu0 0.0
  %1630 = vmatpush1.msra.mxu0 0.0
  %1631 = vmatprep.mubr.f32.mxu0 0.0
  %1632 = vmatmul.mubr.f32.gmra.mrb[0].mxu0 %v687
  %v1633 = vpop.f32.mrb[0].mxu0
  %v1634 = vadd.f32 0.0, %v1633
  %v1635 = vpop.f32.mrb[0].mxu0
  %1636 = vmatprep.mubr.f32.mxu0 0.0
  %1637 = vmatmul.mubr.f32.gmra.mrb[0].mxu0 %v690
  %v1638 = vpop.f32.mrb[0].mxu0
  %v1639 = vadd.f32 0.0, %v1638
  %v1640 = vpop.f32.mrb[0].mxu0
  %1641 = vmatprep.mubr.f32.mxu0 0.0
  %1642 = vmatmul.mubr.f32.gmra.mrb[0].mxu0 %v693
  %v1643 = vpop.f32.mrb[0].mxu0
  %v1644 = vadd.f32 0.0, %v1643
  %v1645 = vpop.f32.mrb[0].mxu0
  %1646 = vmatprep.mubr.f32.mxu0 0.0
  %1647 = vmatmul.mubr.f32.gmra.mrb[0].mxu0 %v696
  %v1648 = vpop.f32.mrb[0].mxu0
  %v1649 = vadd.f32 0.0, %v1648
  %v1650 = vpop.f32.mrb[0].mxu0
  %1651 = vmatprep.mubr.f32.mxu0 0.0
  %1652 = vmatmul.mubr.f32.gmra.mrb[0].mxu0 %v699
  %v1653 = vpop.f32.mrb[0].mxu0
  %v1654 = vadd.f32 0.0, %v1653
  %v1655 = vpop.f32.mrb[0].mxu0
  %1656 = vdwg.mxu0
  %v1658 = vsel %vm469, %v1634, 0
  %v1661 = vsel %vm469, %v1639, 0
  %v1664 = vsel %vm469, %v1644, 0
  %v1667 = vsel %vm469, %v1649, 0
  %v1670 = vsel %vm469, %v1654, 0
  %1672 = vmatprep.subr.mxu0 0.0
  %1673 = vmatpush1.msra.mxu0 %v792
  %1674 = vmatprep.subr.mxu0 0.0
  %1675 = vmatpush1.msra.mxu0 %v793
  %1676 = vmatprep.subr.mxu0 0.0
  %1677 = vmatpush1.msra.mxu0 %v794
  %1678 = vmatprep.subr.mxu0 0.0
  %1679 = vmatpush1.msra.mxu0 %v795
  %1680 = vmatprep.subr.mxu0 0.0
  %1681 = vmatpush1.msra.mxu0 0.0
  %1682 = vmatprep.subr.mxu0 0.0
  %1683 = vmatpush1.msra.mxu0 0.0
  %1684 = vmatprep.subr.mxu0 0.0
  %1685 = vmatpush1.msra.mxu0 0.0
  %1686 = vmatprep.subr.mxu0 0.0
  %1687 = vmatpush1.msra.mxu0 0.0
  %1688 = vmatprep.subr.mxu0 0.0
  %1689 = vmatpush1.msra.mxu0 0.0
  %1690 = vmatprep.subr.mxu0 0.0
  %1691 = vmatpush1.msra.mxu0 0.0
  %1692 = vmatprep.subr.mxu0 0.0
  %1693 = vmatpush1.msra.mxu0 0.0
  %1694 = vmatprep.subr.mxu0 0.0
  %1695 = vmatpush1.msra.mxu0 0.0
  %1696 = vmatprep.subr.mxu0 0.0
  %1697 = vmatpush1.msra.mxu0 0.0
  %1698 = vmatprep.subr.mxu0 0.0
  %1699 = vmatpush1.msra.mxu0 0.0
  %1700 = vmatprep.subr.mxu0 0.0
  %1701 = vmatpush1.msra.mxu0 0.0
  %1702 = vmatprep.subr.mxu0 0.0
  %1703 = vmatpush1.msra.mxu0 0.0
  %1704 = vmatprep.subr.mxu0 0.0
  %1705 = vmatpush1.msra.mxu0 0.0
  %1706 = vmatprep.subr.mxu0 0.0
  %1707 = vmatpush1.msra.mxu0 0.0
  %1708 = vmatprep.subr.mxu0 0.0
  %1709 = vmatpush1.msra.mxu0 0.0
  %1710 = vmatprep.subr.mxu0 0.0
  %1711 = vmatpush1.msra.mxu0 0.0
  %1712 = vmatprep.subr.mxu0 0.0
  %1713 = vmatpush1.msra.mxu0 0.0
  %1714 = vmatprep.subr.mxu0 0.0
  %1715 = vmatpush1.msra.mxu0 0.0
  %1716 = vmatprep.subr.mxu0 0.0
  %1717 = vmatpush1.msra.mxu0 0.0
  %1718 = vmatprep.subr.mxu0 0.0
  %1719 = vmatpush1.msra.mxu0 0.0
  %1720 = vmatprep.subr.mxu0 0.0
  %1721 = vmatpush1.msra.mxu0 0.0
  %1722 = vmatprep.subr.mxu0 0.0
  %1723 = vmatpush1.msra.mxu0 0.0
  %1724 = vmatprep.subr.mxu0 0.0
  %1725 = vmatpush1.msra.mxu0 0.0
  %1726 = vmatprep.subr.mxu0 0.0
  %1727 = vmatpush1.msra.mxu0 0.0
  %1728 = vmatprep.subr.mxu0 0.0
  %1729 = vmatpush1.msra.mxu0 0.0
  %1730 = vmatprep.subr.mxu0 0.0
  %1731 = vmatpush1.msra.mxu0 0.0
  %1732 = vmatprep.subr.mxu0 0.0
  %1733 = vmatpush1.msra.mxu0 0.0
  %1734 = vmatprep.subr.mxu0 0.0
  %1735 = vmatpush1.msra.mxu0 0.0
  %1736 = vmatprep.mubr.f32.mxu0 0.0
  %1737 = vmatmul.mubr.f32.gmra.mrb[0].mxu0 %v1658
  %v1738 = vpop.f32.mrb[0].mxu0
  %v1739 = vadd.f32 0.0, %v1738
  %v1740 = vpop.f32.mrb[0].mxu0
  %1741 = vmatprep.mubr.f32.mxu0 0.0
  %1742 = vmatmul.mubr.f32.gmra.mrb[0].mxu0 %v1661
  %v1743 = vpop.f32.mrb[0].mxu0
  %v1744 = vadd.f32 0.0, %v1743
  %v1745 = vpop.f32.mrb[0].mxu0
  %1746 = vmatprep.mubr.f32.mxu0 0.0
  %1747 = vmatmul.mubr.f32.gmra.mrb[0].mxu0 %v1664
  %v1748 = vpop.f32.mrb[0].mxu0
  %v1749 = vadd.f32 0.0, %v1748
  %v1750 = vpop.f32.mrb[0].mxu0
  %1751 = vmatprep.mubr.f32.mxu0 0.0
  %1752 = vmatmul.mubr.f32.gmra.mrb[0].mxu0 %v1667
  %v1753 = vpop.f32.mrb[0].mxu0
  %v1754 = vadd.f32 0.0, %v1753
  %v1755 = vpop.f32.mrb[0].mxu0
  %1756 = vmatprep.mubr.f32.mxu0 0.0
  %1757 = vmatmul.mubr.f32.gmra.mrb[0].mxu0 %v1670
  %v1758 = vpop.f32.mrb[0].mxu0
  %v1759 = vadd.f32 0.0, %v1758
  %v1760 = vpop.f32.mrb[0].mxu0
  %1761 = vdwg.mxu0
  %v1762 = vadd.f32 %v1544, %v1739
  %v1763 = vadd.f32 %v1549, %v1744
  %v1764 = vadd.f32 %v1554, %v1749
  %v1765 = vadd.f32 %v1559, %v1754
  %v1766 = vadd.f32 %v1564, %v1759
  %1767 = vmatprep.subr.mxu0 0.0
  %1768 = vmatpush1.msra.mxu0 %v1158
  %1769 = vmatprep.subr.mxu0 0.0
  %1770 = vmatpush1.msra.mxu0 %v1160
  %1771 = vmatprep.subr.mxu0 0.0
  %1772 = vmatpush1.msra.mxu0 %v1162
  %1773 = vmatprep.subr.mxu0 0.0
  %1774 = vmatpush1.msra.mxu0 %v1164
  %1775 = vmatprep.subr.mxu0 0.0
  %1776 = vmatpush1.msra.mxu0 %v1166
  %1777 = vmatprep.subr.mxu0 0.0
  %1778 = vmatpush1.msra.mxu0 %v1168
  %1779 = vmatprep.subr.mxu0 0.0
  %1780 = vmatpush1.msra.mxu0 %v1175
  %1781 = vmatprep.subr.mxu0 0.0
  %1782 = vmatpush1.msra.mxu0 0.0
  %1783 = vmatprep.subr.mxu0 0.0
  %1784 = vmatpush1.msra.mxu0 0.0
  %1785 = vmatprep.subr.mxu0 0.0
  %1786 = vmatpush1.msra.mxu0 0.0
  %1787 = vmatprep.subr.mxu0 0.0
  %1788 = vmatpush1.msra.mxu0 0.0
  %1789 = vmatprep.subr.mxu0 0.0
  %1790 = vmatpush1.msra.mxu0 0.0
  %1791 = vmatprep.subr.mxu0 0.0
  %1792 = vmatpush1.msra.mxu0 0.0
  %1793 = vmatprep.subr.mxu0 0.0
  %1794 = vmatpush1.msra.mxu0 0.0
  %1795 = vmatprep.subr.mxu0 0.0
  %1796 = vmatpush1.msra.mxu0 0.0
  %1797 = vmatprep.subr.mxu0 0.0
  %1798 = vmatpush1.msra.mxu0 0.0
  %1799 = vmatprep.subr.mxu0 0.0
  %1800 = vmatpush1.msra.mxu0 0.0
  %1801 = vmatprep.subr.mxu0 0.0
  %1802 = vmatpush1.msra.mxu0 0.0
  %1803 = vmatprep.subr.mxu0 0.0
  %1804 = vmatpush1.msra.mxu0 0.0
  %1805 = vmatprep.subr.mxu0 0.0
  %1806 = vmatpush1.msra.mxu0 0.0
  %1807 = vmatprep.subr.mxu0 0.0
  %1808 = vmatpush1.msra.mxu0 0.0
  %1809 = vmatprep.subr.mxu0 0.0
  %1810 = vmatpush1.msra.mxu0 0.0
  %1811 = vmatprep.subr.mxu0 0.0
  %1812 = vmatpush1.msra.mxu0 0.0
  %1813 = vmatprep.subr.mxu0 0.0
  %1814 = vmatpush1.msra.mxu0 0.0
  %1815 = vmatprep.subr.mxu0 0.0
  %1816 = vmatpush1.msra.mxu0 0.0
  %1817 = vmatprep.subr.mxu0 0.0
  %1818 = vmatpush1.msra.mxu0 0.0
  %1819 = vmatprep.subr.mxu0 0.0
  %1820 = vmatpush1.msra.mxu0 0.0
  %1821 = vmatprep.subr.mxu0 0.0
  %1822 = vmatpush1.msra.mxu0 0.0
  %1823 = vmatprep.subr.mxu0 0.0
  %1824 = vmatpush1.msra.mxu0 0.0
  %1825 = vmatprep.subr.mxu0 0.0
  %1826 = vmatpush1.msra.mxu0 0.0
  %1827 = vmatprep.subr.mxu0 0.0
  %1828 = vmatpush1.msra.mxu0 0.0
  %1829 = vmatprep.subr.mxu0 0.0
  %1830 = vmatpush1.msra.mxu0 0.0
  %1831 = vmatprep.mubr.f32.mxu0 0.0
  %1832 = vmatmul.mubr.f32.gmra.mrb[0].mxu0 %v913
  %v1833 = vpop.f32.mrb[0].mxu0
  %v1834 = vadd.f32 0.0, %v1833
  %v1835 = vpop.f32.mrb[0].mxu0
  %1836 = vmatprep.mubr.f32.mxu0 0.0
  %1837 = vmatmul.mubr.f32.gmra.mrb[0].mxu0 %v916
  %v1838 = vpop.f32.mrb[0].mxu0
  %v1839 = vadd.f32 0.0, %v1838
  %v1840 = vpop.f32.mrb[0].mxu0
  %1841 = vmatprep.mubr.f32.mxu0 0.0
  %1842 = vmatmul.mubr.f32.gmra.mrb[0].mxu0 %v919
  %v1843 = vpop.f32.mrb[0].mxu0
  %v1844 = vadd.f32 0.0, %v1843
  %v1845 = vpop.f32.mrb[0].mxu0
  %1846 = vmatprep.mubr.f32.mxu0 0.0
  %1847 = vmatmul.mubr.f32.gmra.mrb[0].mxu0 %v922
  %v1848 = vpop.f32.mrb[0].mxu0
  %v1849 = vadd.f32 0.0, %v1848
  %v1850 = vpop.f32.mrb[0].mxu0
  %1851 = vmatprep.mubr.f32.mxu0 0.0
  %1852 = vmatmul.mubr.f32.gmra.mrb[0].mxu0 %v925
  %v1853 = vpop.f32.mrb[0].mxu0
  %v1854 = vadd.f32 0.0, %v1853
  %v1855 = vpop.f32.mrb[0].mxu0
  %1856 = vdwg.mxu0
  %v1858 = vsel %vm469, %v1834, 0
  %v1861 = vsel %vm469, %v1839, 0
  %v1864 = vsel %vm469, %v1844, 0
  %v1867 = vsel %vm469, %v1849, 0
  %v1870 = vsel %vm469, %v1854, 0
  %1872 = vmatprep.subr.mxu0 0.0
  %1873 = vmatpush1.msra.mxu0 %v1018
  %1874 = vmatprep.subr.mxu0 0.0
  %1875 = vmatpush1.msra.mxu0 %v1019
  %1876 = vmatprep.subr.mxu0 0.0
  %1877 = vmatpush1.msra.mxu0 %v1020
  %1878 = vmatprep.subr.mxu0 0.0
  %1879 = vmatpush1.msra.mxu0 %v1021
  %1880 = vmatprep.subr.mxu0 0.0
  %1881 = vmatpush1.msra.mxu0 0.0
  %1882 = vmatprep.subr.mxu0 0.0
  %1883 = vmatpush1.msra.mxu0 0.0
  %1884 = vmatprep.subr.mxu0 0.0
  %1885 = vmatpush1.msra.mxu0 0.0
  %1886 = vmatprep.subr.mxu0 0.0
  %1887 = vmatpush1.msra.mxu0 0.0
  %1888 = vmatprep.subr.mxu0 0.0
  %1889 = vmatpush1.msra.mxu0 0.0
  %1890 = vmatprep.subr.mxu0 0.0
  %1891 = vmatpush1.msra.mxu0 0.0
  %1892 = vmatprep.subr.mxu0 0.0
  %1893 = vmatpush1.msra.mxu0 0.0
  %1894 = vmatprep.subr.mxu0 0.0
  %1895 = vmatpush1.msra.mxu0 0.0
  %1896 = vmatprep.subr.mxu0 0.0
  %1897 = vmatpush1.msra.mxu0 0.0
  %1898 = vmatprep.subr.mxu0 0.0
  %1899 = vmatpush1.msra.mxu0 0.0
  %1900 = vmatprep.subr.mxu0 0.0
  %1901 = vmatpush1.msra.mxu0 0.0
  %1902 = vmatprep.subr.mxu0 0.0
  %1903 = vmatpush1.msra.mxu0 0.0
  %1904 = vmatprep.subr.mxu0 0.0
  %1905 = vmatpush1.msra.mxu0 0.0
  %1906 = vmatprep.subr.mxu0 0.0
  %1907 = vmatpush1.msra.mxu0 0.0
  %1908 = vmatprep.subr.mxu0 0.0
  %1909 = vmatpush1.msra.mxu0 0.0
  %1910 = vmatprep.subr.mxu0 0.0
  %1911 = vmatpush1.msra.mxu0 0.0
  %1912 = vmatprep.subr.mxu0 0.0
  %1913 = vmatpush1.msra.mxu0 0.0
  %1914 = vmatprep.subr.mxu0 0.0
  %1915 = vmatpush1.msra.mxu0 0.0
  %1916 = vmatprep.subr.mxu0 0.0
  %1917 = vmatpush1.msra.mxu0 0.0
  %1918 = vmatprep.subr.mxu0 0.0
  %1919 = vmatpush1.msra.mxu0 0.0
  %1920 = vmatprep.subr.mxu0 0.0
  %1921 = vmatpush1.msra.mxu0 0.0
  %1922 = vmatprep.subr.mxu0 0.0
  %1923 = vmatpush1.msra.mxu0 0.0
  %1924 = vmatprep.subr.mxu0 0.0
  %1925 = vmatpush1.msra.mxu0 0.0
  %1926 = vmatprep.subr.mxu0 0.0
  %1927 = vmatpush1.msra.mxu0 0.0
  %1928 = vmatprep.subr.mxu0 0.0
  %1929 = vmatpush1.msra.mxu0 0.0
  %1930 = vmatprep.subr.mxu0 0.0
  %1931 = vmatpush1.msra.mxu0 0.0
  %1932 = vmatprep.subr.mxu0 0.0
  %1933 = vmatpush1.msra.mxu0 0.0
  %1934 = vmatprep.subr.mxu0 0.0
  %1935 = vmatpush1.msra.mxu0 0.0
  %1936 = vmatprep.mubr.f32.mxu0 0.0
  %1937 = vmatmul.mubr.f32.gmra.mrb[0].mxu0 %v1858
  %v1938 = vpop.f32.mrb[0].mxu0
  %v1939 = vadd.f32 0.0, %v1938
  %v1940 = vpop.f32.mrb[0].mxu0
  %1941 = vmatprep.mubr.f32.mxu0 0.0
  %1942 = vmatmul.mubr.f32.gmra.mrb[0].mxu0 %v1861
  %v1943 = vpop.f32.mrb[0].mxu0
  %v1944 = vadd.f32 0.0, %v1943
  %v1945 = vpop.f32.mrb[0].mxu0
  %1946 = vmatprep.mubr.f32.mxu0 0.0
  %1947 = vmatmul.mubr.f32.gmra.mrb[0].mxu0 %v1864
  %v1948 = vpop.f32.mrb[0].mxu0
  %v1949 = vadd.f32 0.0, %v1948
  %v1950 = vpop.f32.mrb[0].mxu0
  %1951 = vmatprep.mubr.f32.mxu0 0.0
  %1952 = vmatmul.mubr.f32.gmra.mrb[0].mxu0 %v1867
  %v1953 = vpop.f32.mrb[0].mxu0
  %v1954 = vadd.f32 0.0, %v1953
  %v1955 = vpop.f32.mrb[0].mxu0
  %1956 = vmatprep.mubr.f32.mxu0 0.0
  %1957 = vmatmul.mubr.f32.gmra.mrb[0].mxu0 %v1870
  %v1958 = vpop.f32.mrb[0].mxu0
  %v1959 = vadd.f32 0.0, %v1958
  %v1960 = vpop.f32.mrb[0].mxu0
  %1961 = vdwg.mxu0
  %v1962 = vadd.f32 %v1762, %v1939
  %v1963 = vadd.f32 %v1763, %v1944
  %v1964 = vadd.f32 %v1764, %v1949
  %v1965 = vadd.f32 %v1765, %v1954
  %v1966 = vadd.f32 %v1766, %v1959
  %v1967 = vadd.f32 %v1962, %v1137
  %v1968 = vadd.f32 %v1963, %v1137
  %v1969 = vadd.f32 %v1964, %v1137
  %v1970 = vadd.f32 %v1965, %v1137
  %v1971 = vadd.f32 %v1966, %v1137
  %v1972 = vmax.f32 %v1967, 0.0
  %v1973 = vmax.f32 %v1968, 0.0
  %v1974 = vmax.f32 %v1969, 0.0
  %v1975 = vmax.f32 %v1970, 0.0
  %v1976 = vmax.f32 %v1971, 0.0
  %vm1982 = vcmask 1043456
  %v1983 = vrot.slane %v1972, 4
  %v1984 = vrot.slane %v1973, 4
  %v1985 = vsel %vm1982, %v1983, %v1984
  %v1986 = vrot.slane %v1974, 4
  %v1987 = vsel %vm1982, %v1984, %v1986
  %v1988 = vrot.slane %v1975, 4
  %v1989 = vsel %vm1982, %v1986, %v1988
  %v1990 = vrot.slane %v1976, 4
  %v1991 = vsel %vm1982, %v1988, %v1990
  %v1997 = vsel %vm1982, %v1148, %v1983
  %1998 = vst [vmem:[%s6] sm:$0xff] %v1144
  %1999 = vst [vmem:[%s6 + $0x8] sm:$0xff] %v1145
  %2000 = vst [vmem:[%s6 + $0x10] sm:$0xff] %v1146
  %2001 = vst [vmem:[%s6 + $0x18] sm:$0xff] %v1147
  %2002 = vst [vmem:[%s6 + $0x20] sm:$0xff] %v1997
  %2003 = vst [vmem:[%s6 + $0x28] sm:$0xff] %v1985
  %2004 = vst [vmem:[%s6 + $0x30] sm:$0xff] %v1987
  %2005 = vst [vmem:[%s6 + $0x38] sm:$0xff] %v1989
  %2006 = vst [vmem:[%s6 + $0x40] sm:$0xff] %v1991
  // Predicated region
  $region26: #{_forward_impl.2} parent=0 // pred_check
    _
  $region27: #{_forward_impl.2} parent=0 // pred_check_branch
    %2008 = sbr.rel (0) target = $region29
  $region28: #{_forward_impl.2} parent=0 // pred_region
    _
  $region29: #{_forward_impl.2} parent=0 // pred_fallthru
    _
  // Predicated region
  $region30: #{_forward_impl.2} parent=0 // pred_check
    _
  $region31: #{_forward_impl.2} parent=0 // pred_check_branch
    %2010 = sbr.rel (0) target = $region33
  $region32: #{_forward_impl.2} parent=0 // pred_region
    _
  $region33: #{_forward_impl.2} parent=0 // pred_fallthru
    _

// kernel: _forward_impl.3
$region0: #{_forward_impl.3}
  #allocation0 [shape = 'u32[]', space=smem, size = 0x4, offset = 0x4, fixed_abs, tag = 'smem constant byte address 0x4 - core index']
  #allocation1 [shape = 'u32[144,128]{1,0:T(1,128)}', space=vmem, size = 0x12000, scoped, tag = 'internal scratch']
  %s0 = inlined_call_operand.vmem [shape: f32[2,4608], index: 0, kind: input, shape index: {}]
  %s1 = inlined_call_operand.vmem [shape: f32[2,2], index: 1, kind: input, shape index: {}]
  %s2 = inlined_call_operand.vmem [shape: f32[4608,32], index: 2, kind: input, shape index: {}]
  %s3 = inlined_call_operand.vmem [shape: f32[1,32], index: 3, kind: input, shape index: {}]
  %s4 = inlined_call_operand.vmem [shape: f32[32,34], index: 4, kind: input, shape index: {}]
  %s5 = inlined_call_operand.vmem [shape: f32[2,34], index: 5, kind: input, shape index: {}]
  %s6 = inlined_call_operand.vmem [shape: f32[1,34], index: 6, kind: input, shape index: {}]
  %s7 = inlined_call_operand.vmem [shape: f32[34,128], index: 7, kind: input, shape index: {}]
  %s8 = inlined_call_operand.vmem [shape: f32[1,128], index: 8, kind: input, shape index: {}]
  %s9 = inlined_call_operand.vmem [shape: f32[2,128], index: 9, kind: output, shape index: {}]
  %s10 = sld [smem:[#allocation0]]
  $region46: #{_forward_impl.3} parent=0
    _
  %s12 = ssub.s32 1, %s10
  %s13 = scalar_select 0, %s12, %s10
  // Predicated region
  $region2: #{_forward_impl.3} parent=0 // pred_check
    _
  $region3: #{_forward_impl.3} parent=0 // pred_check_branch
    %15 = sbr.rel (0) target = $region5
  $region4: #{_forward_impl.3} parent=0 // pred_region
    _
  $region5: #{_forward_impl.3} parent=0 // pred_fallthru
    _
  // Predicated region
  $region6: #{_forward_impl.3} parent=0 // pred_check
    _
  $region7: #{_forward_impl.3} parent=0 // pred_check_branch
    %17 = sbr.rel (0) target = $region9
  $region8: #{_forward_impl.3} parent=0 // pred_region
    _
  $region9: #{_forward_impl.3} parent=0 // pred_fallthru
    _
  // Predicated region
  $region10: #{_forward_impl.3} parent=0 // pred_check
    _
  $region11: #{_forward_impl.3} parent=0 // pred_check_branch
    %19 = sbr.rel (0) target = $region13
  $region12: #{_forward_impl.3} parent=0 // pred_region
    _
  $region13: #{_forward_impl.3} parent=0 // pred_fallthru
    _
  // Predicated region
  $region14: #{_forward_impl.3} parent=0 // pred_check
    _
  $region15: #{_forward_impl.3} parent=0 // pred_check_branch
    %21 = sbr.rel (0) target = $region17
  $region16: #{_forward_impl.3} parent=0 // pred_region
    _
  $region17: #{_forward_impl.3} parent=0 // pred_fallthru
    _
  // Predicated region
  $region18: #{_forward_impl.3} parent=0 // pred_check
    _
  $region19: #{_forward_impl.3} parent=0 // pred_check_branch
    %23 = sbr.rel (0) target = $region21
  $region20: #{_forward_impl.3} parent=0 // pred_region
    _
  $region21: #{_forward_impl.3} parent=0 // pred_fallthru
    _
  // Predicated region
  $region22: #{_forward_impl.3} parent=0 // pred_check
    _
  $region23: #{_forward_impl.3} parent=0 // pred_check_branch
    %25 = sbr.rel (0) target = $region25
  $region24: #{_forward_impl.3} parent=0 // pred_region
    _
  $region25: #{_forward_impl.3} parent=0 // pred_fallthru
    _
  // Predicated region
  $region26: #{_forward_impl.3} parent=0 // pred_check
    _
  $region27: #{_forward_impl.3} parent=0 // pred_check_branch
    %27 = sbr.rel (0) target = $region29
  $region28: #{_forward_impl.3} parent=0 // pred_region
    _
  $region29: #{_forward_impl.3} parent=0 // pred_fallthru
    _
  // Predicated region
  $region30: #{_forward_impl.3} parent=0 // pred_check
    _
  $region31: #{_forward_impl.3} parent=0 // pred_check_branch
    %29 = sbr.rel (0) target = $region33
  $region32: #{_forward_impl.3} parent=0 // pred_region
    _
  $region33: #{_forward_impl.3} parent=0 // pred_fallthru
    _
  // Predicated region
  $region34: #{_forward_impl.3} parent=0 // pred_check
    _
  $region35: #{_forward_impl.3} parent=0 // pred_check_branch
    %31 = sbr.rel (0) target = $region37
  $region36: #{_forward_impl.3} parent=0 // pred_region
    _
  $region37: #{_forward_impl.3} parent=0 // pred_fallthru
    _
  %v32 = vld [vmem:[%s0] sm:$0xff]
  %v33 = vld [vmem:[%s0 + $0x8] sm:$0xff]
  %v34 = vld [vmem:[%s0 + $0x10] sm:$0xff]
  %v35 = vld [vmem:[%s0 + $0x18] sm:$0xff]
  %v36 = vld [vmem:[%s0 + $0x20] sm:$0xff]
  %v37 = vld [vmem:[%s0 + $0x28] sm:$0xff]
  %v38 = vld [vmem:[%s0 + $0x30] sm:$0xff]
  %v39 = vld [vmem:[%s0 + $0x38] sm:$0xff]
  %v40 = vld [vmem:[%s0 + $0x40] sm:$0xff]
  %v41 = vld [vmem:[%s2] sm:$0xff]
  %v42 = vld [vmem:[%s2 + $0x8] sm:$0xff]
  %v43 = vld [vmem:[%s2 + $0x10] sm:$0xff]
  %v44 = vld [vmem:[%s2 + $0x18] sm:$0xff]
  %v45 = vld [vmem:[%s2 + $0x20] sm:$0xff]
  %v46 = vld [vmem:[%s2 + $0x28] sm:$0xff]
  %v47 = vld [vmem:[%s2 + $0x30] sm:$0xff]
  %v48 = vld [vmem:[%s2 + $0x38] sm:$0xff]
  %v49 = vld [vmem:[%s2 + $0x40] sm:$0xff]
  %v50 = vld [vmem:[%s2 + $0x48] sm:$0xff]
  %v51 = vld [vmem:[%s2 + $0x50] sm:$0xff]
  %v52 = vld [vmem:[%s2 + $0x58] sm:$0xff]
  %v53 = vld [vmem:[%s2 + $0x60] sm:$0xff]
  %v54 = vld [vmem:[%s2 + $0x68] sm:$0xff]
  %v55 = vld [vmem:[%s2 + $0x70] sm:$0xff]
  %v56 = vld [vmem:[%s2 + $0x78] sm:$0xff]
  %v57 = vld [vmem:[%s2 + $0x80] sm:$0xff]
  %v58 = vld [vmem:[%s2 + $0x88] sm:$0xff]
  %v59 = vld [vmem:[%s2 + $0x90] sm:$0xff]
  %v60 = vld [vmem:[%s2 + $0x98] sm:$0xff]
  %v61 = vld [vmem:[%s2 + $0xa0] sm:$0xff]
  %v62 = vld [vmem:[%s2 + $0xa8] sm:$0xff]
  %v63 = vld [vmem:[%s2 + $0xb0] sm:$0xff]
  %v64 = vld [vmem:[%s2 + $0xb8] sm:$0xff]
  %v65 = vld [vmem:[%s2 + $0xc0] sm:$0xff]
  %v66 = vld [vmem:[%s2 + $0xc8] sm:$0xff]
  %v67 = vld [vmem:[%s2 + $0xd0] sm:$0xff]
  %v68 = vld [vmem:[%s2 + $0xd8] sm:$0xff]
  %v69 = vld [vmem:[%s2 + $0xe0] sm:$0xff]
  %v70 = vld [vmem:[%s2 + $0xe8] sm:$0xff]
  %v71 = vld [vmem:[%s2 + $0xf0] sm:$0xff]
  %v72 = vld [vmem:[%s2 + $0xf8] sm:$0xff]
  %v73 = vld [vmem:[%s2 + $0x100] sm:$0xff]
  %v74 = vld [vmem:[%s2 + $0x108] sm:$0xff]
  %v75 = vld [vmem:[%s2 + $0x110] sm:$0xff]
  %v76 = vld [vmem:[%s2 + $0x118] sm:$0xff]
  %v77 = vld [vmem:[%s2 + $0x120] sm:$0xff]
  %v78 = vld [vmem:[%s2 + $0x128] sm:$0xff]
  %v79 = vld [vmem:[%s2 + $0x130] sm:$0xff]
  %v80 = vld [vmem:[%s2 + $0x138] sm:$0xff]
  %v81 = vld [vmem:[%s2 + $0x140] sm:$0xff]
  %v82 = vld [vmem:[%s2 + $0x148] sm:$0xff]
  %v83 = vld [vmem:[%s2 + $0x150] sm:$0xff]
  %v84 = vld [vmem:[%s2 + $0x158] sm:$0xff]
  %v85 = vld [vmem:[%s2 + $0x160] sm:$0xff]
  %v86 = vld [vmem:[%s2 + $0x168] sm:$0xff]
  %v87 = vld [vmem:[%s2 + $0x170] sm:$0xff]
  %v88 = vld [vmem:[%s2 + $0x178] sm:$0xff]
  %v89 = vld [vmem:[%s2 + $0x180] sm:$0xff]
  %v90 = vld [vmem:[%s2 + $0x188] sm:$0xff]
  %v91 = vld [vmem:[%s2 + $0x190] sm:$0xff]
  %v92 = vld [vmem:[%s2 + $0x198] sm:$0xff]
  %v93 = vld [vmem:[%s2 + $0x1a0] sm:$0xff]
  %v94 = vld [vmem:[%s2 + $0x1a8] sm:$0xff]
  %v95 = vld [vmem:[%s2 + $0x1b0] sm:$0xff]
  %v96 = vld [vmem:[%s2 + $0x1b8] sm:$0xff]
  %v97 = vld [vmem:[%s2 + $0x1c0] sm:$0xff]
  %v98 = vld [vmem:[%s2 + $0x1c8] sm:$0xff]
  %v99 = vld [vmem:[%s2 + $0x1d0] sm:$0xff]
  %v100 = vld [vmem:[%s2 + $0x1d8] sm:$0xff]
  %v101 = vld [vmem:[%s2 + $0x1e0] sm:$0xff]
  %v102 = vld [vmem:[%s2 + $0x1e8] sm:$0xff]
  %v103 = vld [vmem:[%s2 + $0x1f0] sm:$0xff]
  %v104 = vld [vmem:[%s2 + $0x1f8] sm:$0xff]
  %v105 = vld [vmem:[%s2 + $0x200] sm:$0xff]
  %v106 = vld [vmem:[%s2 + $0x208] sm:$0xff]
  %v107 = vld [vmem:[%s2 + $0x210] sm:$0xff]
  %v108 = vld [vmem:[%s2 + $0x218] sm:$0xff]
  %v109 = vld [vmem:[%s2 + $0x220] sm:$0xff]
  %v110 = vld [vmem:[%s2 + $0x228] sm:$0xff]
  %v111 = vld [vmem:[%s2 + $0x230] sm:$0xff]
  %v112 = vld [vmem:[%s2 + $0x238] sm:$0xff]
  %v113 = vld [vmem:[%s2 + $0x240] sm:$0xff]
  %v114 = vld [vmem:[%s2 + $0x248] sm:$0xff]
  %v115 = vld [vmem:[%s2 + $0x250] sm:$0xff]
  %v116 = vld [vmem:[%s2 + $0x258] sm:$0xff]
  %v117 = vld [vmem:[%s2 + $0x260] sm:$0xff]
  %v118 = vld [vmem:[%s2 + $0x268] sm:$0xff]
  %v119 = vld [vmem:[%s2 + $0x270] sm:$0xff]
  %v120 = vld [vmem:[%s2 + $0x278] sm:$0xff]
  %v121 = vld [vmem:[%s2 + $0x280] sm:$0xff]
  %v122 = vld [vmem:[%s2 + $0x288] sm:$0xff]
  %v123 = vld [vmem:[%s2 + $0x290] sm:$0xff]
  %v124 = vld [vmem:[%s2 + $0x298] sm:$0xff]
  %v125 = vld [vmem:[%s2 + $0x2a0] sm:$0xff]
  %v126 = vld [vmem:[%s2 + $0x2a8] sm:$0xff]
  %v127 = vld [vmem:[%s2 + $0x2b0] sm:$0xff]
  %v128 = vld [vmem:[%s2 + $0x2b8] sm:$0xff]
  %v129 = vld [vmem:[%s2 + $0x2c0] sm:$0xff]
  %v130 = vld [vmem:[%s2 + $0x2c8] sm:$0xff]
  %v131 = vld [vmem:[%s2 + $0x2d0] sm:$0xff]
  %v132 = vld [vmem:[%s2 + $0x2d8] sm:$0xff]
  %v133 = vld [vmem:[%s2 + $0x2e0] sm:$0xff]
  %v134 = vld [vmem:[%s2 + $0x2e8] sm:$0xff]
  %v135 = vld [vmem:[%s2 + $0x2f0] sm:$0xff]
  %v136 = vld [vmem:[%s2 + $0x2f8] sm:$0xff]
  %v137 = vld [vmem:[%s2 + $0x300] sm:$0xff]
  %v138 = vld [vmem:[%s2 + $0x308] sm:$0xff]
  %v139 = vld [vmem:[%s2 + $0x310] sm:$0xff]
  %v140 = vld [vmem:[%s2 + $0x318] sm:$0xff]
  %v141 = vld [vmem:[%s2 + $0x320] sm:$0xff]
  %v142 = vld [vmem:[%s2 + $0x328] sm:$0xff]
  %v143 = vld [vmem:[%s2 + $0x330] sm:$0xff]
  %v144 = vld [vmem:[%s2 + $0x338] sm:$0xff]
  %v145 = vld [vmem:[%s2 + $0x340] sm:$0xff]
  %v146 = vld [vmem:[%s2 + $0x348] sm:$0xff]
  %v147 = vld [vmem:[%s2 + $0x350] sm:$0xff]
  %v148 = vld [vmem:[%s2 + $0x358] sm:$0xff]
  %v149 = vld [vmem:[%s2 + $0x360] sm:$0xff]
  %v150 = vld [vmem:[%s2 + $0x368] sm:$0xff]
  %v151 = vld [vmem:[%s2 + $0x370] sm:$0xff]
  %v152 = vld [vmem:[%s2 + $0x378] sm:$0xff]
  %v153 = vld [vmem:[%s2 + $0x380] sm:$0xff]
  %v154 = vld [vmem:[%s2 + $0x388] sm:$0xff]
  %v155 = vld [vmem:[%s2 + $0x390] sm:$0xff]
  %v156 = vld [vmem:[%s2 + $0x398] sm:$0xff]
  %v157 = vld [vmem:[%s2 + $0x3a0] sm:$0xff]
  %v158 = vld [vmem:[%s2 + $0x3a8] sm:$0xff]
  %v159 = vld [vmem:[%s2 + $0x3b0] sm:$0xff]
  %v160 = vld [vmem:[%s2 + $0x3b8] sm:$0xff]
  %v161 = vld [vmem:[%s2 + $0x3c0] sm:$0xff]
  %v162 = vld [vmem:[%s2 + $0x3c8] sm:$0xff]
  %v163 = vld [vmem:[%s2 + $0x3d0] sm:$0xff]
  %v164 = vld [vmem:[%s2 + $0x3d8] sm:$0xff]
  %v165 = vld [vmem:[%s2 + $0x3e0] sm:$0xff]
  %v166 = vld [vmem:[%s2 + $0x3e8] sm:$0xff]
  %v167 = vld [vmem:[%s2 + $0x3f0] sm:$0xff]
  %v168 = vld [vmem:[%s2 + $0x3f8] sm:$0xff]
  %v169 = vld [vmem:[%s2 + $0x400] sm:$0xff]
  %v170 = vld [vmem:[%s2 + $0x408] sm:$0xff]
  %v171 = vld [vmem:[%s2 + $0x410] sm:$0xff]
  %v172 = vld [vmem:[%s2 + $0x418] sm:$0xff]
  %v173 = vld [vmem:[%s2 + $0x420] sm:$0xff]
  %v174 = vld [vmem:[%s2 + $0x428] sm:$0xff]
  %v175 = vld [vmem:[%s2 + $0x430] sm:$0xff]
  %v176 = vld [vmem:[%s2 + $0x438] sm:$0xff]
  %v177 = vld [vmem:[%s2 + $0x440] sm:$0xff]
  %v178 = vld [vmem:[%s2 + $0x448] sm:$0xff]
  %v179 = vld [vmem:[%s2 + $0x450] sm:$0xff]
  %v180 = vld [vmem:[%s2 + $0x458] sm:$0xff]
  %v181 = vld [vmem:[%s2 + $0x460] sm:$0xff]
  %v182 = vld [vmem:[%s2 + $0x468] sm:$0xff]
  %v183 = vld [vmem:[%s2 + $0x470] sm:$0xff]
  %v184 = vld [vmem:[%s2 + $0x478] sm:$0xff]
  %v185 = vld [vmem:[%s2 + $0x480] sm:$0xff]
  %v186 = vld [vmem:[%s2 + $0x488] sm:$0xff]
  %v187 = vld [vmem:[%s2 + $0x490] sm:$0xff]
  %v188 = vld [vmem:[%s2 + $0x498] sm:$0xff]
  %v189 = vld [vmem:[%s2 + $0x4a0] sm:$0xff]
  %v190 = vld [vmem:[%s2 + $0x4a8] sm:$0xff]
  %v191 = vld [vmem:[%s2 + $0x4b0] sm:$0xff]
  %v192 = vld [vmem:[%s2 + $0x4b8] sm:$0xff]
  %v193 = vld [vmem:[%s2 + $0x4c0] sm:$0xff]
  %v194 = vld [vmem:[%s2 + $0x4c8] sm:$0xff]
  %v195 = vld [vmem:[%s2 + $0x4d0] sm:$0xff]
  %v196 = vld [vmem:[%s2 + $0x4d8] sm:$0xff]
  %v197 = vld [vmem:[%s2 + $0x4e0] sm:$0xff]
  %v198 = vld [vmem:[%s2 + $0x4e8] sm:$0xff]
  %v199 = vld [vmem:[%s2 + $0x4f0] sm:$0xff]
  %v200 = vld [vmem:[%s2 + $0x4f8] sm:$0xff]
  %v201 = vld [vmem:[%s2 + $0x500] sm:$0xff]
  %v202 = vld [vmem:[%s2 + $0x508] sm:$0xff]
  %v203 = vld [vmem:[%s2 + $0x510] sm:$0xff]
  %v204 = vld [vmem:[%s2 + $0x518] sm:$0xff]
  %v205 = vld [vmem:[%s2 + $0x520] sm:$0xff]
  %v206 = vld [vmem:[%s2 + $0x528] sm:$0xff]
  %v207 = vld [vmem:[%s2 + $0x530] sm:$0xff]
  %v208 = vld [vmem:[%s2 + $0x538] sm:$0xff]
  %v209 = vld [vmem:[%s2 + $0x540] sm:$0xff]
  %v210 = vld [vmem:[%s2 + $0x548] sm:$0xff]
  %v211 = vld [vmem:[%s2 + $0x550] sm:$0xff]
  %v212 = vld [vmem:[%s2 + $0x558] sm:$0xff]
  %v213 = vld [vmem:[%s2 + $0x560] sm:$0xff]
  %v214 = vld [vmem:[%s2 + $0x568] sm:$0xff]
  %v215 = vld [vmem:[%s2 + $0x570] sm:$0xff]
  %v216 = vld [vmem:[%s2 + $0x578] sm:$0xff]
  %v217 = vld [vmem:[%s2 + $0x580] sm:$0xff]
  %v218 = vld [vmem:[%s2 + $0x588] sm:$0xff]
  %v219 = vld [vmem:[%s2 + $0x590] sm:$0xff]
  %v220 = vld [vmem:[%s2 + $0x598] sm:$0xff]
  %v221 = vld [vmem:[%s2 + $0x5a0] sm:$0xff]
  %v222 = vld [vmem:[%s2 + $0x5a8] sm:$0xff]
  %v223 = vld [vmem:[%s2 + $0x5b0] sm:$0xff]
  %v224 = vld [vmem:[%s2 + $0x5b8] sm:$0xff]
  %v225 = vld [vmem:[%s2 + $0x5c0] sm:$0xff]
  %v226 = vld [vmem:[%s2 + $0x5c8] sm:$0xff]
  %v227 = vld [vmem:[%s2 + $0x5d0] sm:$0xff]
  %v228 = vld [vmem:[%s2 + $0x5d8] sm:$0xff]
  %v229 = vld [vmem:[%s2 + $0x5e0] sm:$0xff]
  %v230 = vld [vmem:[%s2 + $0x5e8] sm:$0xff]
  %v231 = vld [vmem:[%s2 + $0x5f0] sm:$0xff]
  %v232 = vld [vmem:[%s2 + $0x5f8] sm:$0xff]
  %v233 = vld [vmem:[%s2 + $0x600] sm:$0xff]
  %v234 = vld [vmem:[%s2 + $0x608] sm:$0xff]
  %v235 = vld [vmem:[%s2 + $0x610] sm:$0xff]
  %v236 = vld [vmem:[%s2 + $0x618] sm:$0xff]
  %v237 = vld [vmem:[%s2 + $0x620] sm:$0xff]
  %v238 = vld [vmem:[%s2 + $0x628] sm:$0xff]
  %v239 = vld [vmem:[%s2 + $0x630] sm:$0xff]
  %v240 = vld [vmem:[%s2 + $0x638] sm:$0xff]
  %v241 = vld [vmem:[%s2 + $0x640] sm:$0xff]
  %v242 = vld [vmem:[%s2 + $0x648] sm:$0xff]
  %v243 = vld [vmem:[%s2 + $0x650] sm:$0xff]
  %v244 = vld [vmem:[%s2 + $0x658] sm:$0xff]
  %v245 = vld [vmem:[%s2 + $0x660] sm:$0xff]
  %v246 = vld [vmem:[%s2 + $0x668] sm:$0xff]
  %v247 = vld [vmem:[%s2 + $0x670] sm:$0xff]
  %v248 = vld [vmem:[%s2 + $0x678] sm:$0xff]
  %v249 = vld [vmem:[%s2 + $0x680] sm:$0xff]
  %v250 = vld [vmem:[%s2 + $0x688] sm:$0xff]
  %v251 = vld [vmem:[%s2 + $0x690] sm:$0xff]
  %v252 = vld [vmem:[%s2 + $0x698] sm:$0xff]
  %v253 = vld [vmem:[%s2 + $0x6a0] sm:$0xff]
  %v254 = vld [vmem:[%s2 + $0x6a8] sm:$0xff]
  %v255 = vld [vmem:[%s2 + $0x6b0] sm:$0xff]
  %v256 = vld [vmem:[%s2 + $0x6b8] sm:$0xff]
  %v257 = vld [vmem:[%s2 + $0x6c0] sm:$0xff]
  %v258 = vld [vmem:[%s2 + $0x6c8] sm:$0xff]
  %v259 = vld [vmem:[%s2 + $0x6d0] sm:$0xff]
  %v260 = vld [vmem:[%s2 + $0x6d8] sm:$0xff]
  %v261 = vld [vmem:[%s2 + $0x6e0] sm:$0xff]
  %v262 = vld [vmem:[%s2 + $0x6e8] sm:$0xff]
  %v263 = vld [vmem:[%s2 + $0x6f0] sm:$0xff]
  %v264 = vld [vmem:[%s2 + $0x6f8] sm:$0xff]
  %v265 = vld [vmem:[%s2 + $0x700] sm:$0xff]
  %v266 = vld [vmem:[%s2 + $0x708] sm:$0xff]
  %v267 = vld [vmem:[%s2 + $0x710] sm:$0xff]
  %v268 = vld [vmem:[%s2 + $0x718] sm:$0xff]
  %v269 = vld [vmem:[%s2 + $0x720] sm:$0xff]
  %v270 = vld [vmem:[%s2 + $0x728] sm:$0xff]
  %v271 = vld [vmem:[%s2 + $0x730] sm:$0xff]
  %v272 = vld [vmem:[%s2 + $0x738] sm:$0xff]
  %v273 = vld [vmem:[%s2 + $0x740] sm:$0xff]
  %v274 = vld [vmem:[%s2 + $0x748] sm:$0xff]
  %v275 = vld [vmem:[%s2 + $0x750] sm:$0xff]
  %v276 = vld [vmem:[%s2 + $0x758] sm:$0xff]
  %v277 = vld [vmem:[%s2 + $0x760] sm:$0xff]
  %v278 = vld [vmem:[%s2 + $0x768] sm:$0xff]
  %v279 = vld [vmem:[%s2 + $0x770] sm:$0xff]
  %v280 = vld [vmem:[%s2 + $0x778] sm:$0xff]
  %v281 = vld [vmem:[%s2 + $0x780] sm:$0xff]
  %v282 = vld [vmem:[%s2 + $0x788] sm:$0xff]
  %v283 = vld [vmem:[%s2 + $0x790] sm:$0xff]
  %v284 = vld [vmem:[%s2 + $0x798] sm:$0xff]
  %v285 = vld [vmem:[%s2 + $0x7a0] sm:$0xff]
  %v286 = vld [vmem:[%s2 + $0x7a8] sm:$0xff]
  %v287 = vld [vmem:[%s2 + $0x7b0] sm:$0xff]
  %v288 = vld [vmem:[%s2 + $0x7b8] sm:$0xff]
  %v289 = vld [vmem:[%s2 + $0x7c0] sm:$0xff]
  %v290 = vld [vmem:[%s2 + $0x7c8] sm:$0xff]
  %v291 = vld [vmem:[%s2 + $0x7d0] sm:$0xff]
  %v292 = vld [vmem:[%s2 + $0x7d8] sm:$0xff]
  %v293 = vld [vmem:[%s2 + $0x7e0] sm:$0xff]
  %v294 = vld [vmem:[%s2 + $0x7e8] sm:$0xff]
  %v295 = vld [vmem:[%s2 + $0x7f0] sm:$0xff]
  %v296 = vld [vmem:[%s2 + $0x7f8] sm:$0xff]
  %v297 = vld [vmem:[%s2 + $0x800] sm:$0xff]
  %v298 = vld [vmem:[%s2 + $0x808] sm:$0xff]
  %v299 = vld [vmem:[%s2 + $0x810] sm:$0xff]
  %v300 = vld [vmem:[%s2 + $0x818] sm:$0xff]
  %v301 = vld [vmem:[%s2 + $0x820] sm:$0xff]
  %v302 = vld [vmem:[%s2 + $0x828] sm:$0xff]
  %v303 = vld [vmem:[%s2 + $0x830] sm:$0xff]
  %v304 = vld [vmem:[%s2 + $0x838] sm:$0xff]
  %v305 = vld [vmem:[%s2 + $0x840] sm:$0xff]
  %v306 = vld [vmem:[%s2 + $0x848] sm:$0xff]
  %v307 = vld [vmem:[%s2 + $0x850] sm:$0xff]
  %v308 = vld [vmem:[%s2 + $0x858] sm:$0xff]
  %v309 = vld [vmem:[%s2 + $0x860] sm:$0xff]
  %v310 = vld [vmem:[%s2 + $0x868] sm:$0xff]
  %v311 = vld [vmem:[%s2 + $0x870] sm:$0xff]
  %v312 = vld [vmem:[%s2 + $0x878] sm:$0xff]
  %v313 = vld [vmem:[%s2 + $0x880] sm:$0xff]
  %v314 = vld [vmem:[%s2 + $0x888] sm:$0xff]
  %v315 = vld [vmem:[%s2 + $0x890] sm:$0xff]
  %v316 = vld [vmem:[%s2 + $0x898] sm:$0xff]
  %v317 = vld [vmem:[%s2 + $0x8a0] sm:$0xff]
  %v318 = vld [vmem:[%s2 + $0x8a8] sm:$0xff]
  %v319 = vld [vmem:[%s2 + $0x8b0] sm:$0xff]
  %v320 = vld [vmem:[%s2 + $0x8b8] sm:$0xff]
  %v321 = vld [vmem:[%s2 + $0x8c0] sm:$0xff]
  %v322 = vld [vmem:[%s2 + $0x8c8] sm:$0xff]
  %v323 = vld [vmem:[%s2 + $0x8d0] sm:$0xff]
  %v324 = vld [vmem:[%s2 + $0x8d8] sm:$0xff]
  %v325 = vld [vmem:[%s2 + $0x8e0] sm:$0xff]
  %v326 = vld [vmem:[%s2 + $0x8e8] sm:$0xff]
  %v327 = vld [vmem:[%s2 + $0x8f0] sm:$0xff]
  %v328 = vld [vmem:[%s2 + $0x8f8] sm:$0xff]
  %v329 = vld [vmem:[%s2 + $0x900] sm:$0xff]
  %v330 = vld [vmem:[%s2 + $0x908] sm:$0xff]
  %v331 = vld [vmem:[%s2 + $0x910] sm:$0xff]
  %v332 = vld [vmem:[%s2 + $0x918] sm:$0xff]
  %v333 = vld [vmem:[%s2 + $0x920] sm:$0xff]
  %v334 = vld [vmem:[%s2 + $0x928] sm:$0xff]
  %v335 = vld [vmem:[%s2 + $0x930] sm:$0xff]
  %v336 = vld [vmem:[%s2 + $0x938] sm:$0xff]
  %v337 = vld [vmem:[%s2 + $0x940] sm:$0xff]
  %v338 = vld [vmem:[%s2 + $0x948] sm:$0xff]
  %v339 = vld [vmem:[%s2 + $0x950] sm:$0xff]
  %v340 = vld [vmem:[%s2 + $0x958] sm:$0xff]
  %v341 = vld [vmem:[%s2 + $0x960] sm:$0xff]
  %v342 = vld [vmem:[%s2 + $0x968] sm:$0xff]
  %v343 = vld [vmem:[%s2 + $0x970] sm:$0xff]
  %v344 = vld [vmem:[%s2 + $0x978] sm:$0xff]
  %v345 = vld [vmem:[%s2 + $0x980] sm:$0xff]
  %v346 = vld [vmem:[%s2 + $0x988] sm:$0xff]
  %v347 = vld [vmem:[%s2 + $0x990] sm:$0xff]
  %v348 = vld [vmem:[%s2 + $0x998] sm:$0xff]
  %v349 = vld [vmem:[%s2 + $0x9a0] sm:$0xff]
  %v350 = vld [vmem:[%s2 + $0x9a8] sm:$0xff]
  %v351 = vld [vmem:[%s2 + $0x9b0] sm:$0xff]
  %v352 = vld [vmem:[%s2 + $0x9b8] sm:$0xff]
  %v353 = vld [vmem:[%s2 + $0x9c0] sm:$0xff]
  %v354 = vld [vmem:[%s2 + $0x9c8] sm:$0xff]
  %v355 = vld [vmem:[%s2 + $0x9d0] sm:$0xff]
  %v356 = vld [vmem:[%s2 + $0x9d8] sm:$0xff]
  %v357 = vld [vmem:[%s2 + $0x9e0] sm:$0xff]
  %v358 = vld [vmem:[%s2 + $0x9e8] sm:$0xff]
  %v359 = vld [vmem:[%s2 + $0x9f0] sm:$0xff]
  %v360 = vld [vmem:[%s2 + $0x9f8] sm:$0xff]
  %v361 = vld [vmem:[%s2 + $0xa00] sm:$0xff]
  %v362 = vld [vmem:[%s2 + $0xa08] sm:$0xff]
  %v363 = vld [vmem:[%s2 + $0xa10] sm:$0xff]
  %v364 = vld [vmem:[%s2 + $0xa18] sm:$0xff]
  %v365 = vld [vmem:[%s2 + $0xa20] sm:$0xff]
  %v366 = vld [vmem:[%s2 + $0xa28] sm:$0xff]
  %v367 = vld [vmem:[%s2 + $0xa30] sm:$0xff]
  %v368 = vld [vmem:[%s2 + $0xa38] sm:$0xff]
  %v369 = vld [vmem:[%s2 + $0xa40] sm:$0xff]
  %v370 = vld [vmem:[%s2 + $0xa48] sm:$0xff]
  %v371 = vld [vmem:[%s2 + $0xa50] sm:$0xff]
  %v372 = vld [vmem:[%s2 + $0xa58] sm:$0xff]
  %v373 = vld [vmem:[%s2 + $0xa60] sm:$0xff]
  %v374 = vld [vmem:[%s2 + $0xa68] sm:$0xff]
  %v375 = vld [vmem:[%s2 + $0xa70] sm:$0xff]
  %v376 = vld [vmem:[%s2 + $0xa78] sm:$0xff]
  %v377 = vld [vmem:[%s2 + $0xa80] sm:$0xff]
  %v378 = vld [vmem:[%s2 + $0xa88] sm:$0xff]
  %v379 = vld [vmem:[%s2 + $0xa90] sm:$0xff]
  %v380 = vld [vmem:[%s2 + $0xa98] sm:$0xff]
  %v381 = vld [vmem:[%s2 + $0xaa0] sm:$0xff]
  %v382 = vld [vmem:[%s2 + $0xaa8] sm:$0xff]
  %v383 = vld [vmem:[%s2 + $0xab0] sm:$0xff]
  %v384 = vld [vmem:[%s2 + $0xab8] sm:$0xff]
  %v385 = vld [vmem:[%s2 + $0xac0] sm:$0xff]
  %v386 = vld [vmem:[%s2 + $0xac8] sm:$0xff]
  %v387 = vld [vmem:[%s2 + $0xad0] sm:$0xff]
  %v388 = vld [vmem:[%s2 + $0xad8] sm:$0xff]
  %v389 = vld [vmem:[%s2 + $0xae0] sm:$0xff]
  %v390 = vld [vmem:[%s2 + $0xae8] sm:$0xff]
  %v391 = vld [vmem:[%s2 + $0xaf0] sm:$0xff]
  %v392 = vld [vmem:[%s2 + $0xaf8] sm:$0xff]
  %v393 = vld [vmem:[%s2 + $0xb00] sm:$0xff]
  %v394 = vld [vmem:[%s2 + $0xb08] sm:$0xff]
  %v395 = vld [vmem:[%s2 + $0xb10] sm:$0xff]
  %v396 = vld [vmem:[%s2 + $0xb18] sm:$0xff]
  %v397 = vld [vmem:[%s2 + $0xb20] sm:$0xff]
  %v398 = vld [vmem:[%s2 + $0xb28] sm:$0xff]
  %v399 = vld [vmem:[%s2 + $0xb30] sm:$0xff]
  %v400 = vld [vmem:[%s2 + $0xb38] sm:$0xff]
  %v401 = vld [vmem:[%s2 + $0xb40] sm:$0xff]
  %v402 = vld [vmem:[%s2 + $0xb48] sm:$0xff]
  %v403 = vld [vmem:[%s2 + $0xb50] sm:$0xff]
  %v404 = vld [vmem:[%s2 + $0xb58] sm:$0xff]
  %v405 = vld [vmem:[%s2 + $0xb60] sm:$0xff]
  %v406 = vld [vmem:[%s2 + $0xb68] sm:$0xff]
  %v407 = vld [vmem:[%s2 + $0xb70] sm:$0xff]
  %v408 = vld [vmem:[%s2 + $0xb78] sm:$0xff]
  %v409 = vld [vmem:[%s2 + $0xb80] sm:$0xff]
  %v410 = vld [vmem:[%s2 + $0xb88] sm:$0xff]
  %v411 = vld [vmem:[%s2 + $0xb90] sm:$0xff]
  %v412 = vld [vmem:[%s2 + $0xb98] sm:$0xff]
  %v413 = vld [vmem:[%s2 + $0xba0] sm:$0xff]
  %v414 = vld [vmem:[%s2 + $0xba8] sm:$0xff]
  %v415 = vld [vmem:[%s2 + $0xbb0] sm:$0xff]
  %v416 = vld [vmem:[%s2 + $0xbb8] sm:$0xff]
  %v417 = vld [vmem:[%s2 + $0xbc0] sm:$0xff]
  %v418 = vld [vmem:[%s2 + $0xbc8] sm:$0xff]
  %v419 = vld [vmem:[%s2 + $0xbd0] sm:$0xff]
  %v420 = vld [vmem:[%s2 + $0xbd8] sm:$0xff]
  %v421 = vld [vmem:[%s2 + $0xbe0] sm:$0xff]
  %v422 = vld [vmem:[%s2 + $0xbe8] sm:$0xff]
  %v423 = vld [vmem:[%s2 + $0xbf0] sm:$0xff]
  %v424 = vld [vmem:[%s2 + $0xbf8] sm:$0xff]
  %v425 = vld [vmem:[%s2 + $0xc00] sm:$0xff]
  %v426 = vld [vmem:[%s2 + $0xc08] sm:$0xff]
  %v427 = vld [vmem:[%s2 + $0xc10] sm:$0xff]
  %v428 = vld [vmem:[%s2 + $0xc18] sm:$0xff]
  %v429 = vld [vmem:[%s2 + $0xc20] sm:$0xff]
  %v430 = vld [vmem:[%s2 + $0xc28] sm:$0xff]
  %v431 = vld [vmem:[%s2 + $0xc30] sm:$0xff]
  %v432 = vld [vmem:[%s2 + $0xc38] sm:$0xff]
  %v433 = vld [vmem:[%s2 + $0xc40] sm:$0xff]
  %v434 = vld [vmem:[%s2 + $0xc48] sm:$0xff]
  %v435 = vld [vmem:[%s2 + $0xc50] sm:$0xff]
  %v436 = vld [vmem:[%s2 + $0xc58] sm:$0xff]
  %v437 = vld [vmem:[%s2 + $0xc60] sm:$0xff]
  %v438 = vld [vmem:[%s2 + $0xc68] sm:$0xff]
  %v439 = vld [vmem:[%s2 + $0xc70] sm:$0xff]
  %v440 = vld [vmem:[%s2 + $0xc78] sm:$0xff]
  %v441 = vld [vmem:[%s2 + $0xc80] sm:$0xff]
  %v442 = vld [vmem:[%s2 + $0xc88] sm:$0xff]
  %v443 = vld [vmem:[%s2 + $0xc90] sm:$0xff]
  %v444 = vld [vmem:[%s2 + $0xc98] sm:$0xff]
  %v445 = vld [vmem:[%s2 + $0xca0] sm:$0xff]
  %v446 = vld [vmem:[%s2 + $0xca8] sm:$0xff]
  %v447 = vld [vmem:[%s2 + $0xcb0] sm:$0xff]
  %v448 = vld [vmem:[%s2 + $0xcb8] sm:$0xff]
  %v449 = vld [vmem:[%s2 + $0xcc0] sm:$0xff]
  %v450 = vld [vmem:[%s2 + $0xcc8] sm:$0xff]
  %v451 = vld [vmem:[%s2 + $0xcd0] sm:$0xff]
  %v452 = vld [vmem:[%s2 + $0xcd8] sm:$0xff]
  %v453 = vld [vmem:[%s2 + $0xce0] sm:$0xff]
  %v454 = vld [vmem:[%s2 + $0xce8] sm:$0xff]
  %v455 = vld [vmem:[%s2 + $0xcf0] sm:$0xff]
  %v456 = vld [vmem:[%s2 + $0xcf8] sm:$0xff]
  %v457 = vld [vmem:[%s2 + $0xd00] sm:$0xff]
  %v458 = vld [vmem:[%s2 + $0xd08] sm:$0xff]
  %v459 = vld [vmem:[%s2 + $0xd10] sm:$0xff]
  %v460 = vld [vmem:[%s2 + $0xd18] sm:$0xff]
  %v461 = vld [vmem:[%s2 + $0xd20] sm:$0xff]
  %v462 = vld [vmem:[%s2 + $0xd28] sm:$0xff]
  %v463 = vld [vmem:[%s2 + $0xd30] sm:$0xff]
  %v464 = vld [vmem:[%s2 + $0xd38] sm:$0xff]
  %v465 = vld [vmem:[%s2 + $0xd40] sm:$0xff]
  %v466 = vld [vmem:[%s2 + $0xd48] sm:$0xff]
  %v467 = vld [vmem:[%s2 + $0xd50] sm:$0xff]
  %v468 = vld [vmem:[%s2 + $0xd58] sm:$0xff]
  %v469 = vld [vmem:[%s2 + $0xd60] sm:$0xff]
  %v470 = vld [vmem:[%s2 + $0xd68] sm:$0xff]
  %v471 = vld [vmem:[%s2 + $0xd70] sm:$0xff]
  %v472 = vld [vmem:[%s2 + $0xd78] sm:$0xff]
  %v473 = vld [vmem:[%s2 + $0xd80] sm:$0xff]
  %v474 = vld [vmem:[%s2 + $0xd88] sm:$0xff]
  %v475 = vld [vmem:[%s2 + $0xd90] sm:$0xff]
  %v476 = vld [vmem:[%s2 + $0xd98] sm:$0xff]
  %v477 = vld [vmem:[%s2 + $0xda0] sm:$0xff]
  %v478 = vld [vmem:[%s2 + $0xda8] sm:$0xff]
  %v479 = vld [vmem:[%s2 + $0xdb0] sm:$0xff]
  %v480 = vld [vmem:[%s2 + $0xdb8] sm:$0xff]
  %v481 = vld [vmem:[%s2 + $0xdc0] sm:$0xff]
  %v482 = vld [vmem:[%s2 + $0xdc8] sm:$0xff]
  %v483 = vld [vmem:[%s2 + $0xdd0] sm:$0xff]
  %v484 = vld [vmem:[%s2 + $0xdd8] sm:$0xff]
  %v485 = vld [vmem:[%s2 + $0xde0] sm:$0xff]
  %v486 = vld [vmem:[%s2 + $0xde8] sm:$0xff]
  %v487 = vld [vmem:[%s2 + $0xdf0] sm:$0xff]
  %v488 = vld [vmem:[%s2 + $0xdf8] sm:$0xff]
  %v489 = vld [vmem:[%s2 + $0xe00] sm:$0xff]
  %v490 = vld [vmem:[%s2 + $0xe08] sm:$0xff]
  %v491 = vld [vmem:[%s2 + $0xe10] sm:$0xff]
  %v492 = vld [vmem:[%s2 + $0xe18] sm:$0xff]
  %v493 = vld [vmem:[%s2 + $0xe20] sm:$0xff]
  %v494 = vld [vmem:[%s2 + $0xe28] sm:$0xff]
  %v495 = vld [vmem:[%s2 + $0xe30] sm:$0xff]
  %v496 = vld [vmem:[%s2 + $0xe38] sm:$0xff]
  %v497 = vld [vmem:[%s2 + $0xe40] sm:$0xff]
  %v498 = vld [vmem:[%s2 + $0xe48] sm:$0xff]
  %v499 = vld [vmem:[%s2 + $0xe50] sm:$0xff]
  %v500 = vld [vmem:[%s2 + $0xe58] sm:$0xff]
  %v501 = vld [vmem:[%s2 + $0xe60] sm:$0xff]
  %v502 = vld [vmem:[%s2 + $0xe68] sm:$0xff]
  %v503 = vld [vmem:[%s2 + $0xe70] sm:$0xff]
  %v504 = vld [vmem:[%s2 + $0xe78] sm:$0xff]
  %v505 = vld [vmem:[%s2 + $0xe80] sm:$0xff]
  %v506 = vld [vmem:[%s2 + $0xe88] sm:$0xff]
  %v507 = vld [vmem:[%s2 + $0xe90] sm:$0xff]
  %v508 = vld [vmem:[%s2 + $0xe98] sm:$0xff]
  %v509 = vld [vmem:[%s2 + $0xea0] sm:$0xff]
  %v510 = vld [vmem:[%s2 + $0xea8] sm:$0xff]
  %v511 = vld [vmem:[%s2 + $0xeb0] sm:$0xff]
  %v512 = vld [vmem:[%s2 + $0xeb8] sm:$0xff]
  %v513 = vld [vmem:[%s2 + $0xec0] sm:$0xff]
  %v514 = vld [vmem:[%s2 + $0xec8] sm:$0xff]
  %v515 = vld [vmem:[%s2 + $0xed0] sm:$0xff]
  %v516 = vld [vmem:[%s2 + $0xed8] sm:$0xff]
  %v517 = vld [vmem:[%s2 + $0xee0] sm:$0xff]
  %v518 = vld [vmem:[%s2 + $0xee8] sm:$0xff]
  %v519 = vld [vmem:[%s2 + $0xef0] sm:$0xff]
  %v520 = vld [vmem:[%s2 + $0xef8] sm:$0xff]
  %v521 = vld [vmem:[%s2 + $0xf00] sm:$0xff]
  %v522 = vld [vmem:[%s2 + $0xf08] sm:$0xff]
  %v523 = vld [vmem:[%s2 + $0xf10] sm:$0xff]
  %v524 = vld [vmem:[%s2 + $0xf18] sm:$0xff]
  %v525 = vld [vmem:[%s2 + $0xf20] sm:$0xff]
  %v526 = vld [vmem:[%s2 + $0xf28] sm:$0xff]
  %v527 = vld [vmem:[%s2 + $0xf30] sm:$0xff]
  %v528 = vld [vmem:[%s2 + $0xf38] sm:$0xff]
  %v529 = vld [vmem:[%s2 + $0xf40] sm:$0xff]
  %v530 = vld [vmem:[%s2 + $0xf48] sm:$0xff]
  %v531 = vld [vmem:[%s2 + $0xf50] sm:$0xff]
  %v532 = vld [vmem:[%s2 + $0xf58] sm:$0xff]
  %v533 = vld [vmem:[%s2 + $0xf60] sm:$0xff]
  %v534 = vld [vmem:[%s2 + $0xf68] sm:$0xff]
  %v535 = vld [vmem:[%s2 + $0xf70] sm:$0xff]
  %v536 = vld [vmem:[%s2 + $0xf78] sm:$0xff]
  %v537 = vld [vmem:[%s2 + $0xf80] sm:$0xff]
  %v538 = vld [vmem:[%s2 + $0xf88] sm:$0xff]
  %v539 = vld [vmem:[%s2 + $0xf90] sm:$0xff]
  %v540 = vld [vmem:[%s2 + $0xf98] sm:$0xff]
  %v541 = vld [vmem:[%s2 + $0xfa0] sm:$0xff]
  %v542 = vld [vmem:[%s2 + $0xfa8] sm:$0xff]
  %v543 = vld [vmem:[%s2 + $0xfb0] sm:$0xff]
  %v544 = vld [vmem:[%s2 + $0xfb8] sm:$0xff]
  %v545 = vld [vmem:[%s2 + $0xfc0] sm:$0xff]
  %v546 = vld [vmem:[%s2 + $0xfc8] sm:$0xff]
  %v547 = vld [vmem:[%s2 + $0xfd0] sm:$0xff]
  %v548 = vld [vmem:[%s2 + $0xfd8] sm:$0xff]
  %v549 = vld [vmem:[%s2 + $0xfe0] sm:$0xff]
  %v550 = vld [vmem:[%s2 + $0xfe8] sm:$0xff]
  %v551 = vld [vmem:[%s2 + $0xff0] sm:$0xff]
  %v552 = vld [vmem:[%s2 + $0xff8] sm:$0xff]
  %v553 = vld [vmem:[%s2 + $0x1000] sm:$0xff]
  %v554 = vld [vmem:[%s2 + $0x1008] sm:$0xff]
  %v555 = vld [vmem:[%s2 + $0x1010] sm:$0xff]
  %v556 = vld [vmem:[%s2 + $0x1018] sm:$0xff]
  %v557 = vld [vmem:[%s2 + $0x1020] sm:$0xff]
  %v558 = vld [vmem:[%s2 + $0x1028] sm:$0xff]
  %v559 = vld [vmem:[%s2 + $0x1030] sm:$0xff]
  %v560 = vld [vmem:[%s2 + $0x1038] sm:$0xff]
  %v561 = vld [vmem:[%s2 + $0x1040] sm:$0xff]
  %v562 = vld [vmem:[%s2 + $0x1048] sm:$0xff]
  %v563 = vld [vmem:[%s2 + $0x1050] sm:$0xff]
  %v564 = vld [vmem:[%s2 + $0x1058] sm:$0xff]
  %v565 = vld [vmem:[%s2 + $0x1060] sm:$0xff]
  %v566 = vld [vmem:[%s2 + $0x1068] sm:$0xff]
  %v567 = vld [vmem:[%s2 + $0x1070] sm:$0xff]
  %v568 = vld [vmem:[%s2 + $0x1078] sm:$0xff]
  %v569 = vld [vmem:[%s2 + $0x1080] sm:$0xff]
  %v570 = vld [vmem:[%s2 + $0x1088] sm:$0xff]
  %v571 = vld [vmem:[%s2 + $0x1090] sm:$0xff]
  %v572 = vld [vmem:[%s2 + $0x1098] sm:$0xff]
  %v573 = vld [vmem:[%s2 + $0x10a0] sm:$0xff]
  %v574 = vld [vmem:[%s2 + $0x10a8] sm:$0xff]
  %v575 = vld [vmem:[%s2 + $0x10b0] sm:$0xff]
  %v576 = vld [vmem:[%s2 + $0x10b8] sm:$0xff]
  %v577 = vld [vmem:[%s2 + $0x10c0] sm:$0xff]
  %v578 = vld [vmem:[%s2 + $0x10c8] sm:$0xff]
  %v579 = vld [vmem:[%s2 + $0x10d0] sm:$0xff]
  %v580 = vld [vmem:[%s2 + $0x10d8] sm:$0xff]
  %v581 = vld [vmem:[%s2 + $0x10e0] sm:$0xff]
  %v582 = vld [vmem:[%s2 + $0x10e8] sm:$0xff]
  %v583 = vld [vmem:[%s2 + $0x10f0] sm:$0xff]
  %v584 = vld [vmem:[%s2 + $0x10f8] sm:$0xff]
  %v585 = vld [vmem:[%s2 + $0x1100] sm:$0xff]
  %v586 = vld [vmem:[%s2 + $0x1108] sm:$0xff]
  %v587 = vld [vmem:[%s2 + $0x1110] sm:$0xff]
  %v588 = vld [vmem:[%s2 + $0x1118] sm:$0xff]
  %v589 = vld [vmem:[%s2 + $0x1120] sm:$0xff]
  %v590 = vld [vmem:[%s2 + $0x1128] sm:$0xff]
  %v591 = vld [vmem:[%s2 + $0x1130] sm:$0xff]
  %v592 = vld [vmem:[%s2 + $0x1138] sm:$0xff]
  %v593 = vld [vmem:[%s2 + $0x1140] sm:$0xff]
  %v594 = vld [vmem:[%s2 + $0x1148] sm:$0xff]
  %v595 = vld [vmem:[%s2 + $0x1150] sm:$0xff]
  %v596 = vld [vmem:[%s2 + $0x1158] sm:$0xff]
  %v597 = vld [vmem:[%s2 + $0x1160] sm:$0xff]
  %v598 = vld [vmem:[%s2 + $0x1168] sm:$0xff]
  %v599 = vld [vmem:[%s2 + $0x1170] sm:$0xff]
  %v600 = vld [vmem:[%s2 + $0x1178] sm:$0xff]
  %v601 = vld [vmem:[%s2 + $0x1180] sm:$0xff]
  %v602 = vld [vmem:[%s2 + $0x1188] sm:$0xff]
  %v603 = vld [vmem:[%s2 + $0x1190] sm:$0xff]
  %v604 = vld [vmem:[%s2 + $0x1198] sm:$0xff]
  %v605 = vld [vmem:[%s2 + $0x11a0] sm:$0xff]
  %v606 = vld [vmem:[%s2 + $0x11a8] sm:$0xff]
  %v607 = vld [vmem:[%s2 + $0x11b0] sm:$0xff]
  %v608 = vld [vmem:[%s2 + $0x11b8] sm:$0xff]
  %v609 = vld [vmem:[%s2 + $0x11c0] sm:$0xff]
  %v610 = vld [vmem:[%s2 + $0x11c8] sm:$0xff]
  %v611 = vld [vmem:[%s2 + $0x11d0] sm:$0xff]
  %v612 = vld [vmem:[%s2 + $0x11d8] sm:$0xff]
  %v613 = vld [vmem:[%s2 + $0x11e0] sm:$0xff]
  %v614 = vld [vmem:[%s2 + $0x11e8] sm:$0xff]
  %v615 = vld [vmem:[%s2 + $0x11f0] sm:$0xff]
  %v616 = vld [vmem:[%s2 + $0x11f8] sm:$0xff]
  %v617 = vld [vmem:[%s3] sm:$0x1]
  %v619 = vlaneseq
  %v620 = vshrl.u32 %v619, 7
  %v621 = vsub.s32 0, %v620
  %v622 = vrot.slane %v617, %v621
  %v633 = vcombine.high %v32, %v32
  %v635 = vunpack.c.l.s4 1983009808
  %v636 = vunpack.c.0.s8 %v635
  %v637 = vlaneseq
  %v638 = vshrl.u32 %v637, 7
  %v639 = vsub.s32 %v636, %v638
  %v640 = vrot.slane %v32, %v639
  %v642 = vunpack.c.l.s4 1983009808
  %v643 = vunpack.c.0.s8 %v642
  %v644 = vlaneseq
  %v645 = vshrl.u32 %v644, 7
  %v646 = vsub.s32 %v643, %v645
  %v647 = vrot.slane %v633, %v646
  %v648 = vcombine.high %v640, %v640
  %v649 = vcombine.high %v647, %v647
  %v650 = vcombine.high %v33, %v33
  %v652 = vunpack.c.l.s4 1983009808
  %v653 = vunpack.c.0.s8 %v652
  %v654 = vlaneseq
  %v655 = vshrl.u32 %v654, 7
  %v656 = vsub.s32 %v653, %v655
  %v657 = vrot.slane %v33, %v656
  %v659 = vunpack.c.l.s4 1983009808
  %v660 = vunpack.c.0.s8 %v659
  %v661 = vlaneseq
  %v662 = vshrl.u32 %v661, 7
  %v663 = vsub.s32 %v660, %v662
  %v664 = vrot.slane %v650, %v663
  %v665 = vcombine.high %v657, %v657
  %v666 = vcombine.high %v664, %v664
  %v667 = vcombine.high %v34, %v34
  %v669 = vunpack.c.l.s4 1983009808
  %v670 = vunpack.c.0.s8 %v669
  %v671 = vlaneseq
  %v672 = vshrl.u32 %v671, 7
  %v673 = vsub.s32 %v670, %v672
  %v674 = vrot.slane %v34, %v673
  %v676 = vunpack.c.l.s4 1983009808
  %v677 = vunpack.c.0.s8 %v676
  %v678 = vlaneseq
  %v679 = vshrl.u32 %v678, 7
  %v680 = vsub.s32 %v677, %v679
  %v681 = vrot.slane %v667, %v680
  %v682 = vcombine.high %v674, %v674
  %v683 = vcombine.high %v681, %v681
  %v684 = vcombine.high %v35, %v35
  %v686 = vunpack.c.l.s4 1983009808
  %v687 = vunpack.c.0.s8 %v686
  %v688 = vlaneseq
  %v689 = vshrl.u32 %v688, 7
  %v690 = vsub.s32 %v687, %v689
  %v691 = vrot.slane %v35, %v690
  %v693 = vunpack.c.l.s4 1983009808
  %v694 = vunpack.c.0.s8 %v693
  %v695 = vlaneseq
  %v696 = vshrl.u32 %v695, 7
  %v697 = vsub.s32 %v694, %v696
  %v698 = vrot.slane %v684, %v697
  %v699 = vcombine.high %v691, %v691
  %v700 = vcombine.high %v698, %v698
  %v701 = vcombine.high %v36, %v36
  %v703 = vunpack.c.l.s4 1983009808
  %v704 = vunpack.c.0.s8 %v703
  %v705 = vlaneseq
  %v706 = vshrl.u32 %v705, 7
  %v707 = vsub.s32 %v704, %v706
  %v708 = vrot.slane %v36, %v707
  %v710 = vunpack.c.l.s4 1983009808
  %v711 = vunpack.c.0.s8 %v710
  %v712 = vlaneseq
  %v713 = vshrl.u32 %v712, 7
  %v714 = vsub.s32 %v711, %v713
  %v715 = vrot.slane %v701, %v714
  %v716 = vcombine.high %v708, %v708
  %v717 = vcombine.high %v715, %v715
  %v718 = vcombine.high %v37, %v37
  %v720 = vunpack.c.l.s4 1983009808
  %v721 = vunpack.c.0.s8 %v720
  %v722 = vlaneseq
  %v723 = vshrl.u32 %v722, 7
  %v724 = vsub.s32 %v721, %v723
  %v725 = vrot.slane %v37, %v724
  %v727 = vunpack.c.l.s4 1983009808
  %v728 = vunpack.c.0.s8 %v727
  %v729 = vlaneseq
  %v730 = vshrl.u32 %v729, 7
  %v731 = vsub.s32 %v728, %v730
  %v732 = vrot.slane %v718, %v731
  %v733 = vcombine.high %v725, %v725
  %v734 = vcombine.high %v732, %v732
  %v735 = vcombine.high %v38, %v38
  %v737 = vunpack.c.l.s4 1983009808
  %v738 = vunpack.c.0.s8 %v737
  %v739 = vlaneseq
  %v740 = vshrl.u32 %v739, 7
  %v741 = vsub.s32 %v738, %v740
  %v742 = vrot.slane %v38, %v741
  %v744 = vunpack.c.l.s4 1983009808
  %v745 = vunpack.c.0.s8 %v744
  %v746 = vlaneseq
  %v747 = vshrl.u32 %v746, 7
  %v748 = vsub.s32 %v745, %v747
  %v749 = vrot.slane %v735, %v748
  %v750 = vcombine.high %v742, %v742
  %v751 = vcombine.high %v749, %v749
  %v752 = vcombine.high %v39, %v39
  %v754 = vunpack.c.l.s4 1983009808
  %v755 = vunpack.c.0.s8 %v754
  %v756 = vlaneseq
  %v757 = vshrl.u32 %v756, 7
  %v758 = vsub.s32 %v755, %v757
  %v759 = vrot.slane %v39, %v758
  %v761 = vunpack.c.l.s4 1983009808
  %v762 = vunpack.c.0.s8 %v761
  %v763 = vlaneseq
  %v764 = vshrl.u32 %v763, 7
  %v765 = vsub.s32 %v762, %v764
  %v766 = vrot.slane %v752, %v765
  %v767 = vcombine.high %v759, %v759
  %v768 = vcombine.high %v766, %v766
  %v769 = vcombine.high %v40, %v40
  %v771 = vunpack.c.l.s4 1983009808
  %v772 = vunpack.c.0.s8 %v771
  %v773 = vlaneseq
  %v774 = vshrl.u32 %v773, 7
  %v775 = vsub.s32 %v772, %v774
  %v776 = vrot.slane %v40, %v775
  %v778 = vunpack.c.l.s4 1983009808
  %v779 = vunpack.c.0.s8 %v778
  %v780 = vlaneseq
  %v781 = vshrl.u32 %v780, 7
  %v782 = vsub.s32 %v779, %v781
  %v783 = vrot.slane %v769, %v782
  %v784 = vcombine.high %v776, %v776
  %v785 = vcombine.high %v783, %v783
  %822 = vmatprep.subr.mxu0 0.0
  %823 = vmatpush1.msra.mxu0 %v41
  %824 = vmatprep.subr.mxu0 0.0
  %825 = vmatpush1.msra.mxu0 %v42
  %826 = vmatprep.subr.mxu0 0.0
  %827 = vmatpush1.msra.mxu0 %v43
  %828 = vmatprep.subr.mxu0 0.0
  %829 = vmatpush1.msra.mxu0 %v44
  %830 = vmatprep.subr.mxu0 0.0
  %831 = vmatpush1.msra.mxu0 %v45
  %832 = vmatprep.subr.mxu0 0.0
  %833 = vmatpush1.msra.mxu0 %v46
  %834 = vmatprep.subr.mxu0 0.0
  %835 = vmatpush1.msra.mxu0 %v47
  %836 = vmatprep.subr.mxu0 0.0
  %837 = vmatpush1.msra.mxu0 %v48
  %838 = vmatprep.subr.mxu0 0.0
  %839 = vmatpush1.msra.mxu0 %v49
  %840 = vmatprep.subr.mxu0 0.0
  %841 = vmatpush1.msra.mxu0 %v50
  %842 = vmatprep.subr.mxu0 0.0
  %843 = vmatpush1.msra.mxu0 %v51
  %844 = vmatprep.subr.mxu0 0.0
  %845 = vmatpush1.msra.mxu0 %v52
  %846 = vmatprep.subr.mxu0 0.0
  %847 = vmatpush1.msra.mxu0 %v53
  %848 = vmatprep.subr.mxu0 0.0
  %849 = vmatpush1.msra.mxu0 %v54
  %850 = vmatprep.subr.mxu0 0.0
  %851 = vmatpush1.msra.mxu0 %v55
  %852 = vmatprep.subr.mxu0 0.0
  %853 = vmatpush1.msra.mxu0 %v56
  %854 = vmatprep.subr.mxu0 0.0
  %855 = vmatpush1.msra.mxu0 %v57
  %856 = vmatprep.subr.mxu0 0.0
  %857 = vmatpush1.msra.mxu0 %v58
  %858 = vmatprep.subr.mxu0 0.0
  %859 = vmatpush1.msra.mxu0 %v59
  %860 = vmatprep.subr.mxu0 0.0
  %861 = vmatpush1.msra.mxu0 %v60
  %862 = vmatprep.subr.mxu0 0.0
  %863 = vmatpush1.msra.mxu0 %v61
  %864 = vmatprep.subr.mxu0 0.0
  %865 = vmatpush1.msra.mxu0 %v62
  %866 = vmatprep.subr.mxu0 0.0
  %867 = vmatpush1.msra.mxu0 %v63
  %868 = vmatprep.subr.mxu0 0.0
  %869 = vmatpush1.msra.mxu0 %v64
  %870 = vmatprep.subr.mxu0 0.0
  %871 = vmatpush1.msra.mxu0 %v65
  %872 = vmatprep.subr.mxu0 0.0
  %873 = vmatpush1.msra.mxu0 %v66
  %874 = vmatprep.subr.mxu0 0.0
  %875 = vmatpush1.msra.mxu0 %v67
  %876 = vmatprep.subr.mxu0 0.0
  %877 = vmatpush1.msra.mxu0 %v68
  %878 = vmatprep.subr.mxu0 0.0
  %879 = vmatpush1.msra.mxu0 %v69
  %880 = vmatprep.subr.mxu0 0.0
  %881 = vmatpush1.msra.mxu0 %v70
  %882 = vmatprep.subr.mxu0 0.0
  %883 = vmatpush1.msra.mxu0 %v71
  %884 = vmatprep.subr.mxu0 0.0
  %885 = vmatpush1.msra.mxu0 %v72
  %886 = vmatprep.mubr.f32.mxu0 %v648
  %887 = vmatmul.mubr.f32.gmra.mrb[0].mxu0 %v640
  %v888 = vpop.f32.mrb[0].mxu0
  %v889 = vadd.f32 %v622, %v888
  %v890 = vpop.f32.mrb[0].mxu0
  %891 = vdwg.mxu0
  %892 = vmatprep.subr.mxu0 0.0
  %893 = vmatpush1.msra.mxu0 %v73
  %894 = vmatprep.subr.mxu0 0.0
  %895 = vmatpush1.msra.mxu0 %v74
  %896 = vmatprep.subr.mxu0 0.0
  %897 = vmatpush1.msra.mxu0 %v75
  %898 = vmatprep.subr.mxu0 0.0
  %899 = vmatpush1.msra.mxu0 %v76
  %900 = vmatprep.subr.mxu0 0.0
  %901 = vmatpush1.msra.mxu0 %v77
  %902 = vmatprep.subr.mxu0 0.0
  %903 = vmatpush1.msra.mxu0 %v78
  %904 = vmatprep.subr.mxu0 0.0
  %905 = vmatpush1.msra.mxu0 %v79
  %906 = vmatprep.subr.mxu0 0.0
  %907 = vmatpush1.msra.mxu0 %v80
  %908 = vmatprep.subr.mxu0 0.0
  %909 = vmatpush1.msra.mxu0 %v81
  %910 = vmatprep.subr.mxu0 0.0
  %911 = vmatpush1.msra.mxu0 %v82
  %912 = vmatprep.subr.mxu0 0.0
  %913 = vmatpush1.msra.mxu0 %v83
  %914 = vmatprep.subr.mxu0 0.0
  %915 = vmatpush1.msra.mxu0 %v84
  %916 = vmatprep.subr.mxu0 0.0
  %917 = vmatpush1.msra.mxu0 %v85
  %918 = vmatprep.subr.mxu0 0.0
  %919 = vmatpush1.msra.mxu0 %v86
  %920 = vmatprep.subr.mxu0 0.0
  %921 = vmatpush1.msra.mxu0 %v87
  %922 = vmatprep.subr.mxu0 0.0
  %923 = vmatpush1.msra.mxu0 %v88
  %924 = vmatprep.subr.mxu0 0.0
  %925 = vmatpush1.msra.mxu0 %v89
  %926 = vmatprep.subr.mxu0 0.0
  %927 = vmatpush1.msra.mxu0 %v90
  %928 = vmatprep.subr.mxu0 0.0
  %929 = vmatpush1.msra.mxu0 %v91
  %930 = vmatprep.subr.mxu0 0.0
  %931 = vmatpush1.msra.mxu0 %v92
  %932 = vmatprep.subr.mxu0 0.0
  %933 = vmatpush1.msra.mxu0 %v93
  %934 = vmatprep.subr.mxu0 0.0
  %935 = vmatpush1.msra.mxu0 %v94
  %936 = vmatprep.subr.mxu0 0.0
  %937 = vmatpush1.msra.mxu0 %v95
  %938 = vmatprep.subr.mxu0 0.0
  %939 = vmatpush1.msra.mxu0 %v96
  %940 = vmatprep.subr.mxu0 0.0
  %941 = vmatpush1.msra.mxu0 %v97
  %942 = vmatprep.subr.mxu0 0.0
  %943 = vmatpush1.msra.mxu0 %v98
  %944 = vmatprep.subr.mxu0 0.0
  %945 = vmatpush1.msra.mxu0 %v99
  %946 = vmatprep.subr.mxu0 0.0
  %947 = vmatpush1.msra.mxu0 %v100
  %948 = vmatprep.subr.mxu0 0.0
  %949 = vmatpush1.msra.mxu0 %v101
  %950 = vmatprep.subr.mxu0 0.0
  %951 = vmatpush1.msra.mxu0 %v102
  %952 = vmatprep.subr.mxu0 0.0
  %953 = vmatpush1.msra.mxu0 %v103
  %954 = vmatprep.subr.mxu0 0.0
  %955 = vmatpush1.msra.mxu0 %v104
  %956 = vmatprep.mubr.f32.mxu0 %v649
  %957 = vmatmul.mubr.f32.gmra.mrb[0].mxu0 %v647
  %v958 = vpop.f32.mrb[0].mxu0
  %v959 = vadd.f32 %v889, %v958
  %v960 = vpop.f32.mrb[0].mxu0
  %961 = vdwg.mxu0
  %962 = vmatprep.subr.mxu0 0.0
  %963 = vmatpush1.msra.mxu0 %v105
  %964 = vmatprep.subr.mxu0 0.0
  %965 = vmatpush1.msra.mxu0 %v106
  %966 = vmatprep.subr.mxu0 0.0
  %967 = vmatpush1.msra.mxu0 %v107
  %968 = vmatprep.subr.mxu0 0.0
  %969 = vmatpush1.msra.mxu0 %v108
  %970 = vmatprep.subr.mxu0 0.0
  %971 = vmatpush1.msra.mxu0 %v109
  %972 = vmatprep.subr.mxu0 0.0
  %973 = vmatpush1.msra.mxu0 %v110
  %974 = vmatprep.subr.mxu0 0.0
  %975 = vmatpush1.msra.mxu0 %v111
  %976 = vmatprep.subr.mxu0 0.0
  %977 = vmatpush1.msra.mxu0 %v112
  %978 = vmatprep.subr.mxu0 0.0
  %979 = vmatpush1.msra.mxu0 %v113
  %980 = vmatprep.subr.mxu0 0.0
  %981 = vmatpush1.msra.mxu0 %v114
  %982 = vmatprep.subr.mxu0 0.0
  %983 = vmatpush1.msra.mxu0 %v115
  %984 = vmatprep.subr.mxu0 0.0
  %985 = vmatpush1.msra.mxu0 %v116
  %986 = vmatprep.subr.mxu0 0.0
  %987 = vmatpush1.msra.mxu0 %v117
  %988 = vmatprep.subr.mxu0 0.0
  %989 = vmatpush1.msra.mxu0 %v118
  %990 = vmatprep.subr.mxu0 0.0
  %991 = vmatpush1.msra.mxu0 %v119
  %992 = vmatprep.subr.mxu0 0.0
  %993 = vmatpush1.msra.mxu0 %v120
  %994 = vmatprep.subr.mxu0 0.0
  %995 = vmatpush1.msra.mxu0 %v121
  %996 = vmatprep.subr.mxu0 0.0
  %997 = vmatpush1.msra.mxu0 %v122
  %998 = vmatprep.subr.mxu0 0.0
  %999 = vmatpush1.msra.mxu0 %v123
  %1000 = vmatprep.subr.mxu0 0.0
  %1001 = vmatpush1.msra.mxu0 %v124
  %1002 = vmatprep.subr.mxu0 0.0
  %1003 = vmatpush1.msra.mxu0 %v125
  %1004 = vmatprep.subr.mxu0 0.0
  %1005 = vmatpush1.msra.mxu0 %v126
  %1006 = vmatprep.subr.mxu0 0.0
  %1007 = vmatpush1.msra.mxu0 %v127
  %1008 = vmatprep.subr.mxu0 0.0
  %1009 = vmatpush1.msra.mxu0 %v128
  %1010 = vmatprep.subr.mxu0 0.0
  %1011 = vmatpush1.msra.mxu0 %v129
  %1012 = vmatprep.subr.mxu0 0.0
  %1013 = vmatpush1.msra.mxu0 %v130
  %1014 = vmatprep.subr.mxu0 0.0
  %1015 = vmatpush1.msra.mxu0 %v131
  %1016 = vmatprep.subr.mxu0 0.0
  %1017 = vmatpush1.msra.mxu0 %v132
  %1018 = vmatprep.subr.mxu0 0.0
  %1019 = vmatpush1.msra.mxu0 %v133
  %1020 = vmatprep.subr.mxu0 0.0
  %1021 = vmatpush1.msra.mxu0 %v134
  %1022 = vmatprep.subr.mxu0 0.0
  %1023 = vmatpush1.msra.mxu0 %v135
  %1024 = vmatprep.subr.mxu0 0.0
  %1025 = vmatpush1.msra.mxu0 %v136
  %1026 = vmatprep.mubr.f32.mxu0 %v665
  %1027 = vmatmul.mubr.f32.gmra.mrb[0].mxu0 %v657
  %v1028 = vpop.f32.mrb[0].mxu0
  %v1029 = vadd.f32 %v959, %v1028
  %v1030 = vpop.f32.mrb[0].mxu0
  %1031 = vdwg.mxu0
  %1032 = vmatprep.subr.mxu0 0.0
  %1033 = vmatpush1.msra.mxu0 %v137
  %1034 = vmatprep.subr.mxu0 0.0
  %1035 = vmatpush1.msra.mxu0 %v138
  %1036 = vmatprep.subr.mxu0 0.0
  %1037 = vmatpush1.msra.mxu0 %v139
  %1038 = vmatprep.subr.mxu0 0.0
  %1039 = vmatpush1.msra.mxu0 %v140
  %1040 = vmatprep.subr.mxu0 0.0
  %1041 = vmatpush1.msra.mxu0 %v141
  %1042 = vmatprep.subr.mxu0 0.0
  %1043 = vmatpush1.msra.mxu0 %v142
  %1044 = vmatprep.subr.mxu0 0.0
  %1045 = vmatpush1.msra.mxu0 %v143
  %1046 = vmatprep.subr.mxu0 0.0
  %1047 = vmatpush1.msra.mxu0 %v144
  %1048 = vmatprep.subr.mxu0 0.0
  %1049 = vmatpush1.msra.mxu0 %v145
  %1050 = vmatprep.subr.mxu0 0.0
  %1051 = vmatpush1.msra.mxu0 %v146
  %1052 = vmatprep.subr.mxu0 0.0
  %1053 = vmatpush1.msra.mxu0 %v147
  %1054 = vmatprep.subr.mxu0 0.0
  %1055 = vmatpush1.msra.mxu0 %v148
  %1056 = vmatprep.subr.mxu0 0.0
  %1057 = vmatpush1.msra.mxu0 %v149
  %1058 = vmatprep.subr.mxu0 0.0
  %1059 = vmatpush1.msra.mxu0 %v150
  %1060 = vmatprep.subr.mxu0 0.0
  %1061 = vmatpush1.msra.mxu0 %v151
  %1062 = vmatprep.subr.mxu0 0.0
  %1063 = vmatpush1.msra.mxu0 %v152
  %1064 = vmatprep.subr.mxu0 0.0
  %1065 = vmatpush1.msra.mxu0 %v153
  %1066 = vmatprep.subr.mxu0 0.0
  %1067 = vmatpush1.msra.mxu0 %v154
  %1068 = vmatprep.subr.mxu0 0.0
  %1069 = vmatpush1.msra.mxu0 %v155
  %1070 = vmatprep.subr.mxu0 0.0
  %1071 = vmatpush1.msra.mxu0 %v156
  %1072 = vmatprep.subr.mxu0 0.0
  %1073 = vmatpush1.msra.mxu0 %v157
  %1074 = vmatprep.subr.mxu0 0.0
  %1075 = vmatpush1.msra.mxu0 %v158
  %1076 = vmatprep.subr.mxu0 0.0
  %1077 = vmatpush1.msra.mxu0 %v159
  %1078 = vmatprep.subr.mxu0 0.0
  %1079 = vmatpush1.msra.mxu0 %v160
  %1080 = vmatprep.subr.mxu0 0.0
  %1081 = vmatpush1.msra.mxu0 %v161
  %1082 = vmatprep.subr.mxu0 0.0
  %1083 = vmatpush1.msra.mxu0 %v162
  %1084 = vmatprep.subr.mxu0 0.0
  %1085 = vmatpush1.msra.mxu0 %v163
  %1086 = vmatprep.subr.mxu0 0.0
  %1087 = vmatpush1.msra.mxu0 %v164
  %1088 = vmatprep.subr.mxu0 0.0
  %1089 = vmatpush1.msra.mxu0 %v165
  %1090 = vmatprep.subr.mxu0 0.0
  %1091 = vmatpush1.msra.mxu0 %v166
  %1092 = vmatprep.subr.mxu0 0.0
  %1093 = vmatpush1.msra.mxu0 %v167
  %1094 = vmatprep.subr.mxu0 0.0
  %1095 = vmatpush1.msra.mxu0 %v168
  %1096 = vmatprep.mubr.f32.mxu0 %v666
  %1097 = vmatmul.mubr.f32.gmra.mrb[0].mxu0 %v664
  %v1098 = vpop.f32.mrb[0].mxu0
  %v1099 = vadd.f32 %v1029, %v1098
  %v1100 = vpop.f32.mrb[0].mxu0
  %1101 = vdwg.mxu0
  %1102 = vmatprep.subr.mxu0 0.0
  %1103 = vmatpush1.msra.mxu0 %v169
  %1104 = vmatprep.subr.mxu0 0.0
  %1105 = vmatpush1.msra.mxu0 %v170
  %1106 = vmatprep.subr.mxu0 0.0
  %1107 = vmatpush1.msra.mxu0 %v171
  %1108 = vmatprep.subr.mxu0 0.0
  %1109 = vmatpush1.msra.mxu0 %v172
  %1110 = vmatprep.subr.mxu0 0.0
  %1111 = vmatpush1.msra.mxu0 %v173
  %1112 = vmatprep.subr.mxu0 0.0
  %1113 = vmatpush1.msra.mxu0 %v174
  %1114 = vmatprep.subr.mxu0 0.0
  %1115 = vmatpush1.msra.mxu0 %v175
  %1116 = vmatprep.subr.mxu0 0.0
  %1117 = vmatpush1.msra.mxu0 %v176
  %1118 = vmatprep.subr.mxu0 0.0
  %1119 = vmatpush1.msra.mxu0 %v177
  %1120 = vmatprep.subr.mxu0 0.0
  %1121 = vmatpush1.msra.mxu0 %v178
  %1122 = vmatprep.subr.mxu0 0.0
  %1123 = vmatpush1.msra.mxu0 %v179
  %1124 = vmatprep.subr.mxu0 0.0
  %1125 = vmatpush1.msra.mxu0 %v180
  %1126 = vmatprep.subr.mxu0 0.0
  %1127 = vmatpush1.msra.mxu0 %v181
  %1128 = vmatprep.subr.mxu0 0.0
  %1129 = vmatpush1.msra.mxu0 %v182
  %1130 = vmatprep.subr.mxu0 0.0
  %1131 = vmatpush1.msra.mxu0 %v183
  %1132 = vmatprep.subr.mxu0 0.0
  %1133 = vmatpush1.msra.mxu0 %v184
  %1134 = vmatprep.subr.mxu0 0.0
  %1135 = vmatpush1.msra.mxu0 %v185
  %1136 = vmatprep.subr.mxu0 0.0
  %1137 = vmatpush1.msra.mxu0 %v186
  %1138 = vmatprep.subr.mxu0 0.0
  %1139 = vmatpush1.msra.mxu0 %v187
  %1140 = vmatprep.subr.mxu0 0.0
  %1141 = vmatpush1.msra.mxu0 %v188
  %1142 = vmatprep.subr.mxu0 0.0
  %1143 = vmatpush1.msra.mxu0 %v189
  %1144 = vmatprep.subr.mxu0 0.0
  %1145 = vmatpush1.msra.mxu0 %v190
  %1146 = vmatprep.subr.mxu0 0.0
  %1147 = vmatpush1.msra.mxu0 %v191
  %1148 = vmatprep.subr.mxu0 0.0
  %1149 = vmatpush1.msra.mxu0 %v192
  %1150 = vmatprep.subr.mxu0 0.0
  %1151 = vmatpush1.msra.mxu0 %v193
  %1152 = vmatprep.subr.mxu0 0.0
  %1153 = vmatpush1.msra.mxu0 %v194
  %1154 = vmatprep.subr.mxu0 0.0
  %1155 = vmatpush1.msra.mxu0 %v195
  %1156 = vmatprep.subr.mxu0 0.0
  %1157 = vmatpush1.msra.mxu0 %v196
  %1158 = vmatprep.subr.mxu0 0.0
  %1159 = vmatpush1.msra.mxu0 %v197
  %1160 = vmatprep.subr.mxu0 0.0
  %1161 = vmatpush1.msra.mxu0 %v198
  %1162 = vmatprep.subr.mxu0 0.0
  %1163 = vmatpush1.msra.mxu0 %v199
  %1164 = vmatprep.subr.mxu0 0.0
  %1165 = vmatpush1.msra.mxu0 %v200
  %1166 = vmatprep.mubr.f32.mxu0 %v682
  %1167 = vmatmul.mubr.f32.gmra.mrb[0].mxu0 %v674
  %v1168 = vpop.f32.mrb[0].mxu0
  %v1169 = vadd.f32 %v1099, %v1168
  %v1170 = vpop.f32.mrb[0].mxu0
  %1171 = vdwg.mxu0
  %1172 = vmatprep.subr.mxu0 0.0
  %1173 = vmatpush1.msra.mxu0 %v201
  %1174 = vmatprep.subr.mxu0 0.0
  %1175 = vmatpush1.msra.mxu0 %v202
  %1176 = vmatprep.subr.mxu0 0.0
  %1177 = vmatpush1.msra.mxu0 %v203
  %1178 = vmatprep.subr.mxu0 0.0
  %1179 = vmatpush1.msra.mxu0 %v204
  %1180 = vmatprep.subr.mxu0 0.0
  %1181 = vmatpush1.msra.mxu0 %v205
  %1182 = vmatprep.subr.mxu0 0.0
  %1183 = vmatpush1.msra.mxu0 %v206
  %1184 = vmatprep.subr.mxu0 0.0
  %1185 = vmatpush1.msra.mxu0 %v207
  %1186 = vmatprep.subr.mxu0 0.0
  %1187 = vmatpush1.msra.mxu0 %v208
  %1188 = vmatprep.subr.mxu0 0.0
  %1189 = vmatpush1.msra.mxu0 %v209
  %1190 = vmatprep.subr.mxu0 0.0
  %1191 = vmatpush1.msra.mxu0 %v210
  %1192 = vmatprep.subr.mxu0 0.0
  %1193 = vmatpush1.msra.mxu0 %v211
  %1194 = vmatprep.subr.mxu0 0.0
  %1195 = vmatpush1.msra.mxu0 %v212
  %1196 = vmatprep.subr.mxu0 0.0
  %1197 = vmatpush1.msra.mxu0 %v213
  %1198 = vmatprep.subr.mxu0 0.0
  %1199 = vmatpush1.msra.mxu0 %v214
  %1200 = vmatprep.subr.mxu0 0.0
  %1201 = vmatpush1.msra.mxu0 %v215
  %1202 = vmatprep.subr.mxu0 0.0
  %1203 = vmatpush1.msra.mxu0 %v216
  %1204 = vmatprep.subr.mxu0 0.0
  %1205 = vmatpush1.msra.mxu0 %v217
  %1206 = vmatprep.subr.mxu0 0.0
  %1207 = vmatpush1.msra.mxu0 %v218
  %1208 = vmatprep.subr.mxu0 0.0
  %1209 = vmatpush1.msra.mxu0 %v219
  %1210 = vmatprep.subr.mxu0 0.0
  %1211 = vmatpush1.msra.mxu0 %v220
  %1212 = vmatprep.subr.mxu0 0.0
  %1213 = vmatpush1.msra.mxu0 %v221
  %1214 = vmatprep.subr.mxu0 0.0
  %1215 = vmatpush1.msra.mxu0 %v222
  %1216 = vmatprep.subr.mxu0 0.0
  %1217 = vmatpush1.msra.mxu0 %v223
  %1218 = vmatprep.subr.mxu0 0.0
  %1219 = vmatpush1.msra.mxu0 %v224
  %1220 = vmatprep.subr.mxu0 0.0
  %1221 = vmatpush1.msra.mxu0 %v225
  %1222 = vmatprep.subr.mxu0 0.0
  %1223 = vmatpush1.msra.mxu0 %v226
  %1224 = vmatprep.subr.mxu0 0.0
  %1225 = vmatpush1.msra.mxu0 %v227
  %1226 = vmatprep.subr.mxu0 0.0
  %1227 = vmatpush1.msra.mxu0 %v228
  %1228 = vmatprep.subr.mxu0 0.0
  %1229 = vmatpush1.msra.mxu0 %v229
  %1230 = vmatprep.subr.mxu0 0.0
  %1231 = vmatpush1.msra.mxu0 %v230
  %1232 = vmatprep.subr.mxu0 0.0
  %1233 = vmatpush1.msra.mxu0 %v231
  %1234 = vmatprep.subr.mxu0 0.0
  %1235 = vmatpush1.msra.mxu0 %v232
  %1236 = vmatprep.mubr.f32.mxu0 %v683
  %1237 = vmatmul.mubr.f32.gmra.mrb[0].mxu0 %v681
  %v1238 = vpop.f32.mrb[0].mxu0
  %v1239 = vadd.f32 %v1169, %v1238
  %v1240 = vpop.f32.mrb[0].mxu0
  %1241 = vdwg.mxu0
  %1242 = vmatprep.subr.mxu0 0.0
  %1243 = vmatpush1.msra.mxu0 %v233
  %1244 = vmatprep.subr.mxu0 0.0
  %1245 = vmatpush1.msra.mxu0 %v234
  %1246 = vmatprep.subr.mxu0 0.0
  %1247 = vmatpush1.msra.mxu0 %v235
  %1248 = vmatprep.subr.mxu0 0.0
  %1249 = vmatpush1.msra.mxu0 %v236
  %1250 = vmatprep.subr.mxu0 0.0
  %1251 = vmatpush1.msra.mxu0 %v237
  %1252 = vmatprep.subr.mxu0 0.0
  %1253 = vmatpush1.msra.mxu0 %v238
  %1254 = vmatprep.subr.mxu0 0.0
  %1255 = vmatpush1.msra.mxu0 %v239
  %1256 = vmatprep.subr.mxu0 0.0
  %1257 = vmatpush1.msra.mxu0 %v240
  %1258 = vmatprep.subr.mxu0 0.0
  %1259 = vmatpush1.msra.mxu0 %v241
  %1260 = vmatprep.subr.mxu0 0.0
  %1261 = vmatpush1.msra.mxu0 %v242
  %1262 = vmatprep.subr.mxu0 0.0
  %1263 = vmatpush1.msra.mxu0 %v243
  %1264 = vmatprep.subr.mxu0 0.0
  %1265 = vmatpush1.msra.mxu0 %v244
  %1266 = vmatprep.subr.mxu0 0.0
  %1267 = vmatpush1.msra.mxu0 %v245
  %1268 = vmatprep.subr.mxu0 0.0
  %1269 = vmatpush1.msra.mxu0 %v246
  %1270 = vmatprep.subr.mxu0 0.0
  %1271 = vmatpush1.msra.mxu0 %v247
  %1272 = vmatprep.subr.mxu0 0.0
  %1273 = vmatpush1.msra.mxu0 %v248
  %1274 = vmatprep.subr.mxu0 0.0
  %1275 = vmatpush1.msra.mxu0 %v249
  %1276 = vmatprep.subr.mxu0 0.0
  %1277 = vmatpush1.msra.mxu0 %v250
  %1278 = vmatprep.subr.mxu0 0.0
  %1279 = vmatpush1.msra.mxu0 %v251
  %1280 = vmatprep.subr.mxu0 0.0
  %1281 = vmatpush1.msra.mxu0 %v252
  %1282 = vmatprep.subr.mxu0 0.0
  %1283 = vmatpush1.msra.mxu0 %v253
  %1284 = vmatprep.subr.mxu0 0.0
  %1285 = vmatpush1.msra.mxu0 %v254
  %1286 = vmatprep.subr.mxu0 0.0
  %1287 = vmatpush1.msra.mxu0 %v255
  %1288 = vmatprep.subr.mxu0 0.0
  %1289 = vmatpush1.msra.mxu0 %v256
  %1290 = vmatprep.subr.mxu0 0.0
  %1291 = vmatpush1.msra.mxu0 %v257
  %1292 = vmatprep.subr.mxu0 0.0
  %1293 = vmatpush1.msra.mxu0 %v258
  %1294 = vmatprep.subr.mxu0 0.0
  %1295 = vmatpush1.msra.mxu0 %v259
  %1296 = vmatprep.subr.mxu0 0.0
  %1297 = vmatpush1.msra.mxu0 %v260
  %1298 = vmatprep.subr.mxu0 0.0
  %1299 = vmatpush1.msra.mxu0 %v261
  %1300 = vmatprep.subr.mxu0 0.0
  %1301 = vmatpush1.msra.mxu0 %v262
  %1302 = vmatprep.subr.mxu0 0.0
  %1303 = vmatpush1.msra.mxu0 %v263
  %1304 = vmatprep.subr.mxu0 0.0
  %1305 = vmatpush1.msra.mxu0 %v264
  %1306 = vmatprep.mubr.f32.mxu0 %v699
  %1307 = vmatmul.mubr.f32.gmra.mrb[0].mxu0 %v691
  %v1308 = vpop.f32.mrb[0].mxu0
  %v1309 = vadd.f32 %v1239, %v1308
  %v1310 = vpop.f32.mrb[0].mxu0
  %1311 = vdwg.mxu0
  %1312 = vmatprep.subr.mxu0 0.0
  %1313 = vmatpush1.msra.mxu0 %v265
  %1314 = vmatprep.subr.mxu0 0.0
  %1315 = vmatpush1.msra.mxu0 %v266
  %1316 = vmatprep.subr.mxu0 0.0
  %1317 = vmatpush1.msra.mxu0 %v267
  %1318 = vmatprep.subr.mxu0 0.0
  %1319 = vmatpush1.msra.mxu0 %v268
  %1320 = vmatprep.subr.mxu0 0.0
  %1321 = vmatpush1.msra.mxu0 %v269
  %1322 = vmatprep.subr.mxu0 0.0
  %1323 = vmatpush1.msra.mxu0 %v270
  %1324 = vmatprep.subr.mxu0 0.0
  %1325 = vmatpush1.msra.mxu0 %v271
  %1326 = vmatprep.subr.mxu0 0.0
  %1327 = vmatpush1.msra.mxu0 %v272
  %1328 = vmatprep.subr.mxu0 0.0
  %1329 = vmatpush1.msra.mxu0 %v273
  %1330 = vmatprep.subr.mxu0 0.0
  %1331 = vmatpush1.msra.mxu0 %v274
  %1332 = vmatprep.subr.mxu0 0.0
  %1333 = vmatpush1.msra.mxu0 %v275
  %1334 = vmatprep.subr.mxu0 0.0
  %1335 = vmatpush1.msra.mxu0 %v276
  %1336 = vmatprep.subr.mxu0 0.0
  %1337 = vmatpush1.msra.mxu0 %v277
  %1338 = vmatprep.subr.mxu0 0.0
  %1339 = vmatpush1.msra.mxu0 %v278
  %1340 = vmatprep.subr.mxu0 0.0
  %1341 = vmatpush1.msra.mxu0 %v279
  %1342 = vmatprep.subr.mxu0 0.0
  %1343 = vmatpush1.msra.mxu0 %v280
  %1344 = vmatprep.subr.mxu0 0.0
  %1345 = vmatpush1.msra.mxu0 %v281
  %1346 = vmatprep.subr.mxu0 0.0
  %1347 = vmatpush1.msra.mxu0 %v282
  %1348 = vmatprep.subr.mxu0 0.0
  %1349 = vmatpush1.msra.mxu0 %v283
  %1350 = vmatprep.subr.mxu0 0.0
  %1351 = vmatpush1.msra.mxu0 %v284
  %1352 = vmatprep.subr.mxu0 0.0
  %1353 = vmatpush1.msra.mxu0 %v285
  %1354 = vmatprep.subr.mxu0 0.0
  %1355 = vmatpush1.msra.mxu0 %v286
  %1356 = vmatprep.subr.mxu0 0.0
  %1357 = vmatpush1.msra.mxu0 %v287
  %1358 = vmatprep.subr.mxu0 0.0
  %1359 = vmatpush1.msra.mxu0 %v288
  %1360 = vmatprep.subr.mxu0 0.0
  %1361 = vmatpush1.msra.mxu0 %v289
  %1362 = vmatprep.subr.mxu0 0.0
  %1363 = vmatpush1.msra.mxu0 %v290
  %1364 = vmatprep.subr.mxu0 0.0
  %1365 = vmatpush1.msra.mxu0 %v291
  %1366 = vmatprep.subr.mxu0 0.0
  %1367 = vmatpush1.msra.mxu0 %v292
  %1368 = vmatprep.subr.mxu0 0.0
  %1369 = vmatpush1.msra.mxu0 %v293
  %1370 = vmatprep.subr.mxu0 0.0
  %1371 = vmatpush1.msra.mxu0 %v294
  %1372 = vmatprep.subr.mxu0 0.0
  %1373 = vmatpush1.msra.mxu0 %v295
  %1374 = vmatprep.subr.mxu0 0.0
  %1375 = vmatpush1.msra.mxu0 %v296
  %1376 = vmatprep.mubr.f32.mxu0 %v700
  %1377 = vmatmul.mubr.f32.gmra.mrb[0].mxu0 %v698
  %v1378 = vpop.f32.mrb[0].mxu0
  %v1379 = vadd.f32 %v1309, %v1378
  %v1380 = vpop.f32.mrb[0].mxu0
  %1381 = vdwg.mxu0
  %1382 = vmatprep.subr.mxu0 0.0
  %1383 = vmatpush1.msra.mxu0 %v297
  %1384 = vmatprep.subr.mxu0 0.0
  %1385 = vmatpush1.msra.mxu0 %v298
  %1386 = vmatprep.subr.mxu0 0.0
  %1387 = vmatpush1.msra.mxu0 %v299
  %1388 = vmatprep.subr.mxu0 0.0
  %1389 = vmatpush1.msra.mxu0 %v300
  %1390 = vmatprep.subr.mxu0 0.0
  %1391 = vmatpush1.msra.mxu0 %v301
  %1392 = vmatprep.subr.mxu0 0.0
  %1393 = vmatpush1.msra.mxu0 %v302
  %1394 = vmatprep.subr.mxu0 0.0
  %1395 = vmatpush1.msra.mxu0 %v303
  %1396 = vmatprep.subr.mxu0 0.0
  %1397 = vmatpush1.msra.mxu0 %v304
  %1398 = vmatprep.subr.mxu0 0.0
  %1399 = vmatpush1.msra.mxu0 %v305
  %1400 = vmatprep.subr.mxu0 0.0
  %1401 = vmatpush1.msra.mxu0 %v306
  %1402 = vmatprep.subr.mxu0 0.0
  %1403 = vmatpush1.msra.mxu0 %v307
  %1404 = vmatprep.subr.mxu0 0.0
  %1405 = vmatpush1.msra.mxu0 %v308
  %1406 = vmatprep.subr.mxu0 0.0
  %1407 = vmatpush1.msra.mxu0 %v309
  %1408 = vmatprep.subr.mxu0 0.0
  %1409 = vmatpush1.msra.mxu0 %v310
  %1410 = vmatprep.subr.mxu0 0.0
  %1411 = vmatpush1.msra.mxu0 %v311
  %1412 = vmatprep.subr.mxu0 0.0
  %1413 = vmatpush1.msra.mxu0 %v312
  %1414 = vmatprep.subr.mxu0 0.0
  %1415 = vmatpush1.msra.mxu0 %v313
  %1416 = vmatprep.subr.mxu0 0.0
  %1417 = vmatpush1.msra.mxu0 %v314
  %1418 = vmatprep.subr.mxu0 0.0
  %1419 = vmatpush1.msra.mxu0 %v315
  %1420 = vmatprep.subr.mxu0 0.0
  %1421 = vmatpush1.msra.mxu0 %v316
  %1422 = vmatprep.subr.mxu0 0.0
  %1423 = vmatpush1.msra.mxu0 %v317
  %1424 = vmatprep.subr.mxu0 0.0
  %1425 = vmatpush1.msra.mxu0 %v318
  %1426 = vmatprep.subr.mxu0 0.0
  %1427 = vmatpush1.msra.mxu0 %v319
  %1428 = vmatprep.subr.mxu0 0.0
  %1429 = vmatpush1.msra.mxu0 %v320
  %1430 = vmatprep.subr.mxu0 0.0
  %1431 = vmatpush1.msra.mxu0 %v321
  %1432 = vmatprep.subr.mxu0 0.0
  %1433 = vmatpush1.msra.mxu0 %v322
  %1434 = vmatprep.subr.mxu0 0.0
  %1435 = vmatpush1.msra.mxu0 %v323
  %1436 = vmatprep.subr.mxu0 0.0
  %1437 = vmatpush1.msra.mxu0 %v324
  %1438 = vmatprep.subr.mxu0 0.0
  %1439 = vmatpush1.msra.mxu0 %v325
  %1440 = vmatprep.subr.mxu0 0.0
  %1441 = vmatpush1.msra.mxu0 %v326
  %1442 = vmatprep.subr.mxu0 0.0
  %1443 = vmatpush1.msra.mxu0 %v327
  %1444 = vmatprep.subr.mxu0 0.0
  %1445 = vmatpush1.msra.mxu0 %v328
  %1446 = vmatprep.mubr.f32.mxu0 %v716
  %1447 = vmatmul.mubr.f32.gmra.mrb[0].mxu0 %v708
  %v1448 = vpop.f32.mrb[0].mxu0
  %v1449 = vadd.f32 %v1379, %v1448
  %v1450 = vpop.f32.mrb[0].mxu0
  %1451 = vdwg.mxu0
  %1452 = vmatprep.subr.mxu0 0.0
  %1453 = vmatpush1.msra.mxu0 %v329
  %1454 = vmatprep.subr.mxu0 0.0
  %1455 = vmatpush1.msra.mxu0 %v330
  %1456 = vmatprep.subr.mxu0 0.0
  %1457 = vmatpush1.msra.mxu0 %v331
  %1458 = vmatprep.subr.mxu0 0.0
  %1459 = vmatpush1.msra.mxu0 %v332
  %1460 = vmatprep.subr.mxu0 0.0
  %1461 = vmatpush1.msra.mxu0 %v333
  %1462 = vmatprep.subr.mxu0 0.0
  %1463 = vmatpush1.msra.mxu0 %v334
  %1464 = vmatprep.subr.mxu0 0.0
  %1465 = vmatpush1.msra.mxu0 %v335
  %1466 = vmatprep.subr.mxu0 0.0
  %1467 = vmatpush1.msra.mxu0 %v336
  %1468 = vmatprep.subr.mxu0 0.0
  %1469 = vmatpush1.msra.mxu0 %v337
  %1470 = vmatprep.subr.mxu0 0.0
  %1471 = vmatpush1.msra.mxu0 %v338
  %1472 = vmatprep.subr.mxu0 0.0
  %1473 = vmatpush1.msra.mxu0 %v339
  %1474 = vmatprep.subr.mxu0 0.0
  %1475 = vmatpush1.msra.mxu0 %v340
  %1476 = vmatprep.subr.mxu0 0.0
  %1477 = vmatpush1.msra.mxu0 %v341
  %1478 = vmatprep.subr.mxu0 0.0
  %1479 = vmatpush1.msra.mxu0 %v342
  %1480 = vmatprep.subr.mxu0 0.0
  %1481 = vmatpush1.msra.mxu0 %v343
  %1482 = vmatprep.subr.mxu0 0.0
  %1483 = vmatpush1.msra.mxu0 %v344
  %1484 = vmatprep.subr.mxu0 0.0
  %1485 = vmatpush1.msra.mxu0 %v345
  %1486 = vmatprep.subr.mxu0 0.0
  %1487 = vmatpush1.msra.mxu0 %v346
  %1488 = vmatprep.subr.mxu0 0.0
  %1489 = vmatpush1.msra.mxu0 %v347
  %1490 = vmatprep.subr.mxu0 0.0
  %1491 = vmatpush1.msra.mxu0 %v348
  %1492 = vmatprep.subr.mxu0 0.0
  %1493 = vmatpush1.msra.mxu0 %v349
  %1494 = vmatprep.subr.mxu0 0.0
  %1495 = vmatpush1.msra.mxu0 %v350
  %1496 = vmatprep.subr.mxu0 0.0
  %1497 = vmatpush1.msra.mxu0 %v351
  %1498 = vmatprep.subr.mxu0 0.0
  %1499 = vmatpush1.msra.mxu0 %v352
  %1500 = vmatprep.subr.mxu0 0.0
  %1501 = vmatpush1.msra.mxu0 %v353
  %1502 = vmatprep.subr.mxu0 0.0
  %1503 = vmatpush1.msra.mxu0 %v354
  %1504 = vmatprep.subr.mxu0 0.0
  %1505 = vmatpush1.msra.mxu0 %v355
  %1506 = vmatprep.subr.mxu0 0.0
  %1507 = vmatpush1.msra.mxu0 %v356
  %1508 = vmatprep.subr.mxu0 0.0
  %1509 = vmatpush1.msra.mxu0 %v357
  %1510 = vmatprep.subr.mxu0 0.0
  %1511 = vmatpush1.msra.mxu0 %v358
  %1512 = vmatprep.subr.mxu0 0.0
  %1513 = vmatpush1.msra.mxu0 %v359
  %1514 = vmatprep.subr.mxu0 0.0
  %1515 = vmatpush1.msra.mxu0 %v360
  %1516 = vmatprep.mubr.f32.mxu0 %v717
  %1517 = vmatmul.mubr.f32.gmra.mrb[0].mxu0 %v715
  %v1518 = vpop.f32.mrb[0].mxu0
  %v1519 = vadd.f32 %v1449, %v1518
  %v1520 = vpop.f32.mrb[0].mxu0
  %1521 = vdwg.mxu0
  %1522 = vmatprep.subr.mxu0 0.0
  %1523 = vmatpush1.msra.mxu0 %v361
  %1524 = vmatprep.subr.mxu0 0.0
  %1525 = vmatpush1.msra.mxu0 %v362
  %1526 = vmatprep.subr.mxu0 0.0
  %1527 = vmatpush1.msra.mxu0 %v363
  %1528 = vmatprep.subr.mxu0 0.0
  %1529 = vmatpush1.msra.mxu0 %v364
  %1530 = vmatprep.subr.mxu0 0.0
  %1531 = vmatpush1.msra.mxu0 %v365
  %1532 = vmatprep.subr.mxu0 0.0
  %1533 = vmatpush1.msra.mxu0 %v366
  %1534 = vmatprep.subr.mxu0 0.0
  %1535 = vmatpush1.msra.mxu0 %v367
  %1536 = vmatprep.subr.mxu0 0.0
  %1537 = vmatpush1.msra.mxu0 %v368
  %1538 = vmatprep.subr.mxu0 0.0
  %1539 = vmatpush1.msra.mxu0 %v369
  %1540 = vmatprep.subr.mxu0 0.0
  %1541 = vmatpush1.msra.mxu0 %v370
  %1542 = vmatprep.subr.mxu0 0.0
  %1543 = vmatpush1.msra.mxu0 %v371
  %1544 = vmatprep.subr.mxu0 0.0
  %1545 = vmatpush1.msra.mxu0 %v372
  %1546 = vmatprep.subr.mxu0 0.0
  %1547 = vmatpush1.msra.mxu0 %v373
  %1548 = vmatprep.subr.mxu0 0.0
  %1549 = vmatpush1.msra.mxu0 %v374
  %1550 = vmatprep.subr.mxu0 0.0
  %1551 = vmatpush1.msra.mxu0 %v375
  %1552 = vmatprep.subr.mxu0 0.0
  %1553 = vmatpush1.msra.mxu0 %v376
  %1554 = vmatprep.subr.mxu0 0.0
  %1555 = vmatpush1.msra.mxu0 %v377
  %1556 = vmatprep.subr.mxu0 0.0
  %1557 = vmatpush1.msra.mxu0 %v378
  %1558 = vmatprep.subr.mxu0 0.0
  %1559 = vmatpush1.msra.mxu0 %v379
  %1560 = vmatprep.subr.mxu0 0.0
  %1561 = vmatpush1.msra.mxu0 %v380
  %1562 = vmatprep.subr.mxu0 0.0
  %1563 = vmatpush1.msra.mxu0 %v381
  %1564 = vmatprep.subr.mxu0 0.0
  %1565 = vmatpush1.msra.mxu0 %v382
  %1566 = vmatprep.subr.mxu0 0.0
  %1567 = vmatpush1.msra.mxu0 %v383
  %1568 = vmatprep.subr.mxu0 0.0
  %1569 = vmatpush1.msra.mxu0 %v384
  %1570 = vmatprep.subr.mxu0 0.0
  %1571 = vmatpush1.msra.mxu0 %v385
  %1572 = vmatprep.subr.mxu0 0.0
  %1573 = vmatpush1.msra.mxu0 %v386
  %1574 = vmatprep.subr.mxu0 0.0
  %1575 = vmatpush1.msra.mxu0 %v387
  %1576 = vmatprep.subr.mxu0 0.0
  %1577 = vmatpush1.msra.mxu0 %v388
  %1578 = vmatprep.subr.mxu0 0.0
  %1579 = vmatpush1.msra.mxu0 %v389
  %1580 = vmatprep.subr.mxu0 0.0
  %1581 = vmatpush1.msra.mxu0 %v390
  %1582 = vmatprep.subr.mxu0 0.0
  %1583 = vmatpush1.msra.mxu0 %v391
  %1584 = vmatprep.subr.mxu0 0.0
  %1585 = vmatpush1.msra.mxu0 %v392
  %1586 = vmatprep.mubr.f32.mxu0 %v733
  %1587 = vmatmul.mubr.f32.gmra.mrb[0].mxu0 %v725
  %v1588 = vpop.f32.mrb[0].mxu0
  %v1589 = vadd.f32 %v1519, %v1588
  %v1590 = vpop.f32.mrb[0].mxu0
  %1591 = vdwg.mxu0
  %1592 = vmatprep.subr.mxu0 0.0
  %1593 = vmatpush1.msra.mxu0 %v393
  %1594 = vmatprep.subr.mxu0 0.0
  %1595 = vmatpush1.msra.mxu0 %v394
  %1596 = vmatprep.subr.mxu0 0.0
  %1597 = vmatpush1.msra.mxu0 %v395
  %1598 = vmatprep.subr.mxu0 0.0
  %1599 = vmatpush1.msra.mxu0 %v396
  %1600 = vmatprep.subr.mxu0 0.0
  %1601 = vmatpush1.msra.mxu0 %v397
  %1602 = vmatprep.subr.mxu0 0.0
  %1603 = vmatpush1.msra.mxu0 %v398
  %1604 = vmatprep.subr.mxu0 0.0
  %1605 = vmatpush1.msra.mxu0 %v399
  %1606 = vmatprep.subr.mxu0 0.0
  %1607 = vmatpush1.msra.mxu0 %v400
  %1608 = vmatprep.subr.mxu0 0.0
  %1609 = vmatpush1.msra.mxu0 %v401
  %1610 = vmatprep.subr.mxu0 0.0
  %1611 = vmatpush1.msra.mxu0 %v402
  %1612 = vmatprep.subr.mxu0 0.0
  %1613 = vmatpush1.msra.mxu0 %v403
  %1614 = vmatprep.subr.mxu0 0.0
  %1615 = vmatpush1.msra.mxu0 %v404
  %1616 = vmatprep.subr.mxu0 0.0
  %1617 = vmatpush1.msra.mxu0 %v405
  %1618 = vmatprep.subr.mxu0 0.0
  %1619 = vmatpush1.msra.mxu0 %v406
  %1620 = vmatprep.subr.mxu0 0.0
  %1621 = vmatpush1.msra.mxu0 %v407
  %1622 = vmatprep.subr.mxu0 0.0
  %1623 = vmatpush1.msra.mxu0 %v408
  %1624 = vmatprep.subr.mxu0 0.0
  %1625 = vmatpush1.msra.mxu0 %v409
  %1626 = vmatprep.subr.mxu0 0.0
  %1627 = vmatpush1.msra.mxu0 %v410
  %1628 = vmatprep.subr.mxu0 0.0
  %1629 = vmatpush1.msra.mxu0 %v411
  %1630 = vmatprep.subr.mxu0 0.0
  %1631 = vmatpush1.msra.mxu0 %v412
  %1632 = vmatprep.subr.mxu0 0.0
  %1633 = vmatpush1.msra.mxu0 %v413
  %1634 = vmatprep.subr.mxu0 0.0
  %1635 = vmatpush1.msra.mxu0 %v414
  %1636 = vmatprep.subr.mxu0 0.0
  %1637 = vmatpush1.msra.mxu0 %v415
  %1638 = vmatprep.subr.mxu0 0.0
  %1639 = vmatpush1.msra.mxu0 %v416
  %1640 = vmatprep.subr.mxu0 0.0
  %1641 = vmatpush1.msra.mxu0 %v417
  %1642 = vmatprep.subr.mxu0 0.0
  %1643 = vmatpush1.msra.mxu0 %v418
  %1644 = vmatprep.subr.mxu0 0.0
  %1645 = vmatpush1.msra.mxu0 %v419
  %1646 = vmatprep.subr.mxu0 0.0
  %1647 = vmatpush1.msra.mxu0 %v420
  %1648 = vmatprep.subr.mxu0 0.0
  %1649 = vmatpush1.msra.mxu0 %v421
  %1650 = vmatprep.subr.mxu0 0.0
  %1651 = vmatpush1.msra.mxu0 %v422
  %1652 = vmatprep.subr.mxu0 0.0
  %1653 = vmatpush1.msra.mxu0 %v423
  %1654 = vmatprep.subr.mxu0 0.0
  %1655 = vmatpush1.msra.mxu0 %v424
  %1656 = vmatprep.mubr.f32.mxu0 %v734
  %1657 = vmatmul.mubr.f32.gmra.mrb[0].mxu0 %v732
  %v1658 = vpop.f32.mrb[0].mxu0
  %v1659 = vadd.f32 %v1589, %v1658
  %v1660 = vpop.f32.mrb[0].mxu0
  %1661 = vdwg.mxu0
  %1662 = vmatprep.subr.mxu0 0.0
  %1663 = vmatpush1.msra.mxu0 %v425
  %1664 = vmatprep.subr.mxu0 0.0
  %1665 = vmatpush1.msra.mxu0 %v426
  %1666 = vmatprep.subr.mxu0 0.0
  %1667 = vmatpush1.msra.mxu0 %v427
  %1668 = vmatprep.subr.mxu0 0.0
  %1669 = vmatpush1.msra.mxu0 %v428
  %1670 = vmatprep.subr.mxu0 0.0
  %1671 = vmatpush1.msra.mxu0 %v429
  %1672 = vmatprep.subr.mxu0 0.0
  %1673 = vmatpush1.msra.mxu0 %v430
  %1674 = vmatprep.subr.mxu0 0.0
  %1675 = vmatpush1.msra.mxu0 %v431
  %1676 = vmatprep.subr.mxu0 0.0
  %1677 = vmatpush1.msra.mxu0 %v432
  %1678 = vmatprep.subr.mxu0 0.0
  %1679 = vmatpush1.msra.mxu0 %v433
  %1680 = vmatprep.subr.mxu0 0.0
  %1681 = vmatpush1.msra.mxu0 %v434
  %1682 = vmatprep.subr.mxu0 0.0
  %1683 = vmatpush1.msra.mxu0 %v435
  %1684 = vmatprep.subr.mxu0 0.0
  %1685 = vmatpush1.msra.mxu0 %v436
  %1686 = vmatprep.subr.mxu0 0.0
  %1687 = vmatpush1.msra.mxu0 %v437
  %1688 = vmatprep.subr.mxu0 0.0
  %1689 = vmatpush1.msra.mxu0 %v438
  %1690 = vmatprep.subr.mxu0 0.0
  %1691 = vmatpush1.msra.mxu0 %v439
  %1692 = vmatprep.subr.mxu0 0.0
  %1693 = vmatpush1.msra.mxu0 %v440
  %1694 = vmatprep.subr.mxu0 0.0
  %1695 = vmatpush1.msra.mxu0 %v441
  %1696 = vmatprep.subr.mxu0 0.0
  %1697 = vmatpush1.msra.mxu0 %v442
  %1698 = vmatprep.subr.mxu0 0.0
  %1699 = vmatpush1.msra.mxu0 %v443
  %1700 = vmatprep.subr.mxu0 0.0
  %1701 = vmatpush1.msra.mxu0 %v444
  %1702 = vmatprep.subr.mxu0 0.0
  %1703 = vmatpush1.msra.mxu0 %v445
  %1704 = vmatprep.subr.mxu0 0.0
  %1705 = vmatpush1.msra.mxu0 %v446
  %1706 = vmatprep.subr.mxu0 0.0
  %1707 = vmatpush1.msra.mxu0 %v447
  %1708 = vmatprep.subr.mxu0 0.0
  %1709 = vmatpush1.msra.mxu0 %v448
  %1710 = vmatprep.subr.mxu0 0.0
  %1711 = vmatpush1.msra.mxu0 %v449
  %1712 = vmatprep.subr.mxu0 0.0
  %1713 = vmatpush1.msra.mxu0 %v450
  %1714 = vmatprep.subr.mxu0 0.0
  %1715 = vmatpush1.msra.mxu0 %v451
  %1716 = vmatprep.subr.mxu0 0.0
  %1717 = vmatpush1.msra.mxu0 %v452
  %1718 = vmatprep.subr.mxu0 0.0
  %1719 = vmatpush1.msra.mxu0 %v453
  %1720 = vmatprep.subr.mxu0 0.0
  %1721 = vmatpush1.msra.mxu0 %v454
  %1722 = vmatprep.subr.mxu0 0.0
  %1723 = vmatpush1.msra.mxu0 %v455
  %1724 = vmatprep.subr.mxu0 0.0
  %1725 = vmatpush1.msra.mxu0 %v456
  %1726 = vmatprep.mubr.f32.mxu0 %v750
  %1727 = vmatmul.mubr.f32.gmra.mrb[0].mxu0 %v742
  %v1728 = vpop.f32.mrb[0].mxu0
  %v1729 = vadd.f32 %v1659, %v1728
  %v1730 = vpop.f32.mrb[0].mxu0
  %1731 = vdwg.mxu0
  %1732 = vmatprep.subr.mxu0 0.0
  %1733 = vmatpush1.msra.mxu0 %v457
  %1734 = vmatprep.subr.mxu0 0.0
  %1735 = vmatpush1.msra.mxu0 %v458
  %1736 = vmatprep.subr.mxu0 0.0
  %1737 = vmatpush1.msra.mxu0 %v459
  %1738 = vmatprep.subr.mxu0 0.0
  %1739 = vmatpush1.msra.mxu0 %v460
  %1740 = vmatprep.subr.mxu0 0.0
  %1741 = vmatpush1.msra.mxu0 %v461
  %1742 = vmatprep.subr.mxu0 0.0
  %1743 = vmatpush1.msra.mxu0 %v462
  %1744 = vmatprep.subr.mxu0 0.0
  %1745 = vmatpush1.msra.mxu0 %v463
  %1746 = vmatprep.subr.mxu0 0.0
  %1747 = vmatpush1.msra.mxu0 %v464
  %1748 = vmatprep.subr.mxu0 0.0
  %1749 = vmatpush1.msra.mxu0 %v465
  %1750 = vmatprep.subr.mxu0 0.0
  %1751 = vmatpush1.msra.mxu0 %v466
  %1752 = vmatprep.subr.mxu0 0.0
  %1753 = vmatpush1.msra.mxu0 %v467
  %1754 = vmatprep.subr.mxu0 0.0
  %1755 = vmatpush1.msra.mxu0 %v468
  %1756 = vmatprep.subr.mxu0 0.0
  %1757 = vmatpush1.msra.mxu0 %v469
  %1758 = vmatprep.subr.mxu0 0.0
  %1759 = vmatpush1.msra.mxu0 %v470
  %1760 = vmatprep.subr.mxu0 0.0
  %1761 = vmatpush1.msra.mxu0 %v471
  %1762 = vmatprep.subr.mxu0 0.0
  %1763 = vmatpush1.msra.mxu0 %v472
  %1764 = vmatprep.subr.mxu0 0.0
  %1765 = vmatpush1.msra.mxu0 %v473
  %1766 = vmatprep.subr.mxu0 0.0
  %1767 = vmatpush1.msra.mxu0 %v474
  %1768 = vmatprep.subr.mxu0 0.0
  %1769 = vmatpush1.msra.mxu0 %v475
  %1770 = vmatprep.subr.mxu0 0.0
  %1771 = vmatpush1.msra.mxu0 %v476
  %1772 = vmatprep.subr.mxu0 0.0
  %1773 = vmatpush1.msra.mxu0 %v477
  %1774 = vmatprep.subr.mxu0 0.0
  %1775 = vmatpush1.msra.mxu0 %v478
  %1776 = vmatprep.subr.mxu0 0.0
  %1777 = vmatpush1.msra.mxu0 %v479
  %1778 = vmatprep.subr.mxu0 0.0
  %1779 = vmatpush1.msra.mxu0 %v480
  %1780 = vmatprep.subr.mxu0 0.0
  %1781 = vmatpush1.msra.mxu0 %v481
  %1782 = vmatprep.subr.mxu0 0.0
  %1783 = vmatpush1.msra.mxu0 %v482
  %1784 = vmatprep.subr.mxu0 0.0
  %1785 = vmatpush1.msra.mxu0 %v483
  %1786 = vmatprep.subr.mxu0 0.0
  %1787 = vmatpush1.msra.mxu0 %v484
  %1788 = vmatprep.subr.mxu0 0.0
  %1789 = vmatpush1.msra.mxu0 %v485
  %1790 = vmatprep.subr.mxu0 0.0
  %1791 = vmatpush1.msra.mxu0 %v486
  %1792 = vmatprep.subr.mxu0 0.0
  %1793 = vmatpush1.msra.mxu0 %v487
  %1794 = vmatprep.subr.mxu0 0.0
  %1795 = vmatpush1.msra.mxu0 %v488
  %1796 = vmatprep.mubr.f32.mxu0 %v751
  %1797 = vmatmul.mubr.f32.gmra.mrb[0].mxu0 %v749
  %v1798 = vpop.f32.mrb[0].mxu0
  %v1799 = vadd.f32 %v1729, %v1798
  %v1800 = vpop.f32.mrb[0].mxu0
  %1801 = vdwg.mxu0
  %1802 = vmatprep.subr.mxu0 0.0
  %1803 = vmatpush1.msra.mxu0 %v489
  %1804 = vmatprep.subr.mxu0 0.0
  %1805 = vmatpush1.msra.mxu0 %v490
  %1806 = vmatprep.subr.mxu0 0.0
  %1807 = vmatpush1.msra.mxu0 %v491
  %1808 = vmatprep.subr.mxu0 0.0
  %1809 = vmatpush1.msra.mxu0 %v492
  %1810 = vmatprep.subr.mxu0 0.0
  %1811 = vmatpush1.msra.mxu0 %v493
  %1812 = vmatprep.subr.mxu0 0.0
  %1813 = vmatpush1.msra.mxu0 %v494
  %1814 = vmatprep.subr.mxu0 0.0
  %1815 = vmatpush1.msra.mxu0 %v495
  %1816 = vmatprep.subr.mxu0 0.0
  %1817 = vmatpush1.msra.mxu0 %v496
  %1818 = vmatprep.subr.mxu0 0.0
  %1819 = vmatpush1.msra.mxu0 %v497
  %1820 = vmatprep.subr.mxu0 0.0
  %1821 = vmatpush1.msra.mxu0 %v498
  %1822 = vmatprep.subr.mxu0 0.0
  %1823 = vmatpush1.msra.mxu0 %v499
  %1824 = vmatprep.subr.mxu0 0.0
  %1825 = vmatpush1.msra.mxu0 %v500
  %1826 = vmatprep.subr.mxu0 0.0
  %1827 = vmatpush1.msra.mxu0 %v501
  %1828 = vmatprep.subr.mxu0 0.0
  %1829 = vmatpush1.msra.mxu0 %v502
  %1830 = vmatprep.subr.mxu0 0.0
  %1831 = vmatpush1.msra.mxu0 %v503
  %1832 = vmatprep.subr.mxu0 0.0
  %1833 = vmatpush1.msra.mxu0 %v504
  %1834 = vmatprep.subr.mxu0 0.0
  %1835 = vmatpush1.msra.mxu0 %v505
  %1836 = vmatprep.subr.mxu0 0.0
  %1837 = vmatpush1.msra.mxu0 %v506
  %1838 = vmatprep.subr.mxu0 0.0
  %1839 = vmatpush1.msra.mxu0 %v507
  %1840 = vmatprep.subr.mxu0 0.0
  %1841 = vmatpush1.msra.mxu0 %v508
  %1842 = vmatprep.subr.mxu0 0.0
  %1843 = vmatpush1.msra.mxu0 %v509
  %1844 = vmatprep.subr.mxu0 0.0
  %1845 = vmatpush1.msra.mxu0 %v510
  %1846 = vmatprep.subr.mxu0 0.0
  %1847 = vmatpush1.msra.mxu0 %v511
  %1848 = vmatprep.subr.mxu0 0.0
  %1849 = vmatpush1.msra.mxu0 %v512
  %1850 = vmatprep.subr.mxu0 0.0
  %1851 = vmatpush1.msra.mxu0 %v513
  %1852 = vmatprep.subr.mxu0 0.0
  %1853 = vmatpush1.msra.mxu0 %v514
  %1854 = vmatprep.subr.mxu0 0.0
  %1855 = vmatpush1.msra.mxu0 %v515
  %1856 = vmatprep.subr.mxu0 0.0
  %1857 = vmatpush1.msra.mxu0 %v516
  %1858 = vmatprep.subr.mxu0 0.0
  %1859 = vmatpush1.msra.mxu0 %v517
  %1860 = vmatprep.subr.mxu0 0.0
  %1861 = vmatpush1.msra.mxu0 %v518
  %1862 = vmatprep.subr.mxu0 0.0
  %1863 = vmatpush1.msra.mxu0 %v519
  %1864 = vmatprep.subr.mxu0 0.0
  %1865 = vmatpush1.msra.mxu0 %v520
  %1866 = vmatprep.mubr.f32.mxu0 %v767
  %1867 = vmatmul.mubr.f32.gmra.mrb[0].mxu0 %v759
  %v1868 = vpop.f32.mrb[0].mxu0
  %v1869 = vadd.f32 %v1799, %v1868
  %v1870 = vpop.f32.mrb[0].mxu0
  %1871 = vdwg.mxu0
  %1872 = vmatprep.subr.mxu0 0.0
  %1873 = vmatpush1.msra.mxu0 %v521
  %1874 = vmatprep.subr.mxu0 0.0
  %1875 = vmatpush1.msra.mxu0 %v522
  %1876 = vmatprep.subr.mxu0 0.0
  %1877 = vmatpush1.msra.mxu0 %v523
  %1878 = vmatprep.subr.mxu0 0.0
  %1879 = vmatpush1.msra.mxu0 %v524
  %1880 = vmatprep.subr.mxu0 0.0
  %1881 = vmatpush1.msra.mxu0 %v525
  %1882 = vmatprep.subr.mxu0 0.0
  %1883 = vmatpush1.msra.mxu0 %v526
  %1884 = vmatprep.subr.mxu0 0.0
  %1885 = vmatpush1.msra.mxu0 %v527
  %1886 = vmatprep.subr.mxu0 0.0
  %1887 = vmatpush1.msra.mxu0 %v528
  %1888 = vmatprep.subr.mxu0 0.0
  %1889 = vmatpush1.msra.mxu0 %v529
  %1890 = vmatprep.subr.mxu0 0.0
  %1891 = vmatpush1.msra.mxu0 %v530
  %1892 = vmatprep.subr.mxu0 0.0
  %1893 = vmatpush1.msra.mxu0 %v531
  %1894 = vmatprep.subr.mxu0 0.0
  %1895 = vmatpush1.msra.mxu0 %v532
  %1896 = vmatprep.subr.mxu0 0.0
  %1897 = vmatpush1.msra.mxu0 %v533
  %1898 = vmatprep.subr.mxu0 0.0
  %1899 = vmatpush1.msra.mxu0 %v534
  %1900 = vmatprep.subr.mxu0 0.0
  %1901 = vmatpush1.msra.mxu0 %v535
  %1902 = vmatprep.subr.mxu0 0.0
  %1903 = vmatpush1.msra.mxu0 %v536
  %1904 = vmatprep.subr.mxu0 0.0
  %1905 = vmatpush1.msra.mxu0 %v537
  %1906 = vmatprep.subr.mxu0 0.0
  %1907 = vmatpush1.msra.mxu0 %v538
  %1908 = vmatprep.subr.mxu0 0.0
  %1909 = vmatpush1.msra.mxu0 %v539
  %1910 = vmatprep.subr.mxu0 0.0
  %1911 = vmatpush1.msra.mxu0 %v540
  %1912 = vmatprep.subr.mxu0 0.0
  %1913 = vmatpush1.msra.mxu0 %v541
  %1914 = vmatprep.subr.mxu0 0.0
  %1915 = vmatpush1.msra.mxu0 %v542
  %1916 = vmatprep.subr.mxu0 0.0
  %1917 = vmatpush1.msra.mxu0 %v543
  %1918 = vmatprep.subr.mxu0 0.0
  %1919 = vmatpush1.msra.mxu0 %v544
  %1920 = vmatprep.subr.mxu0 0.0
  %1921 = vmatpush1.msra.mxu0 %v545
  %1922 = vmatprep.subr.mxu0 0.0
  %1923 = vmatpush1.msra.mxu0 %v546
  %1924 = vmatprep.subr.mxu0 0.0
  %1925 = vmatpush1.msra.mxu0 %v547
  %1926 = vmatprep.subr.mxu0 0.0
  %1927 = vmatpush1.msra.mxu0 %v548
  %1928 = vmatprep.subr.mxu0 0.0
  %1929 = vmatpush1.msra.mxu0 %v549
  %1930 = vmatprep.subr.mxu0 0.0
  %1931 = vmatpush1.msra.mxu0 %v550
  %1932 = vmatprep.subr.mxu0 0.0
  %1933 = vmatpush1.msra.mxu0 %v551
  %1934 = vmatprep.subr.mxu0 0.0
  %1935 = vmatpush1.msra.mxu0 %v552
  %1936 = vmatprep.mubr.f32.mxu0 %v768
  %1937 = vmatmul.mubr.f32.gmra.mrb[0].mxu0 %v766
  %v1938 = vpop.f32.mrb[0].mxu0
  %v1939 = vadd.f32 %v1869, %v1938
  %v1940 = vpop.f32.mrb[0].mxu0
  %1941 = vdwg.mxu0
  %1942 = vmatprep.subr.mxu0 0.0
  %1943 = vmatpush1.msra.mxu0 %v553
  %1944 = vmatprep.subr.mxu0 0.0
  %1945 = vmatpush1.msra.mxu0 %v554
  %1946 = vmatprep.subr.mxu0 0.0
  %1947 = vmatpush1.msra.mxu0 %v555
  %1948 = vmatprep.subr.mxu0 0.0
  %1949 = vmatpush1.msra.mxu0 %v556
  %1950 = vmatprep.subr.mxu0 0.0
  %1951 = vmatpush1.msra.mxu0 %v557
  %1952 = vmatprep.subr.mxu0 0.0
  %1953 = vmatpush1.msra.mxu0 %v558
  %1954 = vmatprep.subr.mxu0 0.0
  %1955 = vmatpush1.msra.mxu0 %v559
  %1956 = vmatprep.subr.mxu0 0.0
  %1957 = vmatpush1.msra.mxu0 %v560
  %1958 = vmatprep.subr.mxu0 0.0
  %1959 = vmatpush1.msra.mxu0 %v561
  %1960 = vmatprep.subr.mxu0 0.0
  %1961 = vmatpush1.msra.mxu0 %v562
  %1962 = vmatprep.subr.mxu0 0.0
  %1963 = vmatpush1.msra.mxu0 %v563
  %1964 = vmatprep.subr.mxu0 0.0
  %1965 = vmatpush1.msra.mxu0 %v564
  %1966 = vmatprep.subr.mxu0 0.0
  %1967 = vmatpush1.msra.mxu0 %v565
  %1968 = vmatprep.subr.mxu0 0.0
  %1969 = vmatpush1.msra.mxu0 %v566
  %1970 = vmatprep.subr.mxu0 0.0
  %1971 = vmatpush1.msra.mxu0 %v567
  %1972 = vmatprep.subr.mxu0 0.0
  %1973 = vmatpush1.msra.mxu0 %v568
  %1974 = vmatprep.subr.mxu0 0.0
  %1975 = vmatpush1.msra.mxu0 %v569
  %1976 = vmatprep.subr.mxu0 0.0
  %1977 = vmatpush1.msra.mxu0 %v570
  %1978 = vmatprep.subr.mxu0 0.0
  %1979 = vmatpush1.msra.mxu0 %v571
  %1980 = vmatprep.subr.mxu0 0.0
  %1981 = vmatpush1.msra.mxu0 %v572
  %1982 = vmatprep.subr.mxu0 0.0
  %1983 = vmatpush1.msra.mxu0 %v573
  %1984 = vmatprep.subr.mxu0 0.0
  %1985 = vmatpush1.msra.mxu0 %v574
  %1986 = vmatprep.subr.mxu0 0.0
  %1987 = vmatpush1.msra.mxu0 %v575
  %1988 = vmatprep.subr.mxu0 0.0
  %1989 = vmatpush1.msra.mxu0 %v576
  %1990 = vmatprep.subr.mxu0 0.0
  %1991 = vmatpush1.msra.mxu0 %v577
  %1992 = vmatprep.subr.mxu0 0.0
  %1993 = vmatpush1.msra.mxu0 %v578
  %1994 = vmatprep.subr.mxu0 0.0
  %1995 = vmatpush1.msra.mxu0 %v579
  %1996 = vmatprep.subr.mxu0 0.0
  %1997 = vmatpush1.msra.mxu0 %v580
  %1998 = vmatprep.subr.mxu0 0.0
  %1999 = vmatpush1.msra.mxu0 %v581
  %2000 = vmatprep.subr.mxu0 0.0
  %2001 = vmatpush1.msra.mxu0 %v582
  %2002 = vmatprep.subr.mxu0 0.0
  %2003 = vmatpush1.msra.mxu0 %v583
  %2004 = vmatprep.subr.mxu0 0.0
  %2005 = vmatpush1.msra.mxu0 %v584
  %2006 = vmatprep.mubr.f32.mxu0 %v784
  %2007 = vmatmul.mubr.f32.gmra.mrb[0].mxu0 %v776
  %v2008 = vpop.f32.mrb[0].mxu0
  %v2009 = vadd.f32 %v1939, %v2008
  %v2010 = vpop.f32.mrb[0].mxu0
  %2011 = vdwg.mxu0
  %2012 = vmatprep.subr.mxu0 0.0
  %2013 = vmatpush1.msra.mxu0 %v585
  %2014 = vmatprep.subr.mxu0 0.0
  %2015 = vmatpush1.msra.mxu0 %v586
  %2016 = vmatprep.subr.mxu0 0.0
  %2017 = vmatpush1.msra.mxu0 %v587
  %2018 = vmatprep.subr.mxu0 0.0
  %2019 = vmatpush1.msra.mxu0 %v588
  %2020 = vmatprep.subr.mxu0 0.0
  %2021 = vmatpush1.msra.mxu0 %v589
  %2022 = vmatprep.subr.mxu0 0.0
  %2023 = vmatpush1.msra.mxu0 %v590
  %2024 = vmatprep.subr.mxu0 0.0
  %2025 = vmatpush1.msra.mxu0 %v591
  %2026 = vmatprep.subr.mxu0 0.0
  %2027 = vmatpush1.msra.mxu0 %v592
  %2028 = vmatprep.subr.mxu0 0.0
  %2029 = vmatpush1.msra.mxu0 %v593
  %2030 = vmatprep.subr.mxu0 0.0
  %2031 = vmatpush1.msra.mxu0 %v594
  %2032 = vmatprep.subr.mxu0 0.0
  %2033 = vmatpush1.msra.mxu0 %v595
  %2034 = vmatprep.subr.mxu0 0.0
  %2035 = vmatpush1.msra.mxu0 %v596
  %2036 = vmatprep.subr.mxu0 0.0
  %2037 = vmatpush1.msra.mxu0 %v597
  %2038 = vmatprep.subr.mxu0 0.0
  %2039 = vmatpush1.msra.mxu0 %v598
  %2040 = vmatprep.subr.mxu0 0.0
  %2041 = vmatpush1.msra.mxu0 %v599
  %2042 = vmatprep.subr.mxu0 0.0
  %2043 = vmatpush1.msra.mxu0 %v600
  %2044 = vmatprep.subr.mxu0 0.0
  %2045 = vmatpush1.msra.mxu0 %v601
  %2046 = vmatprep.subr.mxu0 0.0
  %2047 = vmatpush1.msra.mxu0 %v602
  %2048 = vmatprep.subr.mxu0 0.0
  %2049 = vmatpush1.msra.mxu0 %v603
  %2050 = vmatprep.subr.mxu0 0.0
  %2051 = vmatpush1.msra.mxu0 %v604
  %2052 = vmatprep.subr.mxu0 0.0
  %2053 = vmatpush1.msra.mxu0 %v605
  %2054 = vmatprep.subr.mxu0 0.0
  %2055 = vmatpush1.msra.mxu0 %v606
  %2056 = vmatprep.subr.mxu0 0.0
  %2057 = vmatpush1.msra.mxu0 %v607
  %2058 = vmatprep.subr.mxu0 0.0
  %2059 = vmatpush1.msra.mxu0 %v608
  %2060 = vmatprep.subr.mxu0 0.0
  %2061 = vmatpush1.msra.mxu0 %v609
  %2062 = vmatprep.subr.mxu0 0.0
  %2063 = vmatpush1.msra.mxu0 %v610
  %2064 = vmatprep.subr.mxu0 0.0
  %2065 = vmatpush1.msra.mxu0 %v611
  %2066 = vmatprep.subr.mxu0 0.0
  %2067 = vmatpush1.msra.mxu0 %v612
  %2068 = vmatprep.subr.mxu0 0.0
  %2069 = vmatpush1.msra.mxu0 %v613
  %2070 = vmatprep.subr.mxu0 0.0
  %2071 = vmatpush1.msra.mxu0 %v614
  %2072 = vmatprep.subr.mxu0 0.0
  %2073 = vmatpush1.msra.mxu0 %v615
  %2074 = vmatprep.subr.mxu0 0.0
  %2075 = vmatpush1.msra.mxu0 %v616
  %2076 = vmatprep.mubr.f32.mxu0 %v785
  %2077 = vmatmul.mubr.f32.gmra.mrb[0].mxu0 %v783
  %v2078 = vpop.f32.mrb[0].mxu0
  %v2079 = vadd.f32 %v2009, %v2078
  %v2080 = vpop.f32.mrb[0].mxu0
  %2081 = vdwg.mxu0
  %v2082 = vmax.f32 %v2079, 0.0
  %v2083 = vld [vmem:[%s4] sm:$0xff]
  %v2084 = vld [vmem:[%s4 + $0x8] sm:$0xff]
  %v2085 = vld [vmem:[%s4 + $0x10] sm:$0xff]
  %v2086 = vld [vmem:[%s4 + $0x18] sm:$0xff]
  %v2087 = vld [vmem:[%s1] sm:$0x3]
  %v2088 = vld [vmem:[%s5] sm:$0x3]
  %vm2089 = vcmask 15360
  %v2091 = vsel %vm2089, %v2087, 0
  %vm2093 = vcmask 1041408
  %v2095 = vsel %vm2093, %v2088, 0
  %2097 = vmatprep.subr.mxu0 0.0
  %2098 = vmatpush1.msra.mxu0 %v2095
  %2099 = vmatprep.subr.mxu0 0.0
  %2100 = vmatpush1.msra.mxu0 0.0
  %2101 = vmatprep.subr.mxu0 0.0
  %2102 = vmatpush1.msra.mxu0 0.0
  %2103 = vmatprep.subr.mxu0 0.0
  %2104 = vmatpush1.msra.mxu0 0.0
  %2105 = vmatprep.subr.mxu0 0.0
  %2106 = vmatpush1.msra.mxu0 0.0
  %2107 = vmatprep.subr.mxu0 0.0
  %2108 = vmatpush1.msra.mxu0 0.0
  %2109 = vmatprep.subr.mxu0 0.0
  %2110 = vmatpush1.msra.mxu0 0.0
  %2111 = vmatprep.subr.mxu0 0.0
  %2112 = vmatpush1.msra.mxu0 0.0
  %2113 = vmatprep.subr.mxu0 0.0
  %2114 = vmatpush1.msra.mxu0 0.0
  %2115 = vmatprep.subr.mxu0 0.0
  %2116 = vmatpush1.msra.mxu0 0.0
  %2117 = vmatprep.subr.mxu0 0.0
  %2118 = vmatpush1.msra.mxu0 0.0
  %2119 = vmatprep.subr.mxu0 0.0
  %2120 = vmatpush1.msra.mxu0 0.0
  %2121 = vmatprep.subr.mxu0 0.0
  %2122 = vmatpush1.msra.mxu0 0.0
  %2123 = vmatprep.subr.mxu0 0.0
  %2124 = vmatpush1.msra.mxu0 0.0
  %2125 = vmatprep.subr.mxu0 0.0
  %2126 = vmatpush1.msra.mxu0 0.0
  %2127 = vmatprep.subr.mxu0 0.0
  %2128 = vmatpush1.msra.mxu0 0.0
  %2129 = vmatprep.subr.mxu0 0.0
  %2130 = vmatpush1.msra.mxu0 0.0
  %2131 = vmatprep.subr.mxu0 0.0
  %2132 = vmatpush1.msra.mxu0 0.0
  %2133 = vmatprep.subr.mxu0 0.0
  %2134 = vmatpush1.msra.mxu0 0.0
  %2135 = vmatprep.subr.mxu0 0.0
  %2136 = vmatpush1.msra.mxu0 0.0
  %2137 = vmatprep.subr.mxu0 0.0
  %2138 = vmatpush1.msra.mxu0 0.0
  %2139 = vmatprep.subr.mxu0 0.0
  %2140 = vmatpush1.msra.mxu0 0.0
  %2141 = vmatprep.subr.mxu0 0.0
  %2142 = vmatpush1.msra.mxu0 0.0
  %2143 = vmatprep.subr.mxu0 0.0
  %2144 = vmatpush1.msra.mxu0 0.0
  %2145 = vmatprep.subr.mxu0 0.0
  %2146 = vmatpush1.msra.mxu0 0.0
  %2147 = vmatprep.subr.mxu0 0.0
  %2148 = vmatpush1.msra.mxu0 0.0
  %2149 = vmatprep.subr.mxu0 0.0
  %2150 = vmatpush1.msra.mxu0 0.0
  %2151 = vmatprep.subr.mxu0 0.0
  %2152 = vmatpush1.msra.mxu0 0.0
  %2153 = vmatprep.subr.mxu0 0.0
  %2154 = vmatpush1.msra.mxu0 0.0
  %2155 = vmatprep.subr.mxu0 0.0
  %2156 = vmatpush1.msra.mxu0 0.0
  %2157 = vmatprep.subr.mxu0 0.0
  %2158 = vmatpush1.msra.mxu0 0.0
  %2159 = vmatprep.subr.mxu0 0.0
  %2160 = vmatpush1.msra.mxu0 0.0
  %2161 = vmatprep.mubr.f32.mxu0 0.0
  %2162 = vmatmul.mubr.f32.gmra.mrb[0].mxu0 %v2091
  %v2163 = vpop.f32.mrb[0].mxu0
  %v2164 = vadd.f32 0.0, %v2163
  %v2165 = vpop.f32.mrb[0].mxu0
  %2166 = vdwg.mxu0
  %vm2167 = vcmask 261120
  %v2169 = vsel %vm2167, %v2082, 0
  %2171 = vmatprep.subr.mxu0 0.0
  %2172 = vmatpush1.msra.mxu0 %v2083
  %2173 = vmatprep.subr.mxu0 0.0
  %2174 = vmatpush1.msra.mxu0 %v2084
  %2175 = vmatprep.subr.mxu0 0.0
  %2176 = vmatpush1.msra.mxu0 %v2085
  %2177 = vmatprep.subr.mxu0 0.0
  %2178 = vmatpush1.msra.mxu0 %v2086
  %2179 = vmatprep.subr.mxu0 0.0
  %2180 = vmatpush1.msra.mxu0 0.0
  %2181 = vmatprep.subr.mxu0 0.0
  %2182 = vmatpush1.msra.mxu0 0.0
  %2183 = vmatprep.subr.mxu0 0.0
  %2184 = vmatpush1.msra.mxu0 0.0
  %2185 = vmatprep.subr.mxu0 0.0
  %2186 = vmatpush1.msra.mxu0 0.0
  %2187 = vmatprep.subr.mxu0 0.0
  %2188 = vmatpush1.msra.mxu0 0.0
  %2189 = vmatprep.subr.mxu0 0.0
  %2190 = vmatpush1.msra.mxu0 0.0
  %2191 = vmatprep.subr.mxu0 0.0
  %2192 = vmatpush1.msra.mxu0 0.0
  %2193 = vmatprep.subr.mxu0 0.0
  %2194 = vmatpush1.msra.mxu0 0.0
  %2195 = vmatprep.subr.mxu0 0.0
  %2196 = vmatpush1.msra.mxu0 0.0
  %2197 = vmatprep.subr.mxu0 0.0
  %2198 = vmatpush1.msra.mxu0 0.0
  %2199 = vmatprep.subr.mxu0 0.0
  %2200 = vmatpush1.msra.mxu0 0.0
  %2201 = vmatprep.subr.mxu0 0.0
  %2202 = vmatpush1.msra.mxu0 0.0
  %2203 = vmatprep.subr.mxu0 0.0
  %2204 = vmatpush1.msra.mxu0 0.0
  %2205 = vmatprep.subr.mxu0 0.0
  %2206 = vmatpush1.msra.mxu0 0.0
  %2207 = vmatprep.subr.mxu0 0.0
  %2208 = vmatpush1.msra.mxu0 0.0
  %2209 = vmatprep.subr.mxu0 0.0
  %2210 = vmatpush1.msra.mxu0 0.0
  %2211 = vmatprep.subr.mxu0 0.0
  %2212 = vmatpush1.msra.mxu0 0.0
  %2213 = vmatprep.subr.mxu0 0.0
  %2214 = vmatpush1.msra.mxu0 0.0
  %2215 = vmatprep.subr.mxu0 0.0
  %2216 = vmatpush1.msra.mxu0 0.0
  %2217 = vmatprep.subr.mxu0 0.0
  %2218 = vmatpush1.msra.mxu0 0.0
  %2219 = vmatprep.subr.mxu0 0.0
  %2220 = vmatpush1.msra.mxu0 0.0
  %2221 = vmatprep.subr.mxu0 0.0
  %2222 = vmatpush1.msra.mxu0 0.0
  %2223 = vmatprep.subr.mxu0 0.0
  %2224 = vmatpush1.msra.mxu0 0.0
  %2225 = vmatprep.subr.mxu0 0.0
  %2226 = vmatpush1.msra.mxu0 0.0
  %2227 = vmatprep.subr.mxu0 0.0
  %2228 = vmatpush1.msra.mxu0 0.0
  %2229 = vmatprep.subr.mxu0 0.0
  %2230 = vmatpush1.msra.mxu0 0.0
  %2231 = vmatprep.subr.mxu0 0.0
  %2232 = vmatpush1.msra.mxu0 0.0
  %2233 = vmatprep.subr.mxu0 0.0
  %2234 = vmatpush1.msra.mxu0 0.0
  %2235 = vmatprep.mubr.f32.mxu0 0.0
  %2236 = vmatmul.mubr.f32.gmra.mrb[0].mxu0 %v2169
  %v2237 = vpop.f32.mrb[0].mxu0
  %v2238 = vadd.f32 %v2164, %v2237
  %v2239 = vpop.f32.mrb[0].mxu0
  %2240 = vdwg.mxu0
  %v2241 = vld [vmem:[%s6] sm:$0x1]
  %v2243 = vlaneseq
  %v2244 = vshrl.u32 %v2243, 7
  %v2245 = vsub.s32 0, %v2244
  %v2246 = vrot.slane %v2241, %v2245
  %v2248 = vadd.f32 %v2238, %v2246
  %v2249 = vmax.f32 %v2248, 0.0
  %v2250 = vld [vmem:[%s7] sm:$0xff]
  %v2251 = vld [vmem:[%s7 + $0x8] sm:$0xff]
  %v2252 = vld [vmem:[%s7 + $0x10] sm:$0xff]
  %v2253 = vld [vmem:[%s7 + $0x18] sm:$0xff]
  %v2254 = vld [vmem:[%s7 + $0x20] sm:$0x3]
  %v2255 = vld [vmem:[%s8] sm:$0x1]
  %v2257 = vlaneseq
  %v2258 = vshrl.u32 %v2257, 7
  %v2259 = vsub.s32 0, %v2258
  %v2260 = vrot.slane %v2255, %v2259
  %vm2262 = vcmask 277504
  %v2264 = vsel %vm2262, %v2249, 0
  %v2267 = vsel %vm2093, %v2254, 0
  %2269 = vmatprep.subr.mxu0 0.0
  %2270 = vmatpush1.msra.mxu0 %v2250
  %2271 = vmatprep.subr.mxu0 0.0
  %2272 = vmatpush1.msra.mxu0 %v2251
  %2273 = vmatprep.subr.mxu0 0.0
  %2274 = vmatpush1.msra.mxu0 %v2252
  %2275 = vmatprep.subr.mxu0 0.0
  %2276 = vmatpush1.msra.mxu0 %v2253
  %2277 = vmatprep.subr.mxu0 0.0
  %2278 = vmatpush1.msra.mxu0 %v2267
  %2279 = vmatprep.subr.mxu0 0.0
  %2280 = vmatpush1.msra.mxu0 0.0
  %2281 = vmatprep.subr.mxu0 0.0
  %2282 = vmatpush1.msra.mxu0 0.0
  %2283 = vmatprep.subr.mxu0 0.0
  %2284 = vmatpush1.msra.mxu0 0.0
  %2285 = vmatprep.subr.mxu0 0.0
  %2286 = vmatpush1.msra.mxu0 0.0
  %2287 = vmatprep.subr.mxu0 0.0
  %2288 = vmatpush1.msra.mxu0 0.0
  %2289 = vmatprep.subr.mxu0 0.0
  %2290 = vmatpush1.msra.mxu0 0.0
  %2291 = vmatprep.subr.mxu0 0.0
  %2292 = vmatpush1.msra.mxu0 0.0
  %2293 = vmatprep.subr.mxu0 0.0
  %2294 = vmatpush1.msra.mxu0 0.0
  %2295 = vmatprep.subr.mxu0 0.0
  %2296 = vmatpush1.msra.mxu0 0.0
  %2297 = vmatprep.subr.mxu0 0.0
  %2298 = vmatpush1.msra.mxu0 0.0
  %2299 = vmatprep.subr.mxu0 0.0
  %2300 = vmatpush1.msra.mxu0 0.0
  %2301 = vmatprep.subr.mxu0 0.0
  %2302 = vmatpush1.msra.mxu0 0.0
  %2303 = vmatprep.subr.mxu0 0.0
  %2304 = vmatpush1.msra.mxu0 0.0
  %2305 = vmatprep.subr.mxu0 0.0
  %2306 = vmatpush1.msra.mxu0 0.0
  %2307 = vmatprep.subr.mxu0 0.0
  %2308 = vmatpush1.msra.mxu0 0.0
  %2309 = vmatprep.subr.mxu0 0.0
  %2310 = vmatpush1.msra.mxu0 0.0
  %2311 = vmatprep.subr.mxu0 0.0
  %2312 = vmatpush1.msra.mxu0 0.0
  %2313 = vmatprep.subr.mxu0 0.0
  %2314 = vmatpush1.msra.mxu0 0.0
  %2315 = vmatprep.subr.mxu0 0.0
  %2316 = vmatpush1.msra.mxu0 0.0
  %2317 = vmatprep.subr.mxu0 0.0
  %2318 = vmatpush1.msra.mxu0 0.0
  %2319 = vmatprep.subr.mxu0 0.0
  %2320 = vmatpush1.msra.mxu0 0.0
  %2321 = vmatprep.subr.mxu0 0.0
  %2322 = vmatpush1.msra.mxu0 0.0
  %2323 = vmatprep.subr.mxu0 0.0
  %2324 = vmatpush1.msra.mxu0 0.0
  %2325 = vmatprep.subr.mxu0 0.0
  %2326 = vmatpush1.msra.mxu0 0.0
  %2327 = vmatprep.subr.mxu0 0.0
  %2328 = vmatpush1.msra.mxu0 0.0
  %2329 = vmatprep.subr.mxu0 0.0
  %2330 = vmatpush1.msra.mxu0 0.0
  %2331 = vmatprep.subr.mxu0 0.0
  %2332 = vmatpush1.msra.mxu0 0.0
  %2333 = vmatprep.mubr.f32.mxu0 0.0
  %2334 = vmatmul.mubr.f32.gmra.mrb[0].mxu0 %v2264
  %v2335 = vpop.f32.mrb[0].mxu0
  %v2336 = vadd.f32 %v2260, %v2335
  %v2337 = vpop.f32.mrb[0].mxu0
  %2338 = vdwg.mxu0
  %v2339 = vlaneseq
  %v2340 = vand.u32 %v2339, 127
  %vm2341 = vcmp.ge.s32.totalorder %v2340, 4
  %v2342 = vmax.f32 %v2336, -20.0
  %v2343 = vmin.f32 %v2342, 2.0
  %v2344 = vsel %vm2341, %v2343, %v2336
  %2345 = vst [vmem:[%s9] sm:$0x3] %v2344
  // Predicated region
  $region38: #{_forward_impl.3} parent=0 // pred_check
    _
  $region39: #{_forward_impl.3} parent=0 // pred_check_branch
    %2347 = sbr.rel (0) target = $region41
  $region40: #{_forward_impl.3} parent=0 // pred_region
    _
  $region41: #{_forward_impl.3} parent=0 // pred_fallthru
    _
  // Predicated region
  $region42: #{_forward_impl.3} parent=0 // pred_check
    _
  $region43: #{_forward_impl.3} parent=0 // pred_check_branch
    %2349 = sbr.rel (0) target = $region45
  $region44: #{_forward_impl.3} parent=0 // pred_region
    _
  $region45: #{_forward_impl.3} parent=0 // pred_fallthru
    _

</llo_original>
